<compile_context>
chip_gen: v6e
topology: v6e:2x2x1
jax: 0.10.0
libtpu: 0.0.40
codegen_flags: <defaults>
</compile_context>

<pallas_src>
import functools
from math import sqrt

import jax
import jax.numpy as jnp
from jax.experimental import pallas as pl
from jax.experimental.pallas import tpu as pltpu


# ----------------------------------------------------------------------------
# Pallas kernel: one batch element per grid step, all heads fused.
# ----------------------------------------------------------------------------
def _rmha_kernel(x_ref, wq_ref, wk_ref, wv_ref, tk_ref, tv_ref, o_ref, *,
                 n_heads, key_dim, value_dim, seq_len, pad_width):
    S, K, V, P = seq_len, key_dim, value_dim, pad_width
    mm_dtype = wq_ref.dtype

    x = x_ref[0]                                                       # (S, E)

    # Fused all-head projections: wide, lane-dense MXU matmuls (f32 accumulate).
    q = jnp.dot(x, wq_ref[...], preferred_element_type=jnp.float32)   # (S, H*K)
    k = jnp.dot(x, wk_ref[...], preferred_element_type=jnp.float32)   # (S, H*K)
    v = jnp.dot(x, wv_ref[...], preferred_element_type=jnp.float32)   # (S, H*V)

    tk_t = tk_ref[...]                                                 # (K, P)
    tv = tv_ref[...]                                                   # (P, H*V)

    # Per-row shift amounts for the skew: row i gets shifted by (S-1-i) lanes.
    row = jax.lax.broadcasted_iota(jnp.int32, (S, P), 0)
    shifts = (S - 1) - row
    n_bits = (S - 1).bit_length()
    bit_masks = [((shifts >> b) & 1) == 1 for b in range(n_bits)]      # hoisted

    def _rotate_rows(a, left):
        # Rotate row i of `a` by shifts[i] lanes (left/right) via a static log2(S)
        # sequence of whole-array lane rotations + per-row selects.
        out = a
        for b, take in enumerate(bit_masks):
            amt = 1 << b
            if left:
                rot = jnp.concatenate([out[:, amt:], out[:, :amt]], axis=1)
            else:
                rot = jnp.concatenate([out[:, P - amt:], out[:, :P - amt]], axis=1)
            out = jnp.where(take, rot, out)
        return out

    zeros_pad = jnp.zeros((S, P - S), jnp.float32)
    acc = jnp.zeros((S, V), jnp.float32)

    for h in range(n_heads):
        q_h = q[:, h * K:(h + 1) * K].astype(mm_dtype)                 # (S, K)
        k_h = k[:, h * K:(h + 1) * K].astype(mm_dtype)                 # (S, K)
        v_h = v[:, h * V:(h + 1) * V].astype(mm_dtype)                 # (S, V)

        # content-content scores ('ik,jk->ij'); q already pre-scaled by 1/sqrt(V).
        scores = jax.lax.dot_general(
            q_h, k_h, (((1,), (1,)), ((), ())),
            preferred_element_type=jnp.float32)                        # (S, S)

        # content-position scores via skew: rq[i, d] = q_h[i] . T_k[d]
        rq = jnp.dot(q_h, tk_t, preferred_element_type=jnp.float32)    # (S, P)
        bias = _rotate_rows(rq, left=True)[:, :S]                      # (S, S)

        e = scores + bias
        e_max = jnp.max(e, axis=-1, keepdims=True)
        p = jnp.exp(e - e_max)
        inv = pl.reciprocal(jnp.sum(p, axis=-1, keepdims=True), approx=True)
        alphas = p * inv                                               # (S, S) f32

        # relative value term: bin alphas by relative offset (reverse skew) + matmul.
        alphas_pad = jnp.concatenate([alphas, zeros_pad], axis=1)      # (S, P)
        binned = _rotate_rows(alphas_pad, left=False).astype(mm_dtype)

        z_h = jnp.dot(alphas.astype(mm_dtype), v_h,
                      preferred_element_type=jnp.float32)              # (S, V)
        z_h = z_h + jnp.dot(binned, tv[:, h * V:(h + 1) * V],
                            preferred_element_type=jnp.float32)        # (S, V)
        acc = acc + z_h                                                # w_o folded in

    o_ref[...] = acc[None, :, :].astype(o_ref.dtype)


# ----------------------------------------------------------------------------
# Wrapper: fold scalings, stack heads, build diagonal tables, call the kernel.
# ----------------------------------------------------------------------------
def relative_multihead_attention(xs, w_q, w_k, w_v, w_o, a_k, a_v,
                                 relative_cutoff, matmul_dtype=jnp.bfloat16):
    B, S, E = xs.shape
    H, _, K = w_q.shape
    V = w_v.shape[-1]
    P = ((2 * S - 1 + 127) // 128) * 128       # lane-dense diagonal width (>= 2S-1)

    # Fold 1/sqrt(value_dim) into w_q (scales both q.k and q.rel terms); fold w_o
    # into w_v.  Stack heads along the lane axis: (E, H*K) / (E, H*V).
    scale = 1.0 / sqrt(V)
    wq_s = (jnp.transpose(w_q, (1, 0, 2)) * scale).reshape(E, H * K)
    wk_s = jnp.transpose(w_k, (1, 0, 2)).reshape(E, H * K)
    wv_s = jnp.transpose(w_v * w_o[:, None, None], (1, 0, 2)).reshape(E, H * V)

    # Diagonal-ordered relative tables: T[d] = a[clip(d-(S-1), -C, C) + C], d<2S-1.
    d = jnp.arange(P)
    rel = jnp.clip(d - (S - 1), -relative_cutoff, relative_cutoff) + relative_cutoff
    valid = (d < 2 * S - 1)[:, None]
    t_k = jnp.where(valid, a_k[rel], 0.0)                              # (P, K)
    t_v = jnp.where(valid, a_v[rel], 0.0)                              # (P, V)
    tk_t = t_k.T                                                       # (K, P)
    tv_all = (t_v[:, None, :] * w_o[None, :, None]).reshape(P, H * V)  # w_o folded

    xs_c = xs.astype(matmul_dtype)
    wq_s = wq_s.astype(matmul_dtype)
    wk_s = wk_s.astype(matmul_dtype)
    wv_s = wv_s.astype(matmul_dtype)
    tk_t = tk_t.astype(matmul_dtype)
    tv_all = tv_all.astype(matmul_dtype)

    kernel = functools.partial(
        _rmha_kernel, n_heads=H, key_dim=K, value_dim=V, seq_len=S, pad_width=P)

    grid_spec = pltpu.PrefetchScalarGridSpec(
        num_scalar_prefetch=0,
        grid=(B,),
        in_specs=[
            pl.BlockSpec((1, S, E), lambda b: (b, 0, 0)),      # xs
            pl.BlockSpec((E, H * K), lambda b: (0, 0)),        # stacked w_q (pre-scaled)
            pl.BlockSpec((E, H * K), lambda b: (0, 0)),        # stacked w_k
            pl.BlockSpec((E, H * V), lambda b: (0, 0)),        # stacked w_v (w_o folded)
            pl.BlockSpec((K, P), lambda b: (0, 0)),            # T_k^T (diag order)
            pl.BlockSpec((P, H * V), lambda b: (0, 0)),        # T_v   (w_o folded)
        ],
        out_specs=pl.BlockSpec((1, S, V), lambda b: (b, 0, 0)),
    )

    return pl.pallas_call(
        kernel,
        out_shape=jax.ShapeDtypeStruct((B, S, V), jnp.float32),
        grid_spec=grid_spec,
        compiler_params=pltpu.CompilerParams(
            dimension_semantics=("parallel",)),
    )(xs_c, wq_s, wk_s, wv_s, tk_t, tv_all)


# ----------------------------------------------------------------------------
# Pure-JAX reference (mirrors the PyTorch forward exactly, f32 everywhere)
# ----------------------------------------------------------------------------
def _relative_embeddings(table, seq_len, cutoff):
    pos = jnp.arange(seq_len)
    rel = pos[None, :] - pos[:, None]
    rel = jnp.clip(rel, -cutoff, cutoff) + cutoff
    return table[rel]


def reference(xs, w_q, w_k, w_v, w_o, a_k, a_v, relative_cutoff):
    S = xs.shape[1]
    V = w_v.shape[-1]
    queries = jnp.einsum('bse,heq->bhsq', xs, w_q)
    keys = jnp.einsum('bse,hek->bhsk', xs, w_k)
    values = jnp.einsum('bse,hev->bhsv', xs, w_v)
    q_k = jnp.einsum('bhiq,bhjq->bhij', queries, keys)
    q_rel = jnp.einsum('bhiq,ijq->bhij', queries,
                       _relative_embeddings(a_k, S, relative_cutoff))
    e = (q_k + q_rel) / sqrt(V)
    alphas = jax.nn.softmax(e, axis=3)
    qkv = jnp.einsum('bhij,bhjv->bhiv', alphas, values)
    v_rel = jnp.einsum('bhij,ijv->bhiv', alphas,
                       _relative_embeddings(a_v, S, relative_cutoff))
    z = qkv + v_rel
    return jnp.einsum('bhsv,h->bsv', z, w_o)


# ----------------------------------------------------------------------------
# Deterministic parameter init (kaiming-uniform-like bounds, synthetic)
# ----------------------------------------------------------------------------
def init_params(key, embed_dim, key_dim, value_dim, n_heads, relative_cutoff):
    k1, k2, k3, k4, k5 = jax.random.split(key, 5)

    def kaiming_uniform(k, shape, fan_in):
        bound = sqrt(6.0 / ((1.0 + 5.0) * fan_in))  # a=sqrt(5) leaky-relu gain
        return jax.random.uniform(k, shape, jnp.float32, -bound, bound)

    w_q = kaiming_uniform(k1, (n_heads, embed_dim, key_dim), embed_dim * key_dim)
    w_k = kaiming_uniform(k2, (n_heads, embed_dim, key_dim), embed_dim * key_dim)
    w_v = kaiming_uniform(k3, (n_heads, embed_dim, value_dim), embed_dim * value_dim)
    w_o = jnp.ones((n_heads,), jnp.float32)
    a_k = kaiming_uniform(k4, (relative_cutoff * 2 + 1, key_dim), key_dim)
    a_v = kaiming_uniform(k5, (relative_cutoff * 2 + 1, value_dim), value_dim)
    return w_q, w_k, w_v, w_o, a_k, a_v


if __name__ == "__main__":
    # Small, module-consistent shapes.
    B, S, E = 2, 8, 32
    key_dim, value_dim, n_heads, relative_cutoff = 64, 64, 8, 128

    root = jax.random.PRNGKey(0)
    kx, kp = jax.random.split(root)
    xs = jax.random.normal(kx, (B, S, E), jnp.float32)
    w_q, w_k, w_v, w_o, a_k, a_v = init_params(
        kp, E, key_dim, value_dim, n_heads, relative_cutoff)

    ref = reference(xs, w_q, w_k, w_v, w_o, a_k, a_v, relative_cutoff)

    # Default path: bf16 MXU operands + f32 accumulation (per perf review).
    out_bf16 = jax.block_until_ready(
        relative_multihead_attention(xs, w_q, w_k, w_v, w_o, a_k, a_v,
                                     relative_cutoff,
                                     matmul_dtype=jnp.bfloat16))
    assert out_bf16.shape == (B, S, value_dim)
    assert jnp.allclose(out_bf16, ref, atol=2e-2, rtol=2e-2), "bf16 kernel mismatch"

    # Full-f32 matmul path: tighter check of the skew / head-fusion math.
    out_f32 = jax.block_until_ready(
        relative_multihead_attention(xs, w_q, w_k, w_v, w_o, a_k, a_v,
                                     relative_cutoff,
                                     matmul_dtype=jnp.float32))
    assert jnp.allclose(out_f32, ref, atol=2e-3, rtol=2e-3), "f32 kernel mismatch"

    print("KERNEL_OK")
</pallas_src>

<mosaic_0001>
module attributes {stable_mosaic.version = 11 : i64} {
  func.func @_rmha_kernel(%arg0: i32, %arg1: memref<1x8x32xbf16, #tpu.memory_space<vmem>>, %arg2: memref<32x512xbf16, #tpu.memory_space<vmem>>, %arg3: memref<32x512xbf16, #tpu.memory_space<vmem>>, %arg4: memref<32x512xbf16, #tpu.memory_space<vmem>>, %arg5: memref<64x128xbf16, #tpu.memory_space<vmem>>, %arg6: memref<128x512xbf16, #tpu.memory_space<vmem>>, %arg7: memref<1x8x64xf32, #tpu.memory_space<vmem>>) attributes {dimension_semantics = [#tpu.dimension_semantics<parallel>], iteration_bounds = array<i64: 2>, scalar_prefetch = 0 : i64, scratch_operands = 0 : i64, tpu.core_type = #tpu.core_type<tc>, window_params = [{transform_indices = @transform_0, window_bounds = array<i64: 1, 8, 32>}, {pipeline_mode = #tpu.pipeline_mode<synchronous>, transform_indices = @transform_1, window_bounds = array<i64: 32, 512>}, {pipeline_mode = #tpu.pipeline_mode<synchronous>, transform_indices = @transform_2, window_bounds = array<i64: 32, 512>}, {pipeline_mode = #tpu.pipeline_mode<synchronous>, transform_indices = @transform_3, window_bounds = array<i64: 32, 512>}, {pipeline_mode = #tpu.pipeline_mode<synchronous>, transform_indices = @transform_4, window_bounds = array<i64: 64, 128>}, {pipeline_mode = #tpu.pipeline_mode<synchronous>, transform_indices = @transform_5, window_bounds = array<i64: 128, 512>}, {transform_indices = @transform_6, window_bounds = array<i64: 1, 8, 64>}]} {
    %c0 = arith.constant 0 : index
    %c0_0 = arith.constant 0 : index
    %c0_1 = arith.constant 0 : index
    %0 = vector.load %arg1[%c0, %c0_0, %c0_1] : memref<1x8x32xbf16, #tpu.memory_space<vmem>>, vector<1x8x32xbf16>
    %1 = vector.shape_cast %0 : vector<1x8x32xbf16> to vector<8x32xbf16>
    %c0_2 = arith.constant 0 : index
    %c0_3 = arith.constant 0 : index
    %2 = vector.load %arg2[%c0_2, %c0_3] : memref<32x512xbf16, #tpu.memory_space<vmem>>, vector<32x512xbf16>
    %cst = arith.constant dense<0.000000e+00> : vector<8x512xf32>
    %3 = tpu.matmul %1, %2, %cst {dimension_numbers = #tpu.dot_dimension_numbers<[1], [0], [0], [1], [0, 0, 1, 1], [], []>} : vector<8x32xbf16>, vector<32x512xbf16>, vector<8x512xf32> -> vector<8x512xf32>
    %c0_4 = arith.constant 0 : index
    %c0_5 = arith.constant 0 : index
    %4 = vector.load %arg3[%c0_4, %c0_5] : memref<32x512xbf16, #tpu.memory_space<vmem>>, vector<32x512xbf16>
    %cst_6 = arith.constant dense<0.000000e+00> : vector<8x512xf32>
    %5 = tpu.matmul %1, %4, %cst_6 {dimension_numbers = #tpu.dot_dimension_numbers<[1], [0], [0], [1], [0, 0, 1, 1], [], []>} : vector<8x32xbf16>, vector<32x512xbf16>, vector<8x512xf32> -> vector<8x512xf32>
    %c0_7 = arith.constant 0 : index
    %c0_8 = arith.constant 0 : index
    %6 = vector.load %arg4[%c0_7, %c0_8] : memref<32x512xbf16, #tpu.memory_space<vmem>>, vector<32x512xbf16>
    %cst_9 = arith.constant dense<0.000000e+00> : vector<8x512xf32>
    %7 = tpu.matmul %1, %6, %cst_9 {dimension_numbers = #tpu.dot_dimension_numbers<[1], [0], [0], [1], [0, 0, 1, 1], [], []>} : vector<8x32xbf16>, vector<32x512xbf16>, vector<8x512xf32> -> vector<8x512xf32>
    %c0_10 = arith.constant 0 : index
    %c0_11 = arith.constant 0 : index
    %8 = vector.load %arg5[%c0_10, %c0_11] : memref<64x128xbf16, #tpu.memory_space<vmem>>, vector<64x128xbf16>
    %c0_12 = arith.constant 0 : index
    %c0_13 = arith.constant 0 : index
    %9 = vector.load %arg6[%c0_12, %c0_13] : memref<128x512xbf16, #tpu.memory_space<vmem>>, vector<128x512xbf16>
    %10 = tpu.iota {dimensions = array<i32: 0>} : vector<8x128xi32>
    %c7_i32 = arith.constant 7 : i32
    %11 = vector.broadcast %c7_i32 : i32 to vector<8x128xi32>
    %12 = arith.subi %11, %10 : vector<8x128xi32>
    %c0_i32 = arith.constant 0 : i32
    %13 = vector.broadcast %c0_i32 : i32 to vector<8x128xi32>
    %14 = arith.shrsi %12, %13 : vector<8x128xi32>
    %c1_i32 = arith.constant 1 : i32
    %15 = vector.broadcast %c1_i32 : i32 to vector<8x128xi32>
    %16 = arith.andi %14, %15 : vector<8x128xi32>
    %c1_i32_14 = arith.constant 1 : i32
    %17 = vector.broadcast %c1_i32_14 : i32 to vector<8x128xi32>
    %18 = arith.cmpi eq, %16, %17 : vector<8x128xi32>
    %c1_i32_15 = arith.constant 1 : i32
    %19 = vector.broadcast %c1_i32_15 : i32 to vector<8x128xi32>
    %20 = arith.shrsi %12, %19 : vector<8x128xi32>
    %c1_i32_16 = arith.constant 1 : i32
    %21 = vector.broadcast %c1_i32_16 : i32 to vector<8x128xi32>
    %22 = arith.andi %20, %21 : vector<8x128xi32>
    %c1_i32_17 = arith.constant 1 : i32
    %23 = vector.broadcast %c1_i32_17 : i32 to vector<8x128xi32>
    %24 = arith.cmpi eq, %22, %23 : vector<8x128xi32>
    %c2_i32 = arith.constant 2 : i32
    %25 = vector.broadcast %c2_i32 : i32 to vector<8x128xi32>
    %26 = arith.shrsi %12, %25 : vector<8x128xi32>
    %c1_i32_18 = arith.constant 1 : i32
    %27 = vector.broadcast %c1_i32_18 : i32 to vector<8x128xi32>
    %28 = arith.andi %26, %27 : vector<8x128xi32>
    %c1_i32_19 = arith.constant 1 : i32
    %29 = vector.broadcast %c1_i32_19 : i32 to vector<8x128xi32>
    %30 = arith.cmpi eq, %28, %29 : vector<8x128xi32>
    %cst_20 = arith.constant 0.000000e+00 : f32
    %31 = vector.broadcast %cst_20 : f32 to vector<8x120xf32>
    %cst_21 = arith.constant 0.000000e+00 : f32
    %32 = vector.broadcast %cst_21 : f32 to vector<8x64xf32>
    %33 = vector.extract_strided_slice %3 {offsets = [0, 0], sizes = [8, 64], strides = [1, 1]} : vector<8x512xf32> to vector<8x64xf32>
    %34 = arith.truncf %33 : vector<8x64xf32> to vector<8x64xbf16>
    %35 = vector.extract_strided_slice %5 {offsets = [0, 0], sizes = [8, 64], strides = [1, 1]} : vector<8x512xf32> to vector<8x64xf32>
    %36 = arith.truncf %35 : vector<8x64xf32> to vector<8x64xbf16>
    %37 = vector.extract_strided_slice %7 {offsets = [0, 0], sizes = [8, 64], strides = [1, 1]} : vector<8x512xf32> to vector<8x64xf32>
    %38 = arith.truncf %37 : vector<8x64xf32> to vector<8x64xbf16>
    %cst_22 = arith.constant dense<0.000000e+00> : vector<8x8xf32>
    %39 = tpu.matmul %34, %36, %cst_22 {dimension_numbers = #tpu.dot_dimension_numbers<[1], [1], [0], [0], [0, 0, 1, 0], [], []>} : vector<8x64xbf16>, vector<8x64xbf16>, vector<8x8xf32> -> vector<8x8xf32>
    %cst_23 = arith.constant dense<0.000000e+00> : vector<8x128xf32>
    %40 = tpu.matmul %34, %8, %cst_23 {dimension_numbers = #tpu.dot_dimension_numbers<[1], [0], [0], [1], [0, 0, 1, 1], [], []>} : vector<8x64xbf16>, vector<64x128xbf16>, vector<8x128xf32> -> vector<8x128xf32>
    %41 = vector.extract_strided_slice %40 {offsets = [0, 1], sizes = [8, 127], strides = [1, 1]} : vector<8x128xf32> to vector<8x127xf32>
    %42 = vector.extract_strided_slice %40 {offsets = [0, 0], sizes = [8, 1], strides = [1, 1]} : vector<8x128xf32> to vector<8x1xf32>
    %43 = tpu.concatenate %41, %42 in 1 : vector<8x127xf32>, vector<8x1xf32> -> vector<8x128xf32>
    %44 = arith.select %18, %43, %40 : vector<8x128xi1>, vector<8x128xf32>
    %45 = vector.extract_strided_slice %44 {offsets = [0, 2], sizes = [8, 126], strides = [1, 1]} : vector<8x128xf32> to vector<8x126xf32>
    %46 = vector.extract_strided_slice %44 {offsets = [0, 0], sizes = [8, 2], strides = [1, 1]} : vector<8x128xf32> to vector<8x2xf32>
    %47 = tpu.concatenate %45, %46 in 1 : vector<8x126xf32>, vector<8x2xf32> -> vector<8x128xf32>
    %48 = arith.select %24, %47, %44 : vector<8x128xi1>, vector<8x128xf32>
    %49 = vector.extract_strided_slice %48 {offsets = [0, 4], sizes = [8, 124], strides = [1, 1]} : vector<8x128xf32> to vector<8x124xf32>
    %50 = vector.extract_strided_slice %48 {offsets = [0, 0], sizes = [8, 4], strides = [1, 1]} : vector<8x128xf32> to vector<8x4xf32>
    %51 = tpu.concatenate %49, %50 in 1 : vector<8x124xf32>, vector<8x4xf32> -> vector<8x128xf32>
    %52 = arith.select %30, %51, %48 : vector<8x128xi1>, vector<8x128xf32>
    %53 = vector.extract_strided_slice %52 {offsets = [0, 0], sizes = [8, 8], strides = [1, 1]} : vector<8x128xf32> to vector<8x8xf32>
    %54 = arith.addf %39, %53 : vector<8x8xf32>
    %cst_24 = arith.constant dense<0xFF800000> : vector<8xf32>
    %55 = vector.multi_reduction <maximumf>, %54, %cst_24 [1] : vector<8x8xf32> to vector<8xf32>
    %56 = vector.shape_cast %55 : vector<8xf32> to vector<8x1xf32>
    %57 = vector.broadcast %56 : vector<8x1xf32> to vector<8x8xf32>
    %58 = arith.subf %54, %57 : vector<8x8xf32>
    %59 = math.exp %58 : vector<8x8xf32>
    %cst_25 = arith.constant dense<0.000000e+00> : vector<8xf32>
    %60 = vector.multi_reduction <add>, %59, %cst_25 [1] : vector<8x8xf32> to vector<8xf32>
    %61 = vector.shape_cast %60 : vector<8xf32> to vector<8x1xf32>
    %62 = tpu.reciprocal %61 {approx = true} : vector<8x1xf32> -> vector<8x1xf32>
    %63 = vector.broadcast %62 : vector<8x1xf32> to vector<8x8xf32>
    %64 = arith.mulf %59, %63 : vector<8x8xf32>
    %65 = tpu.concatenate %64, %31 in 1 : vector<8x8xf32>, vector<8x120xf32> -> vector<8x128xf32>
    %66 = vector.extract_strided_slice %65 {offsets = [0, 127], sizes = [8, 1], strides = [1, 1]} : vector<8x128xf32> to vector<8x1xf32>
    %67 = vector.extract_strided_slice %65 {offsets = [0, 0], sizes = [8, 127], strides = [1, 1]} : vector<8x128xf32> to vector<8x127xf32>
    %68 = tpu.concatenate %66, %67 in 1 : vector<8x1xf32>, vector<8x127xf32> -> vector<8x128xf32>
    %69 = arith.select %18, %68, %65 : vector<8x128xi1>, vector<8x128xf32>
    %70 = vector.extract_strided_slice %69 {offsets = [0, 126], sizes = [8, 2], strides = [1, 1]} : vector<8x128xf32> to vector<8x2xf32>
    %71 = vector.extract_strided_slice %69 {offsets = [0, 0], sizes = [8, 126], strides = [1, 1]} : vector<8x128xf32> to vector<8x126xf32>
    %72 = tpu.concatenate %70, %71 in 1 : vector<8x2xf32>, vector<8x126xf32> -> vector<8x128xf32>
    %73 = arith.select %24, %72, %69 : vector<8x128xi1>, vector<8x128xf32>
    %74 = vector.extract_strided_slice %73 {offsets = [0, 124], sizes = [8, 4], strides = [1, 1]} : vector<8x128xf32> to vector<8x4xf32>
    %75 = vector.extract_strided_slice %73 {offsets = [0, 0], sizes = [8, 124], strides = [1, 1]} : vector<8x128xf32> to vector<8x124xf32>
    %76 = tpu.concatenate %74, %75 in 1 : vector<8x4xf32>, vector<8x124xf32> -> vector<8x128xf32>
    %77 = arith.select %30, %76, %73 : vector<8x128xi1>, vector<8x128xf32>
    %78 = arith.truncf %77 : vector<8x128xf32> to vector<8x128xbf16>
    %79 = arith.truncf %64 : vector<8x8xf32> to vector<8x8xbf16>
    %cst_26 = arith.constant dense<0.000000e+00> : vector<8x64xf32>
    %80 = tpu.matmul %79, %38, %cst_26 {dimension_numbers = #tpu.dot_dimension_numbers<[1], [0], [0], [1], [0, 0, 1, 1], [], []>} : vector<8x8xbf16>, vector<8x64xbf16>, vector<8x64xf32> -> vector<8x64xf32>
    %81 = vector.extract_strided_slice %9 {offsets = [0, 0], sizes = [128, 64], strides = [1, 1]} : vector<128x512xbf16> to vector<128x64xbf16>
    %cst_27 = arith.constant dense<0.000000e+00> : vector<8x64xf32>
    %82 = tpu.matmul %78, %81, %cst_27 {dimension_numbers = #tpu.dot_dimension_numbers<[1], [0], [0], [1], [0, 0, 1, 1], [], []>} : vector<8x128xbf16>, vector<128x64xbf16>, vector<8x64xf32> -> vector<8x64xf32>
    %83 = arith.addf %80, %82 : vector<8x64xf32>
    %84 = arith.addf %32, %83 : vector<8x64xf32>
    %85 = vector.extract_strided_slice %3 {offsets = [0, 64], sizes = [8, 64], strides = [1, 1]} : vector<8x512xf32> to vector<8x64xf32>
    %86 = arith.truncf %85 : vector<8x64xf32> to vector<8x64xbf16>
    %87 = vector.extract_strided_slice %5 {offsets = [0, 64], sizes = [8, 64], strides = [1, 1]} : vector<8x512xf32> to vector<8x64xf32>
    %88 = arith.truncf %87 : vector<8x64xf32> to vector<8x64xbf16>
    %89 = vector.extract_strided_slice %7 {offsets = [0, 64], sizes = [8, 64], strides = [1, 1]} : vector<8x512xf32> to vector<8x64xf32>
    %90 = arith.truncf %89 : vector<8x64xf32> to vector<8x64xbf16>
    %cst_28 = arith.constant dense<0.000000e+00> : vector<8x8xf32>
    %91 = tpu.matmul %86, %88, %cst_28 {dimension_numbers = #tpu.dot_dimension_numbers<[1], [1], [0], [0], [0, 0, 1, 0], [], []>} : vector<8x64xbf16>, vector<8x64xbf16>, vector<8x8xf32> -> vector<8x8xf32>
    %cst_29 = arith.constant dense<0.000000e+00> : vector<8x128xf32>
    %92 = tpu.matmul %86, %8, %cst_29 {dimension_numbers = #tpu.dot_dimension_numbers<[1], [0], [0], [1], [0, 0, 1, 1], [], []>} : vector<8x64xbf16>, vector<64x128xbf16>, vector<8x128xf32> -> vector<8x128xf32>
    %93 = vector.extract_strided_slice %92 {offsets = [0, 1], sizes = [8, 127], strides = [1, 1]} : vector<8x128xf32> to vector<8x127xf32>
    %94 = vector.extract_strided_slice %92 {offsets = [0, 0], sizes = [8, 1], strides = [1, 1]} : vector<8x128xf32> to vector<8x1xf32>
    %95 = tpu.concatenate %93, %94 in 1 : vector<8x127xf32>, vector<8x1xf32> -> vector<8x128xf32>
    %96 = arith.select %18, %95, %92 : vector<8x128xi1>, vector<8x128xf32>
    %97 = vector.extract_strided_slice %96 {offsets = [0, 2], sizes = [8, 126], strides = [1, 1]} : vector<8x128xf32> to vector<8x126xf32>
    %98 = vector.extract_strided_slice %96 {offsets = [0, 0], sizes = [8, 2], strides = [1, 1]} : vector<8x128xf32> to vector<8x2xf32>
    %99 = tpu.concatenate %97, %98 in 1 : vector<8x126xf32>, vector<8x2xf32> -> vector<8x128xf32>
    %100 = arith.select %24, %99, %96 : vector<8x128xi1>, vector<8x128xf32>
    %101 = vector.extract_strided_slice %100 {offsets = [0, 4], sizes = [8, 124], strides = [1, 1]} : vector<8x128xf32> to vector<8x124xf32>
    %102 = vector.extract_strided_slice %100 {offsets = [0, 0], sizes = [8, 4], strides = [1, 1]} : vector<8x128xf32> to vector<8x4xf32>
    %103 = tpu.concatenate %101, %102 in 1 : vector<8x124xf32>, vector<8x4xf32> -> vector<8x128xf32>
    %104 = arith.select %30, %103, %100 : vector<8x128xi1>, vector<8x128xf32>
    %105 = vector.extract_strided_slice %104 {offsets = [0, 0], sizes = [8, 8], strides = [1, 1]} : vector<8x128xf32> to vector<8x8xf32>
    %106 = arith.addf %91, %105 : vector<8x8xf32>
    %cst_30 = arith.constant dense<0xFF800000> : vector<8xf32>
    %107 = vector.multi_reduction <maximumf>, %106, %cst_30 [1] : vector<8x8xf32> to vector<8xf32>
    %108 = vector.shape_cast %107 : vector<8xf32> to vector<8x1xf32>
    %109 = vector.broadcast %108 : vector<8x1xf32> to vector<8x8xf32>
    %110 = arith.subf %106, %109 : vector<8x8xf32>
    %111 = math.exp %110 : vector<8x8xf32>
    %cst_31 = arith.constant dense<0.000000e+00> : vector<8xf32>
    %112 = vector.multi_reduction <add>, %111, %cst_31 [1] : vector<8x8xf32> to vector<8xf32>
    %113 = vector.shape_cast %112 : vector<8xf32> to vector<8x1xf32>
    %114 = tpu.reciprocal %113 {approx = true} : vector<8x1xf32> -> vector<8x1xf32>
    %115 = vector.broadcast %114 : vector<8x1xf32> to vector<8x8xf32>
    %116 = arith.mulf %111, %115 : vector<8x8xf32>
    %117 = tpu.concatenate %116, %31 in 1 : vector<8x8xf32>, vector<8x120xf32> -> vector<8x128xf32>
    %118 = vector.extract_strided_slice %117 {offsets = [0, 127], sizes = [8, 1], strides = [1, 1]} : vector<8x128xf32> to vector<8x1xf32>
    %119 = vector.extract_strided_slice %117 {offsets = [0, 0], sizes = [8, 127], strides = [1, 1]} : vector<8x128xf32> to vector<8x127xf32>
    %120 = tpu.concatenate %118, %119 in 1 : vector<8x1xf32>, vector<8x127xf32> -> vector<8x128xf32>
    %121 = arith.select %18, %120, %117 : vector<8x128xi1>, vector<8x128xf32>
    %122 = vector.extract_strided_slice %121 {offsets = [0, 126], sizes = [8, 2], strides = [1, 1]} : vector<8x128xf32> to vector<8x2xf32>
    %123 = vector.extract_strided_slice %121 {offsets = [0, 0], sizes = [8, 126], strides = [1, 1]} : vector<8x128xf32> to vector<8x126xf32>
    %124 = tpu.concatenate %122, %123 in 1 : vector<8x2xf32>, vector<8x126xf32> -> vector<8x128xf32>
    %125 = arith.select %24, %124, %121 : vector<8x128xi1>, vector<8x128xf32>
    %126 = vector.extract_strided_slice %125 {offsets = [0, 124], sizes = [8, 4], strides = [1, 1]} : vector<8x128xf32> to vector<8x4xf32>
    %127 = vector.extract_strided_slice %125 {offsets = [0, 0], sizes = [8, 124], strides = [1, 1]} : vector<8x128xf32> to vector<8x124xf32>
    %128 = tpu.concatenate %126, %127 in 1 : vector<8x4xf32>, vector<8x124xf32> -> vector<8x128xf32>
    %129 = arith.select %30, %128, %125 : vector<8x128xi1>, vector<8x128xf32>
    %130 = arith.truncf %129 : vector<8x128xf32> to vector<8x128xbf16>
    %131 = arith.truncf %116 : vector<8x8xf32> to vector<8x8xbf16>
    %cst_32 = arith.constant dense<0.000000e+00> : vector<8x64xf32>
    %132 = tpu.matmul %131, %90, %cst_32 {dimension_numbers = #tpu.dot_dimension_numbers<[1], [0], [0], [1], [0, 0, 1, 1], [], []>} : vector<8x8xbf16>, vector<8x64xbf16>, vector<8x64xf32> -> vector<8x64xf32>
    %133 = vector.extract_strided_slice %9 {offsets = [0, 64], sizes = [128, 64], strides = [1, 1]} : vector<128x512xbf16> to vector<128x64xbf16>
    %cst_33 = arith.constant dense<0.000000e+00> : vector<8x64xf32>
    %134 = tpu.matmul %130, %133, %cst_33 {dimension_numbers = #tpu.dot_dimension_numbers<[1], [0], [0], [1], [0, 0, 1, 1], [], []>} : vector<8x128xbf16>, vector<128x64xbf16>, vector<8x64xf32> -> vector<8x64xf32>
    %135 = arith.addf %132, %134 : vector<8x64xf32>
    %136 = arith.addf %84, %135 : vector<8x64xf32>
    %137 = vector.extract_strided_slice %3 {offsets = [0, 128], sizes = [8, 64], strides = [1, 1]} : vector<8x512xf32> to vector<8x64xf32>
    %138 = arith.truncf %137 : vector<8x64xf32> to vector<8x64xbf16>
    %139 = vector.extract_strided_slice %5 {offsets = [0, 128], sizes = [8, 64], strides = [1, 1]} : vector<8x512xf32> to vector<8x64xf32>
    %140 = arith.truncf %139 : vector<8x64xf32> to vector<8x64xbf16>
    %141 = vector.extract_strided_slice %7 {offsets = [0, 128], sizes = [8, 64], strides = [1, 1]} : vector<8x512xf32> to vector<8x64xf32>
    %142 = arith.truncf %141 : vector<8x64xf32> to vector<8x64xbf16>
    %cst_34 = arith.constant dense<0.000000e+00> : vector<8x8xf32>
    %143 = tpu.matmul %138, %140, %cst_34 {dimension_numbers = #tpu.dot_dimension_numbers<[1], [1], [0], [0], [0, 0, 1, 0], [], []>} : vector<8x64xbf16>, vector<8x64xbf16>, vector<8x8xf32> -> vector<8x8xf32>
    %cst_35 = arith.constant dense<0.000000e+00> : vector<8x128xf32>
    %144 = tpu.matmul %138, %8, %cst_35 {dimension_numbers = #tpu.dot_dimension_numbers<[1], [0], [0], [1], [0, 0, 1, 1], [], []>} : vector<8x64xbf16>, vector<64x128xbf16>, vector<8x128xf32> -> vector<8x128xf32>
    %145 = vector.extract_strided_slice %144 {offsets = [0, 1], sizes = [8, 127], strides = [1, 1]} : vector<8x128xf32> to vector<8x127xf32>
    %146 = vector.extract_strided_slice %144 {offsets = [0, 0], sizes = [8, 1], strides = [1, 1]} : vector<8x128xf32> to vector<8x1xf32>
    %147 = tpu.concatenate %145, %146 in 1 : vector<8x127xf32>, vector<8x1xf32> -> vector<8x128xf32>
    %148 = arith.select %18, %147, %144 : vector<8x128xi1>, vector<8x128xf32>
    %149 = vector.extract_strided_slice %148 {offsets = [0, 2], sizes = [8, 126], strides = [1, 1]} : vector<8x128xf32> to vector<8x126xf32>
    %150 = vector.extract_strided_slice %148 {offsets = [0, 0], sizes = [8, 2], strides = [1, 1]} : vector<8x128xf32> to vector<8x2xf32>
    %151 = tpu.concatenate %149, %150 in 1 : vector<8x126xf32>, vector<8x2xf32> -> vector<8x128xf32>
    %152 = arith.select %24, %151, %148 : vector<8x128xi1>, vector<8x128xf32>
    %153 = vector.extract_strided_slice %152 {offsets = [0, 4], sizes = [8, 124], strides = [1, 1]} : vector<8x128xf32> to vector<8x124xf32>
    %154 = vector.extract_strided_slice %152 {offsets = [0, 0], sizes = [8, 4], strides = [1, 1]} : vector<8x128xf32> to vector<8x4xf32>
    %155 = tpu.concatenate %153, %154 in 1 : vector<8x124xf32>, vector<8x4xf32> -> vector<8x128xf32>
    %156 = arith.select %30, %155, %152 : vector<8x128xi1>, vector<8x128xf32>
    %157 = vector.extract_strided_slice %156 {offsets = [0, 0], sizes = [8, 8], strides = [1, 1]} : vector<8x128xf32> to vector<8x8xf32>
    %158 = arith.addf %143, %157 : vector<8x8xf32>
    %cst_36 = arith.constant dense<0xFF800000> : vector<8xf32>
    %159 = vector.multi_reduction <maximumf>, %158, %cst_36 [1] : vector<8x8xf32> to vector<8xf32>
    %160 = vector.shape_cast %159 : vector<8xf32> to vector<8x1xf32>
    %161 = vector.broadcast %160 : vector<8x1xf32> to vector<8x8xf32>
    %162 = arith.subf %158, %161 : vector<8x8xf32>
    %163 = math.exp %162 : vector<8x8xf32>
    %cst_37 = arith.constant dense<0.000000e+00> : vector<8xf32>
    %164 = vector.multi_reduction <add>, %163, %cst_37 [1] : vector<8x8xf32> to vector<8xf32>
    %165 = vector.shape_cast %164 : vector<8xf32> to vector<8x1xf32>
    %166 = tpu.reciprocal %165 {approx = true} : vector<8x1xf32> -> vector<8x1xf32>
    %167 = vector.broadcast %166 : vector<8x1xf32> to vector<8x8xf32>
    %168 = arith.mulf %163, %167 : vector<8x8xf32>
    %169 = tpu.concatenate %168, %31 in 1 : vector<8x8xf32>, vector<8x120xf32> -> vector<8x128xf32>
    %170 = vector.extract_strided_slice %169 {offsets = [0, 127], sizes = [8, 1], strides = [1, 1]} : vector<8x128xf32> to vector<8x1xf32>
    %171 = vector.extract_strided_slice %169 {offsets = [0, 0], sizes = [8, 127], strides = [1, 1]} : vector<8x128xf32> to vector<8x127xf32>
    %172 = tpu.concatenate %170, %171 in 1 : vector<8x1xf32>, vector<8x127xf32> -> vector<8x128xf32>
    %173 = arith.select %18, %172, %169 : vector<8x128xi1>, vector<8x128xf32>
    %174 = vector.extract_strided_slice %173 {offsets = [0, 126], sizes = [8, 2], strides = [1, 1]} : vector<8x128xf32> to vector<8x2xf32>
    %175 = vector.extract_strided_slice %173 {offsets = [0, 0], sizes = [8, 126], strides = [1, 1]} : vector<8x128xf32> to vector<8x126xf32>
    %176 = tpu.concatenate %174, %175 in 1 : vector<8x2xf32>, vector<8x126xf32> -> vector<8x128xf32>
    %177 = arith.select %24, %176, %173 : vector<8x128xi1>, vector<8x128xf32>
    %178 = vector.extract_strided_slice %177 {offsets = [0, 124], sizes = [8, 4], strides = [1, 1]} : vector<8x128xf32> to vector<8x4xf32>
    %179 = vector.extract_strided_slice %177 {offsets = [0, 0], sizes = [8, 124], strides = [1, 1]} : vector<8x128xf32> to vector<8x124xf32>
    %180 = tpu.concatenate %178, %179 in 1 : vector<8x4xf32>, vector<8x124xf32> -> vector<8x128xf32>
    %181 = arith.select %30, %180, %177 : vector<8x128xi1>, vector<8x128xf32>
    %182 = arith.truncf %181 : vector<8x128xf32> to vector<8x128xbf16>
    %183 = arith.truncf %168 : vector<8x8xf32> to vector<8x8xbf16>
    %cst_38 = arith.constant dense<0.000000e+00> : vector<8x64xf32>
    %184 = tpu.matmul %183, %142, %cst_38 {dimension_numbers = #tpu.dot_dimension_numbers<[1], [0], [0], [1], [0, 0, 1, 1], [], []>} : vector<8x8xbf16>, vector<8x64xbf16>, vector<8x64xf32> -> vector<8x64xf32>
    %185 = vector.extract_strided_slice %9 {offsets = [0, 128], sizes = [128, 64], strides = [1, 1]} : vector<128x512xbf16> to vector<128x64xbf16>
    %cst_39 = arith.constant dense<0.000000e+00> : vector<8x64xf32>
    %186 = tpu.matmul %182, %185, %cst_39 {dimension_numbers = #tpu.dot_dimension_numbers<[1], [0], [0], [1], [0, 0, 1, 1], [], []>} : vector<8x128xbf16>, vector<128x64xbf16>, vector<8x64xf32> -> vector<8x64xf32>
    %187 = arith.addf %184, %186 : vector<8x64xf32>
    %188 = arith.addf %136, %187 : vector<8x64xf32>
    %189 = vector.extract_strided_slice %3 {offsets = [0, 192], sizes = [8, 64], strides = [1, 1]} : vector<8x512xf32> to vector<8x64xf32>
    %190 = arith.truncf %189 : vector<8x64xf32> to vector<8x64xbf16>
    %191 = vector.extract_strided_slice %5 {offsets = [0, 192], sizes = [8, 64], strides = [1, 1]} : vector<8x512xf32> to vector<8x64xf32>
    %192 = arith.truncf %191 : vector<8x64xf32> to vector<8x64xbf16>
    %193 = vector.extract_strided_slice %7 {offsets = [0, 192], sizes = [8, 64], strides = [1, 1]} : vector<8x512xf32> to vector<8x64xf32>
    %194 = arith.truncf %193 : vector<8x64xf32> to vector<8x64xbf16>
    %cst_40 = arith.constant dense<0.000000e+00> : vector<8x8xf32>
    %195 = tpu.matmul %190, %192, %cst_40 {dimension_numbers = #tpu.dot_dimension_numbers<[1], [1], [0], [0], [0, 0, 1, 0], [], []>} : vector<8x64xbf16>, vector<8x64xbf16>, vector<8x8xf32> -> vector<8x8xf32>
    %cst_41 = arith.constant dense<0.000000e+00> : vector<8x128xf32>
    %196 = tpu.matmul %190, %8, %cst_41 {dimension_numbers = #tpu.dot_dimension_numbers<[1], [0], [0], [1], [0, 0, 1, 1], [], []>} : vector<8x64xbf16>, vector<64x128xbf16>, vector<8x128xf32> -> vector<8x128xf32>
    %197 = vector.extract_strided_slice %196 {offsets = [0, 1], sizes = [8, 127], strides = [1, 1]} : vector<8x128xf32> to vector<8x127xf32>
    %198 = vector.extract_strided_slice %196 {offsets = [0, 0], sizes = [8, 1], strides = [1, 1]} : vector<8x128xf32> to vector<8x1xf32>
    %199 = tpu.concatenate %197, %198 in 1 : vector<8x127xf32>, vector<8x1xf32> -> vector<8x128xf32>
    %200 = arith.select %18, %199, %196 : vector<8x128xi1>, vector<8x128xf32>
    %201 = vector.extract_strided_slice %200 {offsets = [0, 2], sizes = [8, 126], strides = [1, 1]} : vector<8x128xf32> to vector<8x126xf32>
    %202 = vector.extract_strided_slice %200 {offsets = [0, 0], sizes = [8, 2], strides = [1, 1]} : vector<8x128xf32> to vector<8x2xf32>
    %203 = tpu.concatenate %201, %202 in 1 : vector<8x126xf32>, vector<8x2xf32> -> vector<8x128xf32>
    %204 = arith.select %24, %203, %200 : vector<8x128xi1>, vector<8x128xf32>
    %205 = vector.extract_strided_slice %204 {offsets = [0, 4], sizes = [8, 124], strides = [1, 1]} : vector<8x128xf32> to vector<8x124xf32>
    %206 = vector.extract_strided_slice %204 {offsets = [0, 0], sizes = [8, 4], strides = [1, 1]} : vector<8x128xf32> to vector<8x4xf32>
    %207 = tpu.concatenate %205, %206 in 1 : vector<8x124xf32>, vector<8x4xf32> -> vector<8x128xf32>
    %208 = arith.select %30, %207, %204 : vector<8x128xi1>, vector<8x128xf32>
    %209 = vector.extract_strided_slice %208 {offsets = [0, 0], sizes = [8, 8], strides = [1, 1]} : vector<8x128xf32> to vector<8x8xf32>
    %210 = arith.addf %195, %209 : vector<8x8xf32>
    %cst_42 = arith.constant dense<0xFF800000> : vector<8xf32>
    %211 = vector.multi_reduction <maximumf>, %210, %cst_42 [1] : vector<8x8xf32> to vector<8xf32>
    %212 = vector.shape_cast %211 : vector<8xf32> to vector<8x1xf32>
    %213 = vector.broadcast %212 : vector<8x1xf32> to vector<8x8xf32>
    %214 = arith.subf %210, %213 : vector<8x8xf32>
    %215 = math.exp %214 : vector<8x8xf32>
    %cst_43 = arith.constant dense<0.000000e+00> : vector<8xf32>
    %216 = vector.multi_reduction <add>, %215, %cst_43 [1] : vector<8x8xf32> to vector<8xf32>
    %217 = vector.shape_cast %216 : vector<8xf32> to vector<8x1xf32>
    %218 = tpu.reciprocal %217 {approx = true} : vector<8x1xf32> -> vector<8x1xf32>
    %219 = vector.broadcast %218 : vector<8x1xf32> to vector<8x8xf32>
    %220 = arith.mulf %215, %219 : vector<8x8xf32>
    %221 = tpu.concatenate %220, %31 in 1 : vector<8x8xf32>, vector<8x120xf32> -> vector<8x128xf32>
    %222 = vector.extract_strided_slice %221 {offsets = [0, 127], sizes = [8, 1], strides = [1, 1]} : vector<8x128xf32> to vector<8x1xf32>
    %223 = vector.extract_strided_slice %221 {offsets = [0, 0], sizes = [8, 127], strides = [1, 1]} : vector<8x128xf32> to vector<8x127xf32>
    %224 = tpu.concatenate %222, %223 in 1 : vector<8x1xf32>, vector<8x127xf32> -> vector<8x128xf32>
    %225 = arith.select %18, %224, %221 : vector<8x128xi1>, vector<8x128xf32>
    %226 = vector.extract_strided_slice %225 {offsets = [0, 126], sizes = [8, 2], strides = [1, 1]} : vector<8x128xf32> to vector<8x2xf32>
    %227 = vector.extract_strided_slice %225 {offsets = [0, 0], sizes = [8, 126], strides = [1, 1]} : vector<8x128xf32> to vector<8x126xf32>
    %228 = tpu.concatenate %226, %227 in 1 : vector<8x2xf32>, vector<8x126xf32> -> vector<8x128xf32>
    %229 = arith.select %24, %228, %225 : vector<8x128xi1>, vector<8x128xf32>
    %230 = vector.extract_strided_slice %229 {offsets = [0, 124], sizes = [8, 4], strides = [1, 1]} : vector<8x128xf32> to vector<8x4xf32>
    %231 = vector.extract_strided_slice %229 {offsets = [0, 0], sizes = [8, 124], strides = [1, 1]} : vector<8x128xf32> to vector<8x124xf32>
    %232 = tpu.concatenate %230, %231 in 1 : vector<8x4xf32>, vector<8x124xf32> -> vector<8x128xf32>
    %233 = arith.select %30, %232, %229 : vector<8x128xi1>, vector<8x128xf32>
    %234 = arith.truncf %233 : vector<8x128xf32> to vector<8x128xbf16>
    %235 = arith.truncf %220 : vector<8x8xf32> to vector<8x8xbf16>
    %cst_44 = arith.constant dense<0.000000e+00> : vector<8x64xf32>
    %236 = tpu.matmul %235, %194, %cst_44 {dimension_numbers = #tpu.dot_dimension_numbers<[1], [0], [0], [1], [0, 0, 1, 1], [], []>} : vector<8x8xbf16>, vector<8x64xbf16>, vector<8x64xf32> -> vector<8x64xf32>
    %237 = vector.extract_strided_slice %9 {offsets = [0, 192], sizes = [128, 64], strides = [1, 1]} : vector<128x512xbf16> to vector<128x64xbf16>
    %cst_45 = arith.constant dense<0.000000e+00> : vector<8x64xf32>
    %238 = tpu.matmul %234, %237, %cst_45 {dimension_numbers = #tpu.dot_dimension_numbers<[1], [0], [0], [1], [0, 0, 1, 1], [], []>} : vector<8x128xbf16>, vector<128x64xbf16>, vector<8x64xf32> -> vector<8x64xf32>
    %239 = arith.addf %236, %238 : vector<8x64xf32>
    %240 = arith.addf %188, %239 : vector<8x64xf32>
    %241 = vector.extract_strided_slice %3 {offsets = [0, 256], sizes = [8, 64], strides = [1, 1]} : vector<8x512xf32> to vector<8x64xf32>
    %242 = arith.truncf %241 : vector<8x64xf32> to vector<8x64xbf16>
    %243 = vector.extract_strided_slice %5 {offsets = [0, 256], sizes = [8, 64], strides = [1, 1]} : vector<8x512xf32> to vector<8x64xf32>
    %244 = arith.truncf %243 : vector<8x64xf32> to vector<8x64xbf16>
    %245 = vector.extract_strided_slice %7 {offsets = [0, 256], sizes = [8, 64], strides = [1, 1]} : vector<8x512xf32> to vector<8x64xf32>
    %246 = arith.truncf %245 : vector<8x64xf32> to vector<8x64xbf16>
    %cst_46 = arith.constant dense<0.000000e+00> : vector<8x8xf32>
    %247 = tpu.matmul %242, %244, %cst_46 {dimension_numbers = #tpu.dot_dimension_numbers<[1], [1], [0], [0], [0, 0, 1, 0], [], []>} : vector<8x64xbf16>, vector<8x64xbf16>, vector<8x8xf32> -> vector<8x8xf32>
    %cst_47 = arith.constant dense<0.000000e+00> : vector<8x128xf32>
    %248 = tpu.matmul %242, %8, %cst_47 {dimension_numbers = #tpu.dot_dimension_numbers<[1], [0], [0], [1], [0, 0, 1, 1], [], []>} : vector<8x64xbf16>, vector<64x128xbf16>, vector<8x128xf32> -> vector<8x128xf32>
    %249 = vector.extract_strided_slice %248 {offsets = [0, 1], sizes = [8, 127], strides = [1, 1]} : vector<8x128xf32> to vector<8x127xf32>
    %250 = vector.extract_strided_slice %248 {offsets = [0, 0], sizes = [8, 1], strides = [1, 1]} : vector<8x128xf32> to vector<8x1xf32>
    %251 = tpu.concatenate %249, %250 in 1 : vector<8x127xf32>, vector<8x1xf32> -> vector<8x128xf32>
    %252 = arith.select %18, %251, %248 : vector<8x128xi1>, vector<8x128xf32>
    %253 = vector.extract_strided_slice %252 {offsets = [0, 2], sizes = [8, 126], strides = [1, 1]} : vector<8x128xf32> to vector<8x126xf32>
    %254 = vector.extract_strided_slice %252 {offsets = [0, 0], sizes = [8, 2], strides = [1, 1]} : vector<8x128xf32> to vector<8x2xf32>
    %255 = tpu.concatenate %253, %254 in 1 : vector<8x126xf32>, vector<8x2xf32> -> vector<8x128xf32>
    %256 = arith.select %24, %255, %252 : vector<8x128xi1>, vector<8x128xf32>
    %257 = vector.extract_strided_slice %256 {offsets = [0, 4], sizes = [8, 124], strides = [1, 1]} : vector<8x128xf32> to vector<8x124xf32>
    %258 = vector.extract_strided_slice %256 {offsets = [0, 0], sizes = [8, 4], strides = [1, 1]} : vector<8x128xf32> to vector<8x4xf32>
    %259 = tpu.concatenate %257, %258 in 1 : vector<8x124xf32>, vector<8x4xf32> -> vector<8x128xf32>
    %260 = arith.select %30, %259, %256 : vector<8x128xi1>, vector<8x128xf32>
    %261 = vector.extract_strided_slice %260 {offsets = [0, 0], sizes = [8, 8], strides = [1, 1]} : vector<8x128xf32> to vector<8x8xf32>
    %262 = arith.addf %247, %261 : vector<8x8xf32>
    %cst_48 = arith.constant dense<0xFF800000> : vector<8xf32>
    %263 = vector.multi_reduction <maximumf>, %262, %cst_48 [1] : vector<8x8xf32> to vector<8xf32>
    %264 = vector.shape_cast %263 : vector<8xf32> to vector<8x1xf32>
    %265 = vector.broadcast %264 : vector<8x1xf32> to vector<8x8xf32>
    %266 = arith.subf %262, %265 : vector<8x8xf32>
    %267 = math.exp %266 : vector<8x8xf32>
    %cst_49 = arith.constant dense<0.000000e+00> : vector<8xf32>
    %268 = vector.multi_reduction <add>, %267, %cst_49 [1] : vector<8x8xf32> to vector<8xf32>
    %269 = vector.shape_cast %268 : vector<8xf32> to vector<8x1xf32>
    %270 = tpu.reciprocal %269 {approx = true} : vector<8x1xf32> -> vector<8x1xf32>
    %271 = vector.broadcast %270 : vector<8x1xf32> to vector<8x8xf32>
    %272 = arith.mulf %267, %271 : vector<8x8xf32>
    %273 = tpu.concatenate %272, %31 in 1 : vector<8x8xf32>, vector<8x120xf32> -> vector<8x128xf32>
    %274 = vector.extract_strided_slice %273 {offsets = [0, 127], sizes = [8, 1], strides = [1, 1]} : vector<8x128xf32> to vector<8x1xf32>
    %275 = vector.extract_strided_slice %273 {offsets = [0, 0], sizes = [8, 127], strides = [1, 1]} : vector<8x128xf32> to vector<8x127xf32>
    %276 = tpu.concatenate %274, %275 in 1 : vector<8x1xf32>, vector<8x127xf32> -> vector<8x128xf32>
    %277 = arith.select %18, %276, %273 : vector<8x128xi1>, vector<8x128xf32>
    %278 = vector.extract_strided_slice %277 {offsets = [0, 126], sizes = [8, 2], strides = [1, 1]} : vector<8x128xf32> to vector<8x2xf32>
    %279 = vector.extract_strided_slice %277 {offsets = [0, 0], sizes = [8, 126], strides = [1, 1]} : vector<8x128xf32> to vector<8x126xf32>
    %280 = tpu.concatenate %278, %279 in 1 : vector<8x2xf32>, vector<8x126xf32> -> vector<8x128xf32>
    %281 = arith.select %24, %280, %277 : vector<8x128xi1>, vector<8x128xf32>
    %282 = vector.extract_strided_slice %281 {offsets = [0, 124], sizes = [8, 4], strides = [1, 1]} : vector<8x128xf32> to vector<8x4xf32>
    %283 = vector.extract_strided_slice %281 {offsets = [0, 0], sizes = [8, 124], strides = [1, 1]} : vector<8x128xf32> to vector<8x124xf32>
    %284 = tpu.concatenate %282, %283 in 1 : vector<8x4xf32>, vector<8x124xf32> -> vector<8x128xf32>
    %285 = arith.select %30, %284, %281 : vector<8x128xi1>, vector<8x128xf32>
    %286 = arith.truncf %285 : vector<8x128xf32> to vector<8x128xbf16>
    %287 = arith.truncf %272 : vector<8x8xf32> to vector<8x8xbf16>
    %cst_50 = arith.constant dense<0.000000e+00> : vector<8x64xf32>
    %288 = tpu.matmul %287, %246, %cst_50 {dimension_numbers = #tpu.dot_dimension_numbers<[1], [0], [0], [1], [0, 0, 1, 1], [], []>} : vector<8x8xbf16>, vector<8x64xbf16>, vector<8x64xf32> -> vector<8x64xf32>
    %289 = vector.extract_strided_slice %9 {offsets = [0, 256], sizes = [128, 64], strides = [1, 1]} : vector<128x512xbf16> to vector<128x64xbf16>
    %cst_51 = arith.constant dense<0.000000e+00> : vector<8x64xf32>
    %290 = tpu.matmul %286, %289, %cst_51 {dimension_numbers = #tpu.dot_dimension_numbers<[1], [0], [0], [1], [0, 0, 1, 1], [], []>} : vector<8x128xbf16>, vector<128x64xbf16>, vector<8x64xf32> -> vector<8x64xf32>
    %291 = arith.addf %288, %290 : vector<8x64xf32>
    %292 = arith.addf %240, %291 : vector<8x64xf32>
    %293 = vector.extract_strided_slice %3 {offsets = [0, 320], sizes = [8, 64], strides = [1, 1]} : vector<8x512xf32> to vector<8x64xf32>
    %294 = arith.truncf %293 : vector<8x64xf32> to vector<8x64xbf16>
    %295 = vector.extract_strided_slice %5 {offsets = [0, 320], sizes = [8, 64], strides = [1, 1]} : vector<8x512xf32> to vector<8x64xf32>
    %296 = arith.truncf %295 : vector<8x64xf32> to vector<8x64xbf16>
    %297 = vector.extract_strided_slice %7 {offsets = [0, 320], sizes = [8, 64], strides = [1, 1]} : vector<8x512xf32> to vector<8x64xf32>
    %298 = arith.truncf %297 : vector<8x64xf32> to vector<8x64xbf16>
    %cst_52 = arith.constant dense<0.000000e+00> : vector<8x8xf32>
    %299 = tpu.matmul %294, %296, %cst_52 {dimension_numbers = #tpu.dot_dimension_numbers<[1], [1], [0], [0], [0, 0, 1, 0], [], []>} : vector<8x64xbf16>, vector<8x64xbf16>, vector<8x8xf32> -> vector<8x8xf32>
    %cst_53 = arith.constant dense<0.000000e+00> : vector<8x128xf32>
    %300 = tpu.matmul %294, %8, %cst_53 {dimension_numbers = #tpu.dot_dimension_numbers<[1], [0], [0], [1], [0, 0, 1, 1], [], []>} : vector<8x64xbf16>, vector<64x128xbf16>, vector<8x128xf32> -> vector<8x128xf32>
    %301 = vector.extract_strided_slice %300 {offsets = [0, 1], sizes = [8, 127], strides = [1, 1]} : vector<8x128xf32> to vector<8x127xf32>
    %302 = vector.extract_strided_slice %300 {offsets = [0, 0], sizes = [8, 1], strides = [1, 1]} : vector<8x128xf32> to vector<8x1xf32>
    %303 = tpu.concatenate %301, %302 in 1 : vector<8x127xf32>, vector<8x1xf32> -> vector<8x128xf32>
    %304 = arith.select %18, %303, %300 : vector<8x128xi1>, vector<8x128xf32>
    %305 = vector.extract_strided_slice %304 {offsets = [0, 2], sizes = [8, 126], strides = [1, 1]} : vector<8x128xf32> to vector<8x126xf32>
    %306 = vector.extract_strided_slice %304 {offsets = [0, 0], sizes = [8, 2], strides = [1, 1]} : vector<8x128xf32> to vector<8x2xf32>
    %307 = tpu.concatenate %305, %306 in 1 : vector<8x126xf32>, vector<8x2xf32> -> vector<8x128xf32>
    %308 = arith.select %24, %307, %304 : vector<8x128xi1>, vector<8x128xf32>
    %309 = vector.extract_strided_slice %308 {offsets = [0, 4], sizes = [8, 124], strides = [1, 1]} : vector<8x128xf32> to vector<8x124xf32>
    %310 = vector.extract_strided_slice %308 {offsets = [0, 0], sizes = [8, 4], strides = [1, 1]} : vector<8x128xf32> to vector<8x4xf32>
    %311 = tpu.concatenate %309, %310 in 1 : vector<8x124xf32>, vector<8x4xf32> -> vector<8x128xf32>
    %312 = arith.select %30, %311, %308 : vector<8x128xi1>, vector<8x128xf32>
    %313 = vector.extract_strided_slice %312 {offsets = [0, 0], sizes = [8, 8], strides = [1, 1]} : vector<8x128xf32> to vector<8x8xf32>
    %314 = arith.addf %299, %313 : vector<8x8xf32>
    %cst_54 = arith.constant dense<0xFF800000> : vector<8xf32>
    %315 = vector.multi_reduction <maximumf>, %314, %cst_54 [1] : vector<8x8xf32> to vector<8xf32>
    %316 = vector.shape_cast %315 : vector<8xf32> to vector<8x1xf32>
    %317 = vector.broadcast %316 : vector<8x1xf32> to vector<8x8xf32>
    %318 = arith.subf %314, %317 : vector<8x8xf32>
    %319 = math.exp %318 : vector<8x8xf32>
    %cst_55 = arith.constant dense<0.000000e+00> : vector<8xf32>
    %320 = vector.multi_reduction <add>, %319, %cst_55 [1] : vector<8x8xf32> to vector<8xf32>
    %321 = vector.shape_cast %320 : vector<8xf32> to vector<8x1xf32>
    %322 = tpu.reciprocal %321 {approx = true} : vector<8x1xf32> -> vector<8x1xf32>
    %323 = vector.broadcast %322 : vector<8x1xf32> to vector<8x8xf32>
    %324 = arith.mulf %319, %323 : vector<8x8xf32>
    %325 = tpu.concatenate %324, %31 in 1 : vector<8x8xf32>, vector<8x120xf32> -> vector<8x128xf32>
    %326 = vector.extract_strided_slice %325 {offsets = [0, 127], sizes = [8, 1], strides = [1, 1]} : vector<8x128xf32> to vector<8x1xf32>
    %327 = vector.extract_strided_slice %325 {offsets = [0, 0], sizes = [8, 127], strides = [1, 1]} : vector<8x128xf32> to vector<8x127xf32>
    %328 = tpu.concatenate %326, %327 in 1 : vector<8x1xf32>, vector<8x127xf32> -> vector<8x128xf32>
    %329 = arith.select %18, %328, %325 : vector<8x128xi1>, vector<8x128xf32>
    %330 = vector.extract_strided_slice %329 {offsets = [0, 126], sizes = [8, 2], strides = [1, 1]} : vector<8x128xf32> to vector<8x2xf32>
    %331 = vector.extract_strided_slice %329 {offsets = [0, 0], sizes = [8, 126], strides = [1, 1]} : vector<8x128xf32> to vector<8x126xf32>
    %332 = tpu.concatenate %330, %331 in 1 : vector<8x2xf32>, vector<8x126xf32> -> vector<8x128xf32>
    %333 = arith.select %24, %332, %329 : vector<8x128xi1>, vector<8x128xf32>
    %334 = vector.extract_strided_slice %333 {offsets = [0, 124], sizes = [8, 4], strides = [1, 1]} : vector<8x128xf32> to vector<8x4xf32>
    %335 = vector.extract_strided_slice %333 {offsets = [0, 0], sizes = [8, 124], strides = [1, 1]} : vector<8x128xf32> to vector<8x124xf32>
    %336 = tpu.concatenate %334, %335 in 1 : vector<8x4xf32>, vector<8x124xf32> -> vector<8x128xf32>
    %337 = arith.select %30, %336, %333 : vector<8x128xi1>, vector<8x128xf32>
    %338 = arith.truncf %337 : vector<8x128xf32> to vector<8x128xbf16>
    %339 = arith.truncf %324 : vector<8x8xf32> to vector<8x8xbf16>
    %cst_56 = arith.constant dense<0.000000e+00> : vector<8x64xf32>
    %340 = tpu.matmul %339, %298, %cst_56 {dimension_numbers = #tpu.dot_dimension_numbers<[1], [0], [0], [1], [0, 0, 1, 1], [], []>} : vector<8x8xbf16>, vector<8x64xbf16>, vector<8x64xf32> -> vector<8x64xf32>
    %341 = vector.extract_strided_slice %9 {offsets = [0, 320], sizes = [128, 64], strides = [1, 1]} : vector<128x512xbf16> to vector<128x64xbf16>
    %cst_57 = arith.constant dense<0.000000e+00> : vector<8x64xf32>
    %342 = tpu.matmul %338, %341, %cst_57 {dimension_numbers = #tpu.dot_dimension_numbers<[1], [0], [0], [1], [0, 0, 1, 1], [], []>} : vector<8x128xbf16>, vector<128x64xbf16>, vector<8x64xf32> -> vector<8x64xf32>
    %343 = arith.addf %340, %342 : vector<8x64xf32>
    %344 = arith.addf %292, %343 : vector<8x64xf32>
    %345 = vector.extract_strided_slice %3 {offsets = [0, 384], sizes = [8, 64], strides = [1, 1]} : vector<8x512xf32> to vector<8x64xf32>
    %346 = arith.truncf %345 : vector<8x64xf32> to vector<8x64xbf16>
    %347 = vector.extract_strided_slice %5 {offsets = [0, 384], sizes = [8, 64], strides = [1, 1]} : vector<8x512xf32> to vector<8x64xf32>
    %348 = arith.truncf %347 : vector<8x64xf32> to vector<8x64xbf16>
    %349 = vector.extract_strided_slice %7 {offsets = [0, 384], sizes = [8, 64], strides = [1, 1]} : vector<8x512xf32> to vector<8x64xf32>
    %350 = arith.truncf %349 : vector<8x64xf32> to vector<8x64xbf16>
    %cst_58 = arith.constant dense<0.000000e+00> : vector<8x8xf32>
    %351 = tpu.matmul %346, %348, %cst_58 {dimension_numbers = #tpu.dot_dimension_numbers<[1], [1], [0], [0], [0, 0, 1, 0], [], []>} : vector<8x64xbf16>, vector<8x64xbf16>, vector<8x8xf32> -> vector<8x8xf32>
    %cst_59 = arith.constant dense<0.000000e+00> : vector<8x128xf32>
    %352 = tpu.matmul %346, %8, %cst_59 {dimension_numbers = #tpu.dot_dimension_numbers<[1], [0], [0], [1], [0, 0, 1, 1], [], []>} : vector<8x64xbf16>, vector<64x128xbf16>, vector<8x128xf32> -> vector<8x128xf32>
    %353 = vector.extract_strided_slice %352 {offsets = [0, 1], sizes = [8, 127], strides = [1, 1]} : vector<8x128xf32> to vector<8x127xf32>
    %354 = vector.extract_strided_slice %352 {offsets = [0, 0], sizes = [8, 1], strides = [1, 1]} : vector<8x128xf32> to vector<8x1xf32>
    %355 = tpu.concatenate %353, %354 in 1 : vector<8x127xf32>, vector<8x1xf32> -> vector<8x128xf32>
    %356 = arith.select %18, %355, %352 : vector<8x128xi1>, vector<8x128xf32>
    %357 = vector.extract_strided_slice %356 {offsets = [0, 2], sizes = [8, 126], strides = [1, 1]} : vector<8x128xf32> to vector<8x126xf32>
    %358 = vector.extract_strided_slice %356 {offsets = [0, 0], sizes = [8, 2], strides = [1, 1]} : vector<8x128xf32> to vector<8x2xf32>
    %359 = tpu.concatenate %357, %358 in 1 : vector<8x126xf32>, vector<8x2xf32> -> vector<8x128xf32>
    %360 = arith.select %24, %359, %356 : vector<8x128xi1>, vector<8x128xf32>
    %361 = vector.extract_strided_slice %360 {offsets = [0, 4], sizes = [8, 124], strides = [1, 1]} : vector<8x128xf32> to vector<8x124xf32>
    %362 = vector.extract_strided_slice %360 {offsets = [0, 0], sizes = [8, 4], strides = [1, 1]} : vector<8x128xf32> to vector<8x4xf32>
    %363 = tpu.concatenate %361, %362 in 1 : vector<8x124xf32>, vector<8x4xf32> -> vector<8x128xf32>
    %364 = arith.select %30, %363, %360 : vector<8x128xi1>, vector<8x128xf32>
    %365 = vector.extract_strided_slice %364 {offsets = [0, 0], sizes = [8, 8], strides = [1, 1]} : vector<8x128xf32> to vector<8x8xf32>
    %366 = arith.addf %351, %365 : vector<8x8xf32>
    %cst_60 = arith.constant dense<0xFF800000> : vector<8xf32>
    %367 = vector.multi_reduction <maximumf>, %366, %cst_60 [1] : vector<8x8xf32> to vector<8xf32>
    %368 = vector.shape_cast %367 : vector<8xf32> to vector<8x1xf32>
    %369 = vector.broadcast %368 : vector<8x1xf32> to vector<8x8xf32>
    %370 = arith.subf %366, %369 : vector<8x8xf32>
    %371 = math.exp %370 : vector<8x8xf32>
    %cst_61 = arith.constant dense<0.000000e+00> : vector<8xf32>
    %372 = vector.multi_reduction <add>, %371, %cst_61 [1] : vector<8x8xf32> to vector<8xf32>
    %373 = vector.shape_cast %372 : vector<8xf32> to vector<8x1xf32>
    %374 = tpu.reciprocal %373 {approx = true} : vector<8x1xf32> -> vector<8x1xf32>
    %375 = vector.broadcast %374 : vector<8x1xf32> to vector<8x8xf32>
    %376 = arith.mulf %371, %375 : vector<8x8xf32>
    %377 = tpu.concatenate %376, %31 in 1 : vector<8x8xf32>, vector<8x120xf32> -> vector<8x128xf32>
    %378 = vector.extract_strided_slice %377 {offsets = [0, 127], sizes = [8, 1], strides = [1, 1]} : vector<8x128xf32> to vector<8x1xf32>
    %379 = vector.extract_strided_slice %377 {offsets = [0, 0], sizes = [8, 127], strides = [1, 1]} : vector<8x128xf32> to vector<8x127xf32>
    %380 = tpu.concatenate %378, %379 in 1 : vector<8x1xf32>, vector<8x127xf32> -> vector<8x128xf32>
    %381 = arith.select %18, %380, %377 : vector<8x128xi1>, vector<8x128xf32>
    %382 = vector.extract_strided_slice %381 {offsets = [0, 126], sizes = [8, 2], strides = [1, 1]} : vector<8x128xf32> to vector<8x2xf32>
    %383 = vector.extract_strided_slice %381 {offsets = [0, 0], sizes = [8, 126], strides = [1, 1]} : vector<8x128xf32> to vector<8x126xf32>
    %384 = tpu.concatenate %382, %383 in 1 : vector<8x2xf32>, vector<8x126xf32> -> vector<8x128xf32>
    %385 = arith.select %24, %384, %381 : vector<8x128xi1>, vector<8x128xf32>
    %386 = vector.extract_strided_slice %385 {offsets = [0, 124], sizes = [8, 4], strides = [1, 1]} : vector<8x128xf32> to vector<8x4xf32>
    %387 = vector.extract_strided_slice %385 {offsets = [0, 0], sizes = [8, 124], strides = [1, 1]} : vector<8x128xf32> to vector<8x124xf32>
    %388 = tpu.concatenate %386, %387 in 1 : vector<8x4xf32>, vector<8x124xf32> -> vector<8x128xf32>
    %389 = arith.select %30, %388, %385 : vector<8x128xi1>, vector<8x128xf32>
    %390 = arith.truncf %389 : vector<8x128xf32> to vector<8x128xbf16>
    %391 = arith.truncf %376 : vector<8x8xf32> to vector<8x8xbf16>
    %cst_62 = arith.constant dense<0.000000e+00> : vector<8x64xf32>
    %392 = tpu.matmul %391, %350, %cst_62 {dimension_numbers = #tpu.dot_dimension_numbers<[1], [0], [0], [1], [0, 0, 1, 1], [], []>} : vector<8x8xbf16>, vector<8x64xbf16>, vector<8x64xf32> -> vector<8x64xf32>
    %393 = vector.extract_strided_slice %9 {offsets = [0, 384], sizes = [128, 64], strides = [1, 1]} : vector<128x512xbf16> to vector<128x64xbf16>
    %cst_63 = arith.constant dense<0.000000e+00> : vector<8x64xf32>
    %394 = tpu.matmul %390, %393, %cst_63 {dimension_numbers = #tpu.dot_dimension_numbers<[1], [0], [0], [1], [0, 0, 1, 1], [], []>} : vector<8x128xbf16>, vector<128x64xbf16>, vector<8x64xf32> -> vector<8x64xf32>
    %395 = arith.addf %392, %394 : vector<8x64xf32>
    %396 = arith.addf %344, %395 : vector<8x64xf32>
    %397 = vector.extract_strided_slice %3 {offsets = [0, 448], sizes = [8, 64], strides = [1, 1]} : vector<8x512xf32> to vector<8x64xf32>
    %398 = arith.truncf %397 : vector<8x64xf32> to vector<8x64xbf16>
    %399 = vector.extract_strided_slice %5 {offsets = [0, 448], sizes = [8, 64], strides = [1, 1]} : vector<8x512xf32> to vector<8x64xf32>
    %400 = arith.truncf %399 : vector<8x64xf32> to vector<8x64xbf16>
    %401 = vector.extract_strided_slice %7 {offsets = [0, 448], sizes = [8, 64], strides = [1, 1]} : vector<8x512xf32> to vector<8x64xf32>
    %402 = arith.truncf %401 : vector<8x64xf32> to vector<8x64xbf16>
    %cst_64 = arith.constant dense<0.000000e+00> : vector<8x8xf32>
    %403 = tpu.matmul %398, %400, %cst_64 {dimension_numbers = #tpu.dot_dimension_numbers<[1], [1], [0], [0], [0, 0, 1, 0], [], []>} : vector<8x64xbf16>, vector<8x64xbf16>, vector<8x8xf32> -> vector<8x8xf32>
    %cst_65 = arith.constant dense<0.000000e+00> : vector<8x128xf32>
    %404 = tpu.matmul %398, %8, %cst_65 {dimension_numbers = #tpu.dot_dimension_numbers<[1], [0], [0], [1], [0, 0, 1, 1], [], []>} : vector<8x64xbf16>, vector<64x128xbf16>, vector<8x128xf32> -> vector<8x128xf32>
    %405 = vector.extract_strided_slice %404 {offsets = [0, 1], sizes = [8, 127], strides = [1, 1]} : vector<8x128xf32> to vector<8x127xf32>
    %406 = vector.extract_strided_slice %404 {offsets = [0, 0], sizes = [8, 1], strides = [1, 1]} : vector<8x128xf32> to vector<8x1xf32>
    %407 = tpu.concatenate %405, %406 in 1 : vector<8x127xf32>, vector<8x1xf32> -> vector<8x128xf32>
    %408 = arith.select %18, %407, %404 : vector<8x128xi1>, vector<8x128xf32>
    %409 = vector.extract_strided_slice %408 {offsets = [0, 2], sizes = [8, 126], strides = [1, 1]} : vector<8x128xf32> to vector<8x126xf32>
    %410 = vector.extract_strided_slice %408 {offsets = [0, 0], sizes = [8, 2], strides = [1, 1]} : vector<8x128xf32> to vector<8x2xf32>
    %411 = tpu.concatenate %409, %410 in 1 : vector<8x126xf32>, vector<8x2xf32> -> vector<8x128xf32>
    %412 = arith.select %24, %411, %408 : vector<8x128xi1>, vector<8x128xf32>
    %413 = vector.extract_strided_slice %412 {offsets = [0, 4], sizes = [8, 124], strides = [1, 1]} : vector<8x128xf32> to vector<8x124xf32>
    %414 = vector.extract_strided_slice %412 {offsets = [0, 0], sizes = [8, 4], strides = [1, 1]} : vector<8x128xf32> to vector<8x4xf32>
    %415 = tpu.concatenate %413, %414 in 1 : vector<8x124xf32>, vector<8x4xf32> -> vector<8x128xf32>
    %416 = arith.select %30, %415, %412 : vector<8x128xi1>, vector<8x128xf32>
    %417 = vector.extract_strided_slice %416 {offsets = [0, 0], sizes = [8, 8], strides = [1, 1]} : vector<8x128xf32> to vector<8x8xf32>
    %418 = arith.addf %403, %417 : vector<8x8xf32>
    %cst_66 = arith.constant dense<0xFF800000> : vector<8xf32>
    %419 = vector.multi_reduction <maximumf>, %418, %cst_66 [1] : vector<8x8xf32> to vector<8xf32>
    %420 = vector.shape_cast %419 : vector<8xf32> to vector<8x1xf32>
    %421 = vector.broadcast %420 : vector<8x1xf32> to vector<8x8xf32>
    %422 = arith.subf %418, %421 : vector<8x8xf32>
    %423 = math.exp %422 : vector<8x8xf32>
    %cst_67 = arith.constant dense<0.000000e+00> : vector<8xf32>
    %424 = vector.multi_reduction <add>, %423, %cst_67 [1] : vector<8x8xf32> to vector<8xf32>
    %425 = vector.shape_cast %424 : vector<8xf32> to vector<8x1xf32>
    %426 = tpu.reciprocal %425 {approx = true} : vector<8x1xf32> -> vector<8x1xf32>
    %427 = vector.broadcast %426 : vector<8x1xf32> to vector<8x8xf32>
    %428 = arith.mulf %423, %427 : vector<8x8xf32>
    %429 = tpu.concatenate %428, %31 in 1 : vector<8x8xf32>, vector<8x120xf32> -> vector<8x128xf32>
    %430 = vector.extract_strided_slice %429 {offsets = [0, 127], sizes = [8, 1], strides = [1, 1]} : vector<8x128xf32> to vector<8x1xf32>
    %431 = vector.extract_strided_slice %429 {offsets = [0, 0], sizes = [8, 127], strides = [1, 1]} : vector<8x128xf32> to vector<8x127xf32>
    %432 = tpu.concatenate %430, %431 in 1 : vector<8x1xf32>, vector<8x127xf32> -> vector<8x128xf32>
    %433 = arith.select %18, %432, %429 : vector<8x128xi1>, vector<8x128xf32>
    %434 = vector.extract_strided_slice %433 {offsets = [0, 126], sizes = [8, 2], strides = [1, 1]} : vector<8x128xf32> to vector<8x2xf32>
    %435 = vector.extract_strided_slice %433 {offsets = [0, 0], sizes = [8, 126], strides = [1, 1]} : vector<8x128xf32> to vector<8x126xf32>
    %436 = tpu.concatenate %434, %435 in 1 : vector<8x2xf32>, vector<8x126xf32> -> vector<8x128xf32>
    %437 = arith.select %24, %436, %433 : vector<8x128xi1>, vector<8x128xf32>
    %438 = vector.extract_strided_slice %437 {offsets = [0, 124], sizes = [8, 4], strides = [1, 1]} : vector<8x128xf32> to vector<8x4xf32>
    %439 = vector.extract_strided_slice %437 {offsets = [0, 0], sizes = [8, 124], strides = [1, 1]} : vector<8x128xf32> to vector<8x124xf32>
    %440 = tpu.concatenate %438, %439 in 1 : vector<8x4xf32>, vector<8x124xf32> -> vector<8x128xf32>
    %441 = arith.select %30, %440, %437 : vector<8x128xi1>, vector<8x128xf32>
    %442 = arith.truncf %441 : vector<8x128xf32> to vector<8x128xbf16>
    %443 = arith.truncf %428 : vector<8x8xf32> to vector<8x8xbf16>
    %cst_68 = arith.constant dense<0.000000e+00> : vector<8x64xf32>
    %444 = tpu.matmul %443, %402, %cst_68 {dimension_numbers = #tpu.dot_dimension_numbers<[1], [0], [0], [1], [0, 0, 1, 1], [], []>} : vector<8x8xbf16>, vector<8x64xbf16>, vector<8x64xf32> -> vector<8x64xf32>
    %445 = vector.extract_strided_slice %9 {offsets = [0, 448], sizes = [128, 64], strides = [1, 1]} : vector<128x512xbf16> to vector<128x64xbf16>
    %cst_69 = arith.constant dense<0.000000e+00> : vector<8x64xf32>
    %446 = tpu.matmul %442, %445, %cst_69 {dimension_numbers = #tpu.dot_dimension_numbers<[1], [0], [0], [1], [0, 0, 1, 1], [], []>} : vector<8x128xbf16>, vector<128x64xbf16>, vector<8x64xf32> -> vector<8x64xf32>
    %447 = arith.addf %444, %446 : vector<8x64xf32>
    %448 = arith.addf %396, %447 : vector<8x64xf32>
    %449 = vector.shape_cast %448 : vector<8x64xf32> to vector<1x8x64xf32>
    %c0_70 = arith.constant 0 : index
    %c0_71 = arith.constant 0 : index
    %c0_72 = arith.constant 0 : index
    %450 = vector.load %arg7[%c0_70, %c0_71, %c0_72] : memref<1x8x64xf32, #tpu.memory_space<vmem>>, vector<1x8x64xf32>
    tpu.vector_store %arg7[%c0_70, %c0_71, %c0_72], %449 {strides = array<i32>} : memref<1x8x64xf32, #tpu.memory_space<vmem>>, vector<1x8x64xf32>,
    return
  }
  func.func @transform_0(%arg0: i32) -> (i32, i32, i32) {
    %c0_i32 = arith.constant 0 : i32
    %c0_i32_0 = arith.constant 0 : i32
    %c0_i32_1 = arith.constant 0 : i32
    return %arg0, %c0_i32, %c0_i32_0 : i32, i32, i32
  }
  func.func @transform_1(%arg0: i32) -> (i32, i32) {
    %c0_i32 = arith.constant 0 : i32
    %c0_i32_0 = arith.constant 0 : i32
    %c0_i32_1 = arith.constant 0 : i32
    return %c0_i32, %c0_i32_0 : i32, i32
  }
  func.func @transform_2(%arg0: i32) -> (i32, i32) {
    %c0_i32 = arith.constant 0 : i32
    %c0_i32_0 = arith.constant 0 : i32
    %c0_i32_1 = arith.constant 0 : i32
    return %c0_i32, %c0_i32_0 : i32, i32
  }
  func.func @transform_3(%arg0: i32) -> (i32, i32) {
    %c0_i32 = arith.constant 0 : i32
    %c0_i32_0 = arith.constant 0 : i32
    %c0_i32_1 = arith.constant 0 : i32
    return %c0_i32, %c0_i32_0 : i32, i32
  }
  func.func @transform_4(%arg0: i32) -> (i32, i32) {
    %c0_i32 = arith.constant 0 : i32
    %c0_i32_0 = arith.constant 0 : i32
    %c0_i32_1 = arith.constant 0 : i32
    return %c0_i32, %c0_i32_0 : i32, i32
  }
  func.func @transform_5(%arg0: i32) -> (i32, i32) {
    %c0_i32 = arith.constant 0 : i32
    %c0_i32_0 = arith.constant 0 : i32
    %c0_i32_1 = arith.constant 0 : i32
    return %c0_i32, %c0_i32_0 : i32, i32
  }
  func.func @transform_6(%arg0: i32) -> (i32, i32, i32) {
    %c0_i32 = arith.constant 0 : i32
    %c0_i32_0 = arith.constant 0 : i32
    %c0_i32_1 = arith.constant 0 : i32
    return %arg0, %c0_i32, %c0_i32_0 : i32, i32, i32
  }
}

</mosaic_0001>

<llo_original>
// kernel: tpu_custom_call.1
$region0: #{tpu_custom_call.1}
  #allocation0 [shape = 'u32[]', space=smem, size = 0x4, offset = 0x4, fixed_abs, tag = 'smem constant byte address 0x4 - core index']
  #allocation1 [shape = 'u32[144,128]{1,0:T(1,128)}', space=vmem, size = 0x12000, scoped, tag = 'internal scratch']
  %s0 = inlined_call_operand.hbm [shape: bf16[2,8,32], index: 0, kind: input, shape index: {}]
  %s1 = inlined_call_operand.hbm [shape: bf16[32,512], index: 1, kind: input, shape index: {}]
  %s2 = inlined_call_operand.hbm [shape: bf16[32,512], index: 2, kind: input, shape index: {}]
  %s3 = inlined_call_operand.hbm [shape: bf16[32,512], index: 3, kind: input, shape index: {}]
  %s4 = inlined_call_operand.hbm [shape: bf16[64,128], index: 4, kind: input, shape index: {}]
  %s5 = inlined_call_operand.hbm [shape: bf16[128,512], index: 5, kind: input, shape index: {}]
  %s6 = inlined_call_operand.hbm [shape: f32[2,8,64], index: 6, kind: output, shape index: {}]
  %s7 = sld [smem:[#allocation0]]
  $region81: #{tpu_custom_call.1} parent=0
    _
  %s9 = ssub.s32 1, %s7
  %s10 = scalar_select 0, %s9, %s7
  $region1: #{tpu_custom_call.1} parent=0
    #allocation2 [shape = 'u8[4096]{0}', space=vmem, size = 0x1000, scoped, tag = 'input window, operand 0']
    #allocation3 [shape = 's32[2]{0}', space=sflag, size = 0x8, scoped, tag = 'scoped memory for tpu_custom_call.1']
    #allocation4 [shape = 's32[2]{0}', space=sflag, size = 0x8, scoped, tag = 'scoped memory for tpu_custom_call.1']
    #allocation5 [shape = 'u8[32768]{0}', space=vmem, size = 0x8000, scoped, tag = 'input window, operand 1, single buffered']
    #allocation6 [shape = 's32[1]{0}', space=sflag, size = 0x4, scoped, tag = 'scoped memory for tpu_custom_call.1']
    #allocation7 [shape = 'u8[32768]{0}', space=vmem, size = 0x8000, scoped, tag = 'input window, operand 2, single buffered']
    #allocation8 [shape = 'u8[32768]{0}', space=vmem, size = 0x8000, scoped, tag = 'input window, operand 3, single buffered']
    #allocation9 [shape = 's32[1]{0}', space=sflag, size = 0x4, scoped, tag = 'scoped memory for tpu_custom_call.1']
    #allocation10 [shape = 'u8[16384]{0}', space=vmem, size = 0x4000, scoped, tag = 'input window, operand 4, single buffered']
    #allocation11 [shape = 'u8[131072]{0}', space=vmem, size = 0x20000, scoped, tag = 'input window, operand 5, single buffered']
    #allocation12 [shape = 's32[1]{0}', space=sflag, size = 0x4, scoped, tag = 'scoped memory for tpu_custom_call.1']
    #allocation13 [shape = 'u8[8192]{0}', space=vmem, size = 0x2000, scoped, tag = 'output window, operand 0']
    %11 = vsyncpa [#allocation3], 0
    %s12 = scalar_lea.sflag [#allocation3], 1
    %13 = vsyncpa %s12, 0
    %14 = vsyncpa [#allocation6], 0
    %15 = vsyncpa [#allocation9], 0
    %16 = vsyncpa [#allocation12], 0
    %17 = vsyncpa [#allocation4], 0
    %s18 = scalar_lea.sflag [#allocation4], 1
    %19 = vsyncpa %s18, 0
    loop: start=0, step=1, limit=4
    $region2: #{tpu_custom_call.1} parent=1 // loop_pre_header
      _
    $region3: #{tpu_custom_call.1} parent=1 // loop_header
      %s21 = sphi 0, %s25
      %p22 = scmp.ge.s32.totalorder %s21, 4
      %s31 = sphi 0, %s33
      %s34 = sphi 0, %s31
      %s35 = sphi 0, %s34
      %s51 = sphi 0, %s35
      %s55 = sphi 0, %s55
      %s57 = sphi 0, %s55
      %s58 = sphi 0, %s57
      %s72 = sphi 0, %s58
      %s76 = sphi 0, %s76
      %s78 = sphi 0, %s76
      %s79 = sphi 0, %s78
      %s93 = sphi 0, %s79
      %s97 = sphi 0, %s97
      %s99 = sphi 0, %s97
      %s100 = sphi 0, %s99
      %s114 = sphi 0, %s100
      %s118 = sphi 0, %s118
      %s120 = sphi 0, %s118
      %s121 = sphi 0, %s120
      %s135 = sphi 0, %s121
      %s139 = sphi 0, %s139
      %s141 = sphi 0, %s139
      %s142 = sphi 0, %s141
      %s156 = sphi 0, %s142
      %s162 = sphi 0, %s164
      %s165 = sphi 0, %s162
      %s166 = sphi 0, %s165
      %s182 = sphi 0, %s166
    $region4: #{tpu_custom_call.1} parent=1 // loop_header_branch
      %24 = sbr.rel (%p22) target = $region8
    $region5: #{tpu_custom_call.1} parent=1 // loop_body
      %s26 = ssub.s32 %s21, 1
      %s27 = ssub.s32 %s21, 2
      %s28 = sadd.s32 %s21, 1
      %s29 = ssub.s32 %s21, %s28
      %p30 = scmp.eq.s32.totalorder %s29, 0
      %s32 = sadd.s32 %s31, 1
      %s33 = scalar_select %p30, %s31, %s32
      %p36 = pneg %p30
      %p37 = scmp.eq.s32.totalorder %s21, 1
      %p38 = por %p36, %p37
      %p39 = scmp.ne.s32.totalorder %s31, %s34
      %p40 = scmp.eq.s32.totalorder %s21, 0
      %p41 = por %p39, %p40
      %p42 = scmp.ne.s32.totalorder %s31, %s34
      %p43 = scmp.eq.s32.totalorder %s26, 1
      %p44 = por %p42, %p43
      %p45 = scmp.ne.s32.totalorder %s34, %s35
      %p46 = scmp.eq.s32.totalorder %s26, 0
      %p47 = por %p45, %p46
      %p48 = scmp.ne.s32.totalorder %s34, %s35
      %p49 = scmp.eq.s32.totalorder %s27, 1
      %p50 = por %p48, %p49
      %p52 = scmp.ne.s32.totalorder %s35, %s51
      %p53 = scmp.eq.s32.totalorder %s27, 0
      %p54 = por %p52, %p53
      %s56 = sadd.s32 %s55, 1
      %p59 = scmp.eq.s32.totalorder %s21, 1
      %p60 = scmp.ne.s32.totalorder %s55, %s57
      %p61 = scmp.eq.s32.totalorder %s21, 0
      %p62 = por %p60, %p61
      %p63 = scmp.ne.s32.totalorder %s55, %s57
      %p64 = scmp.eq.s32.totalorder %s26, 1
      %p65 = por %p63, %p64
      %p66 = scmp.ne.s32.totalorder %s57, %s58
      %p67 = scmp.eq.s32.totalorder %s26, 0
      %p68 = por %p66, %p67
      %p69 = scmp.ne.s32.totalorder %s57, %s58
      %p70 = scmp.eq.s32.totalorder %s27, 1
      %p71 = por %p69, %p70
      %p73 = scmp.ne.s32.totalorder %s58, %s72
      %p74 = scmp.eq.s32.totalorder %s27, 0
      %p75 = por %p73, %p74
      %s77 = sadd.s32 %s76, 1
      %p80 = scmp.eq.s32.totalorder %s21, 1
      %p81 = scmp.ne.s32.totalorder %s76, %s78
      %p82 = scmp.eq.s32.totalorder %s21, 0
      %p83 = por %p81, %p82
      %p84 = scmp.ne.s32.totalorder %s76, %s78
      %p85 = scmp.eq.s32.totalorder %s26, 1
      %p86 = por %p84, %p85
      %p87 = scmp.ne.s32.totalorder %s78, %s79
      %p88 = scmp.eq.s32.totalorder %s26, 0
      %p89 = por %p87, %p88
      %p90 = scmp.ne.s32.totalorder %s78, %s79
      %p91 = scmp.eq.s32.totalorder %s27, 1
      %p92 = por %p90, %p91
      %p94 = scmp.ne.s32.totalorder %s79, %s93
      %p95 = scmp.eq.s32.totalorder %s27, 0
      %p96 = por %p94, %p95
      %s98 = sadd.s32 %s97, 1
      %p101 = scmp.eq.s32.totalorder %s21, 1
      %p102 = scmp.ne.s32.totalorder %s97, %s99
      %p103 = scmp.eq.s32.totalorder %s21, 0
      %p104 = por %p102, %p103
      %p105 = scmp.ne.s32.totalorder %s97, %s99
      %p106 = scmp.eq.s32.totalorder %s26, 1
      %p107 = por %p105, %p106
      %p108 = scmp.ne.s32.totalorder %s99, %s100
      %p109 = scmp.eq.s32.totalorder %s26, 0
      %p110 = por %p108, %p109
      %p111 = scmp.ne.s32.totalorder %s99, %s100
      %p112 = scmp.eq.s32.totalorder %s27, 1
      %p113 = por %p111, %p112
      %p115 = scmp.ne.s32.totalorder %s100, %s114
      %p116 = scmp.eq.s32.totalorder %s27, 0
      %p117 = por %p115, %p116
      %s119 = sadd.s32 %s118, 1
      %p122 = scmp.eq.s32.totalorder %s21, 1
      %p123 = scmp.ne.s32.totalorder %s118, %s120
      %p124 = scmp.eq.s32.totalorder %s21, 0
      %p125 = por %p123, %p124
      %p126 = scmp.ne.s32.totalorder %s118, %s120
      %p127 = scmp.eq.s32.totalorder %s26, 1
      %p128 = por %p126, %p127
      %p129 = scmp.ne.s32.totalorder %s120, %s121
      %p130 = scmp.eq.s32.totalorder %s26, 0
      %p131 = por %p129, %p130
      %p132 = scmp.ne.s32.totalorder %s120, %s121
      %p133 = scmp.eq.s32.totalorder %s27, 1
      %p134 = por %p132, %p133
      %p136 = scmp.ne.s32.totalorder %s121, %s135
      %p137 = scmp.eq.s32.totalorder %s27, 0
      %p138 = por %p136, %p137
      %s140 = sadd.s32 %s139, 1
      %p143 = scmp.eq.s32.totalorder %s21, 1
      %p144 = scmp.ne.s32.totalorder %s139, %s141
      %p145 = scmp.eq.s32.totalorder %s21, 0
      %p146 = por %p144, %p145
      %p147 = scmp.ne.s32.totalorder %s139, %s141
      %p148 = scmp.eq.s32.totalorder %s26, 1
      %p149 = por %p147, %p148
      %p150 = scmp.ne.s32.totalorder %s141, %s142
      %p151 = scmp.eq.s32.totalorder %s26, 0
      %p152 = por %p150, %p151
      %p153 = scmp.ne.s32.totalorder %s141, %s142
      %p154 = scmp.eq.s32.totalorder %s27, 1
      %p155 = por %p153, %p154
      %p157 = scmp.ne.s32.totalorder %s142, %s156
      %p158 = scmp.eq.s32.totalorder %s27, 0
      %p159 = por %p157, %p158
      %s160 = ssub.s32 %s21, %s28
      %p161 = scmp.eq.s32.totalorder %s160, 0
      %s163 = sadd.s32 %s162, 1
      %s164 = scalar_select %p161, %s162, %s163
      %p167 = pneg %p161
      %p168 = scmp.eq.s32.totalorder %s21, 1
      %p169 = por %p167, %p168
      %p170 = scmp.ne.s32.totalorder %s162, %s165
      %p171 = scmp.eq.s32.totalorder %s21, 0
      %p172 = por %p170, %p171
      %p173 = scmp.ne.s32.totalorder %s162, %s165
      %p174 = scmp.eq.s32.totalorder %s26, 1
      %p175 = por %p173, %p174
      %p176 = scmp.ne.s32.totalorder %s165, %s166
      %p177 = scmp.eq.s32.totalorder %s26, 0
      %p178 = por %p176, %p177
      %p179 = scmp.ne.s32.totalorder %s165, %s166
      %p180 = scmp.eq.s32.totalorder %s27, 1
      %p181 = por %p179, %p180
      %p183 = scmp.ne.s32.totalorder %s166, %s182
      %p184 = scmp.eq.s32.totalorder %s27, 0
      %p185 = por %p183, %p184
      %p186 = scmp.le.s32.totalorder 1, %s21
      %p187 = scmp.lt.s32.totalorder %s21, 3
      %p188 = pnand %p186, %p187
      %p189 = pneg %p188
      // Predicated region
      $region9: #{tpu_custom_call.1} parent=5 // pred_check
        _
      $region10: #{tpu_custom_call.1} parent=5 // pred_check_branch
        %191 = sbr.rel (%p188) target = $region12
      $region11: #{tpu_custom_call.1} parent=5 // pred_region
        %s192 = ssub.s32 %s21, 1
        // Predicated region
        $region13: #{tpu_custom_call.1} parent=11 // pred_check
          %p193 = pneg %p68
        $region14: #{tpu_custom_call.1} parent=11 // pred_check_branch
          %195 = sbr.rel (%p193) target = $region16
        $region15: #{tpu_custom_call.1} parent=11 // pred_region
          %s197 = ssub.s32 1024, 1024
          %198 = vsyncadd [#allocation6], %s197
          %s199 = sshll.u32 [#allocation5], 4
          %s200 = int_to_ptr.vmem [resolvable:$true] %s199
          %205 = dma.hbm_to_vmem [thread:$0]  %s1, 1024, %s200, [#allocation6], 256, 256, 16
        $region16: #{tpu_custom_call.1} parent=11 // pred_fallthru
          _
        // Predicated region
        $region17: #{tpu_custom_call.1} parent=11 // pred_check
          %p206 = pneg %p89
        $region18: #{tpu_custom_call.1} parent=11 // pred_check_branch
          %208 = sbr.rel (%p206) target = $region20
        $region19: #{tpu_custom_call.1} parent=11 // pred_region
          %s210 = ssub.s32 1024, 1024
          %211 = vsyncadd [#allocation6], %s210
          %s212 = sshll.u32 [#allocation7], 4
          %s213 = int_to_ptr.vmem [resolvable:$true] %s212
          %218 = dma.hbm_to_vmem [thread:$0]  %s2, 1024, %s213, [#allocation6], 256, 256, 16
        $region20: #{tpu_custom_call.1} parent=11 // pred_fallthru
          _
        // Predicated region
        $region21: #{tpu_custom_call.1} parent=11 // pred_check
          %p219 = pneg %p110
        $region22: #{tpu_custom_call.1} parent=11 // pred_check_branch
          %221 = sbr.rel (%p219) target = $region24
        $region23: #{tpu_custom_call.1} parent=11 // pred_region
          %s223 = ssub.s32 1024, 1024
          %224 = vsyncadd [#allocation9], %s223
          %s225 = sshll.u32 [#allocation8], 4
          %s226 = int_to_ptr.vmem [resolvable:$true] %s225
          %231 = dma.hbm_to_vmem [thread:$0]  %s3, 1024, %s226, [#allocation9], 256, 256, 16
        $region24: #{tpu_custom_call.1} parent=11 // pred_fallthru
          _
        // Predicated region
        $region25: #{tpu_custom_call.1} parent=11 // pred_check
          %p232 = pneg %p131
        $region26: #{tpu_custom_call.1} parent=11 // pred_check_branch
          %234 = sbr.rel (%p232) target = $region28
        $region27: #{tpu_custom_call.1} parent=11 // pred_region
          %s236 = ssub.s32 512, 512
          %237 = vsyncadd [#allocation9], %s236
          %s238 = sshll.u32 [#allocation10], 4
          %s239 = int_to_ptr.vmem [resolvable:$true] %s238
          %244 = dma.hbm_to_vmem [thread:$0]  %s4, 512, %s239, [#allocation9], 64, 64, 4
        $region28: #{tpu_custom_call.1} parent=11 // pred_fallthru
          _
        // Predicated region
        $region29: #{tpu_custom_call.1} parent=11 // pred_check
          %p245 = pneg %p152
        $region30: #{tpu_custom_call.1} parent=11 // pred_check_branch
          %247 = sbr.rel (%p245) target = $region32
        $region31: #{tpu_custom_call.1} parent=11 // pred_region
          %s249 = ssub.s32 4096, 4096
          %250 = vsyncadd [#allocation12], %s249
          %s251 = sshll.u32 [#allocation11], 4
          %s252 = int_to_ptr.vmem [resolvable:$true] %s251
          %257 = dma.hbm_to_vmem [thread:$0]  %s5, 4096, %s252, [#allocation12], 256, 256, 16
        $region32: #{tpu_custom_call.1} parent=11 // pred_fallthru
          _
      $region12: #{tpu_custom_call.1} parent=5 // pred_fallthru
        _
      %p258 = scmp.lt.s32.totalorder %s21, 2
      // Predicated region
      $region33: #{tpu_custom_call.1} parent=5 // pred_check
        %p259 = pneg %p258
      $region34: #{tpu_custom_call.1} parent=5 // pred_check_branch
        %261 = sbr.rel (%p259) target = $region36
      $region35: #{tpu_custom_call.1} parent=5 // pred_region
        // Predicated region
        $region37: #{tpu_custom_call.1} parent=35 // pred_check
          %p262 = pneg %p41
        $region38: #{tpu_custom_call.1} parent=35 // pred_check_branch
          %264 = sbr.rel (%p262) target = $region40
        $region39: #{tpu_custom_call.1} parent=35 // pred_region
          %s265 = sand.u32 %s31, 1
          %s266 = scalar_lea.sflag [#allocation3], %s265
          %s267 = sand.u32 %s31, 1
          %s268 = smul.addr %s267, 4
          %s269 = scalar_lea.vmem [#allocation2], %s268
          %s271 = ssub.s32 64, 64
          %272 = vsyncadd %s266, %s271
          %s273 = smul.addr %s21, 64
          %s274 = scalar_lea.hbm %s0, %s273
          %s276 = sshll.u32 %s269, 4
          %s277 = int_to_ptr.vmem [resolvable:$true] %s276
          %279 = dma.hbm_to_vmem [thread:$0]  %s274, 64, %s277, %s266
        $region40: #{tpu_custom_call.1} parent=35 // pred_fallthru
          _
      $region36: #{tpu_custom_call.1} parent=5 // pred_fallthru
        _
      %p280 = scmp.le.s32.totalorder 1, %s21
      %p281 = scmp.lt.s32.totalorder %s21, 3
      %p282 = pnand %p280, %p281
      %p283 = pneg %p282
      // Predicated region
      $region41: #{tpu_custom_call.1} parent=5 // pred_check
        _
      $region42: #{tpu_custom_call.1} parent=5 // pred_check_branch
        %285 = sbr.rel (%p282) target = $region44
      $region43: #{tpu_custom_call.1} parent=5 // pred_region
        %s286 = ssub.s32 %s21, 1
        %s287 = sand.u32 %s34, 1
        %s288 = scalar_lea.sflag [#allocation3], %s287
        %s289 = sand.u32 %s34, 1
        %s290 = smul.addr %s289, 4
        %s291 = scalar_lea.vmem [#allocation2], %s290
        // Predicated region
        $region45: #{tpu_custom_call.1} parent=43 // pred_check
          %p292 = pneg %p47
        $region46: #{tpu_custom_call.1} parent=43 // pred_check_branch
          %294 = sbr.rel (%p292) target = $region48
        $region47: #{tpu_custom_call.1} parent=43 // pred_region
          %295 = dma.done %s288, 64
        $region48: #{tpu_custom_call.1} parent=43 // pred_fallthru
          _
        // Predicated region
        $region49: #{tpu_custom_call.1} parent=43 // pred_check
          %p296 = pneg %p68
        $region50: #{tpu_custom_call.1} parent=43 // pred_check_branch
          %298 = sbr.rel (%p296) target = $region52
        $region51: #{tpu_custom_call.1} parent=43 // pred_region
          %299 = dma.done [#allocation6], 1024
        $region52: #{tpu_custom_call.1} parent=43 // pred_fallthru
          _
        // Predicated region
        $region53: #{tpu_custom_call.1} parent=43 // pred_check
          %p300 = pneg %p89
        $region54: #{tpu_custom_call.1} parent=43 // pred_check_branch
          %302 = sbr.rel (%p300) target = $region56
        $region55: #{tpu_custom_call.1} parent=43 // pred_region
          %303 = dma.done [#allocation6], 1024
        $region56: #{tpu_custom_call.1} parent=43 // pred_fallthru
          _
        // Predicated region
        $region57: #{tpu_custom_call.1} parent=43 // pred_check
          %p304 = pneg %p110
        $region58: #{tpu_custom_call.1} parent=43 // pred_check_branch
          %306 = sbr.rel (%p304) target = $region60
        $region59: #{tpu_custom_call.1} parent=43 // pred_region
          %307 = dma.done [#allocation9], 1024
        $region60: #{tpu_custom_call.1} parent=43 // pred_fallthru
          _
        // Predicated region
        $region61: #{tpu_custom_call.1} parent=43 // pred_check
          %p308 = pneg %p131
        $region62: #{tpu_custom_call.1} parent=43 // pred_check_branch
          %310 = sbr.rel (%p308) target = $region64
        $region63: #{tpu_custom_call.1} parent=43 // pred_region
          %311 = dma.done [#allocation9], 512
        $region64: #{tpu_custom_call.1} parent=43 // pred_fallthru
          _
        // Predicated region
        $region65: #{tpu_custom_call.1} parent=43 // pred_check
          %p312 = pneg %p152
        $region66: #{tpu_custom_call.1} parent=43 // pred_check_branch
          %314 = sbr.rel (%p312) target = $region68
        $region67: #{tpu_custom_call.1} parent=43 // pred_region
          %315 = dma.done [#allocation12], 4096
        $region68: #{tpu_custom_call.1} parent=43 // pred_fallthru
          _
        %s316 = sand.u32 %s34, 1
        %s317 = scalar_lea.sflag [#allocation3], %s316
        %s318 = sand.u32 %s34, 1
        %s319 = smul.addr %s318, 4
        %s320 = scalar_lea.vmem [#allocation2], %s319
        %p321 = pneg %p47
        %p322 = pneg %p44
        %p323 = pneg %p68
        %p324 = pneg %p65
        %p325 = pneg %p89
        %p326 = pneg %p86
        %p327 = pneg %p110
        %p328 = pneg %p107
        %p329 = pneg %p131
        %p330 = pneg %p128
        %p331 = pneg %p152
        %p332 = pneg %p149
        %p333 = pneg %p178
        %p334 = pneg %p175
        %s335 = sand.u32 %s165, 1
        %s336 = scalar_lea.sflag [#allocation4], %s335
        %s337 = sand.u32 %s165, 1
        %s338 = smul.addr %s337, 8
        %s339 = scalar_lea.vmem [#allocation13], %s338
        %v341 = vld [vmem:[%s291] sm:$0xf]
        %v342 = vld [vmem:[#allocation5] sm:$0xff]
        %v343 = vld [vmem:[#allocation5 + $0x8] sm:$0xff]
        %v344 = vld [vmem:[#allocation5 + $0x10] sm:$0xff]
        %v345 = vld [vmem:[#allocation5 + $0x18] sm:$0xff]
        %v346 = vld [vmem:[#allocation5 + $0x20] sm:$0xff]
        %v347 = vld [vmem:[#allocation5 + $0x28] sm:$0xff]
        %v348 = vld [vmem:[#allocation5 + $0x30] sm:$0xff]
        %v349 = vld [vmem:[#allocation5 + $0x38] sm:$0xff]
        %v358 = vunpack.c.l.b16 %v342
        %v359 = vunpack.c.h.b16 %v342
        %v360 = vunpack.c.l.b16 %v343
        %v361 = vunpack.c.h.b16 %v343
        %v362 = vunpack.c.l.b16 %v344
        %v363 = vunpack.c.h.b16 %v344
        %v364 = vunpack.c.l.b16 %v345
        %v365 = vunpack.c.h.b16 %v345
        %v366 = vunpack.c.l.b16 %v346
        %v367 = vunpack.c.h.b16 %v346
        %v368 = vunpack.c.l.b16 %v347
        %v369 = vunpack.c.h.b16 %v347
        %v370 = vunpack.c.l.b16 %v348
        %v371 = vunpack.c.h.b16 %v348
        %v372 = vunpack.c.l.b16 %v349
        %v373 = vunpack.c.h.b16 %v349
        %v374 = vpack.c.b16 %v362, %v358
        %v375 = vpack.c.b16 %v363, %v359
        %v376 = vpack.c.b16 %v364, %v360
        %v377 = vpack.c.b16 %v365, %v361
        %v378 = vpack.c.b16 %v370, %v366
        %v379 = vpack.c.b16 %v371, %v367
        %v380 = vpack.c.b16 %v372, %v368
        %v381 = vpack.c.b16 %v373, %v369
        %vm390 = vcmask 261120
        %v392 = vsel %vm390, %v341, 0
        %394 = vmatprep.subr.bf16.mxu0 0
        %395 = vmatpush1.bf16.msra.mxu0 0
        %396 = vmatprep.subr.bf16.mxu0 0
        %397 = vmatpush1.bf16.msra.mxu0 0
        %398 = vmatprep.subr.bf16.mxu0 0
        %399 = vmatpush1.bf16.msra.mxu0 0
        %400 = vmatprep.subr.bf16.mxu0 0
        %401 = vmatpush1.bf16.msra.mxu0 0
        %402 = vmatprep.subr.bf16.mxu0 0
        %403 = vmatpush1.bf16.msra.mxu0 0
        %404 = vmatprep.subr.bf16.mxu0 0
        %405 = vmatpush1.bf16.msra.mxu0 0
        %406 = vmatprep.subr.bf16.mxu0 %v379
        %407 = vmatpush1.bf16.msra.mxu0 %v378
        %408 = vmatprep.subr.bf16.mxu0 %v375
        %409 = vmatpush1.bf16.msra.mxu0 %v374
        %410 = vmatprep.subr.bf16.mxu0 0
        %411 = vmatpush2.bf16.msra.mxu0 0
        %412 = vmatprep.subr.bf16.mxu0 0
        %413 = vmatpush2.bf16.msra.mxu0 0
        %414 = vmatprep.subr.bf16.mxu0 0
        %415 = vmatpush2.bf16.msra.mxu0 0
        %416 = vmatprep.subr.bf16.mxu0 0
        %417 = vmatpush2.bf16.msra.mxu0 0
        %418 = vmatprep.subr.bf16.mxu0 0
        %419 = vmatpush2.bf16.msra.mxu0 0
        %420 = vmatprep.subr.bf16.mxu0 0
        %421 = vmatpush2.bf16.msra.mxu0 0
        %422 = vmatprep.subr.bf16.mxu0 0
        %423 = vmatpush2.bf16.msra.mxu0 0
        %424 = vmatprep.subr.bf16.mxu0 0
        %425 = vmatpush2.bf16.msra.mxu0 0
        %426 = vmatprep.mubr.bf16.mxu0 0
        %427 = vmatmul.mubr.bf16.gmra.mxu0 %v392
        %v428 = vpop.f32.mrf.mxu0
        %v429 = vadd.f32 0.0, %v428
        %v430 = vpop.f32.mrf.mxu0
        %v431 = vadd.f32 0.0, %v430
        %v432 = vpop.f32.mrf.mxu0
        %v433 = vpop.f32.mrf.mxu0
        %434 = vdwg.mxu0
        %435 = vmatprep.subr.bf16.mxu0 0
        %436 = vmatpush1.bf16.msra.mxu0 0
        %437 = vmatprep.subr.bf16.mxu0 0
        %438 = vmatpush1.bf16.msra.mxu0 0
        %439 = vmatprep.subr.bf16.mxu0 0
        %440 = vmatpush1.bf16.msra.mxu0 0
        %441 = vmatprep.subr.bf16.mxu0 0
        %442 = vmatpush1.bf16.msra.mxu0 0
        %443 = vmatprep.subr.bf16.mxu0 0
        %444 = vmatpush1.bf16.msra.mxu0 0
        %445 = vmatprep.subr.bf16.mxu0 0
        %446 = vmatpush1.bf16.msra.mxu0 0
        %447 = vmatprep.subr.bf16.mxu0 %v381
        %448 = vmatpush1.bf16.msra.mxu0 %v380
        %449 = vmatprep.subr.bf16.mxu0 %v377
        %450 = vmatpush1.bf16.msra.mxu0 %v376
        %451 = vmatprep.subr.bf16.mxu0 0
        %452 = vmatpush2.bf16.msra.mxu0 0
        %453 = vmatprep.subr.bf16.mxu0 0
        %454 = vmatpush2.bf16.msra.mxu0 0
        %455 = vmatprep.subr.bf16.mxu0 0
        %456 = vmatpush2.bf16.msra.mxu0 0
        %457 = vmatprep.subr.bf16.mxu0 0
        %458 = vmatpush2.bf16.msra.mxu0 0
        %459 = vmatprep.subr.bf16.mxu0 0
        %460 = vmatpush2.bf16.msra.mxu0 0
        %461 = vmatprep.subr.bf16.mxu0 0
        %462 = vmatpush2.bf16.msra.mxu0 0
        %463 = vmatprep.subr.bf16.mxu0 0
        %464 = vmatpush2.bf16.msra.mxu0 0
        %465 = vmatprep.subr.bf16.mxu0 0
        %466 = vmatpush2.bf16.msra.mxu0 0
        %467 = vmatprep.mubr.bf16.mxu0 0
        %468 = vmatmul.mubr.bf16.gmra.mxu0 %v392
        %v469 = vpop.f32.mrf.mxu0
        %v470 = vadd.f32 0.0, %v469
        %v471 = vpop.f32.mrf.mxu0
        %v472 = vadd.f32 0.0, %v471
        %v473 = vpop.f32.mrf.mxu0
        %v474 = vpop.f32.mrf.mxu0
        %475 = vdwg.mxu0
        %v476 = vld [vmem:[#allocation7] sm:$0xff]
        %v477 = vld [vmem:[#allocation7 + $0x8] sm:$0xff]
        %v478 = vld [vmem:[#allocation7 + $0x10] sm:$0xff]
        %v479 = vld [vmem:[#allocation7 + $0x18] sm:$0xff]
        %v480 = vld [vmem:[#allocation7 + $0x20] sm:$0xff]
        %v481 = vld [vmem:[#allocation7 + $0x28] sm:$0xff]
        %v482 = vld [vmem:[#allocation7 + $0x30] sm:$0xff]
        %v483 = vld [vmem:[#allocation7 + $0x38] sm:$0xff]
        %v492 = vunpack.c.l.b16 %v476
        %v493 = vunpack.c.h.b16 %v476
        %v494 = vunpack.c.l.b16 %v477
        %v495 = vunpack.c.h.b16 %v477
        %v496 = vunpack.c.l.b16 %v478
        %v497 = vunpack.c.h.b16 %v478
        %v498 = vunpack.c.l.b16 %v479
        %v499 = vunpack.c.h.b16 %v479
        %v500 = vunpack.c.l.b16 %v480
        %v501 = vunpack.c.h.b16 %v480
        %v502 = vunpack.c.l.b16 %v481
        %v503 = vunpack.c.h.b16 %v481
        %v504 = vunpack.c.l.b16 %v482
        %v505 = vunpack.c.h.b16 %v482
        %v506 = vunpack.c.l.b16 %v483
        %v507 = vunpack.c.h.b16 %v483
        %v508 = vpack.c.b16 %v496, %v492
        %v509 = vpack.c.b16 %v497, %v493
        %v510 = vpack.c.b16 %v498, %v494
        %v511 = vpack.c.b16 %v499, %v495
        %v512 = vpack.c.b16 %v504, %v500
        %v513 = vpack.c.b16 %v505, %v501
        %v514 = vpack.c.b16 %v506, %v502
        %v515 = vpack.c.b16 %v507, %v503
        %524 = vmatprep.subr.bf16.mxu0 0
        %525 = vmatpush1.bf16.msra.mxu0 0
        %526 = vmatprep.subr.bf16.mxu0 0
        %527 = vmatpush1.bf16.msra.mxu0 0
        %528 = vmatprep.subr.bf16.mxu0 0
        %529 = vmatpush1.bf16.msra.mxu0 0
        %530 = vmatprep.subr.bf16.mxu0 0
        %531 = vmatpush1.bf16.msra.mxu0 0
        %532 = vmatprep.subr.bf16.mxu0 0
        %533 = vmatpush1.bf16.msra.mxu0 0
        %534 = vmatprep.subr.bf16.mxu0 0
        %535 = vmatpush1.bf16.msra.mxu0 0
        %536 = vmatprep.subr.bf16.mxu0 %v513
        %537 = vmatpush1.bf16.msra.mxu0 %v512
        %538 = vmatprep.subr.bf16.mxu0 %v509
        %539 = vmatpush1.bf16.msra.mxu0 %v508
        %540 = vmatprep.subr.bf16.mxu0 0
        %541 = vmatpush2.bf16.msra.mxu0 0
        %542 = vmatprep.subr.bf16.mxu0 0
        %543 = vmatpush2.bf16.msra.mxu0 0
        %544 = vmatprep.subr.bf16.mxu0 0
        %545 = vmatpush2.bf16.msra.mxu0 0
        %546 = vmatprep.subr.bf16.mxu0 0
        %547 = vmatpush2.bf16.msra.mxu0 0
        %548 = vmatprep.subr.bf16.mxu0 0
        %549 = vmatpush2.bf16.msra.mxu0 0
        %550 = vmatprep.subr.bf16.mxu0 0
        %551 = vmatpush2.bf16.msra.mxu0 0
        %552 = vmatprep.subr.bf16.mxu0 0
        %553 = vmatpush2.bf16.msra.mxu0 0
        %554 = vmatprep.subr.bf16.mxu0 0
        %555 = vmatpush2.bf16.msra.mxu0 0
        %556 = vmatprep.mubr.bf16.mxu0 0
        %557 = vmatmul.mubr.bf16.gmra.mxu0 %v392
        %v558 = vpop.f32.mrf.mxu0
        %v559 = vadd.f32 0.0, %v558
        %v560 = vpop.f32.mrf.mxu0
        %v561 = vadd.f32 0.0, %v560
        %v562 = vpop.f32.mrf.mxu0
        %v563 = vpop.f32.mrf.mxu0
        %564 = vdwg.mxu0
        %565 = vmatprep.subr.bf16.mxu0 0
        %566 = vmatpush1.bf16.msra.mxu0 0
        %567 = vmatprep.subr.bf16.mxu0 0
        %568 = vmatpush1.bf16.msra.mxu0 0
        %569 = vmatprep.subr.bf16.mxu0 0
        %570 = vmatpush1.bf16.msra.mxu0 0
        %571 = vmatprep.subr.bf16.mxu0 0
        %572 = vmatpush1.bf16.msra.mxu0 0
        %573 = vmatprep.subr.bf16.mxu0 0
        %574 = vmatpush1.bf16.msra.mxu0 0
        %575 = vmatprep.subr.bf16.mxu0 0
        %576 = vmatpush1.bf16.msra.mxu0 0
        %577 = vmatprep.subr.bf16.mxu0 %v515
        %578 = vmatpush1.bf16.msra.mxu0 %v514
        %579 = vmatprep.subr.bf16.mxu0 %v511
        %580 = vmatpush1.bf16.msra.mxu0 %v510
        %581 = vmatprep.subr.bf16.mxu0 0
        %582 = vmatpush2.bf16.msra.mxu0 0
        %583 = vmatprep.subr.bf16.mxu0 0
        %584 = vmatpush2.bf16.msra.mxu0 0
        %585 = vmatprep.subr.bf16.mxu0 0
        %586 = vmatpush2.bf16.msra.mxu0 0
        %587 = vmatprep.subr.bf16.mxu0 0
        %588 = vmatpush2.bf16.msra.mxu0 0
        %589 = vmatprep.subr.bf16.mxu0 0
        %590 = vmatpush2.bf16.msra.mxu0 0
        %591 = vmatprep.subr.bf16.mxu0 0
        %592 = vmatpush2.bf16.msra.mxu0 0
        %593 = vmatprep.subr.bf16.mxu0 0
        %594 = vmatpush2.bf16.msra.mxu0 0
        %595 = vmatprep.subr.bf16.mxu0 0
        %596 = vmatpush2.bf16.msra.mxu0 0
        %597 = vmatprep.mubr.bf16.mxu0 0
        %598 = vmatmul.mubr.bf16.gmra.mxu0 %v392
        %v599 = vpop.f32.mrf.mxu0
        %v600 = vadd.f32 0.0, %v599
        %v601 = vpop.f32.mrf.mxu0
        %v602 = vadd.f32 0.0, %v601
        %v603 = vpop.f32.mrf.mxu0
        %v604 = vpop.f32.mrf.mxu0
        %605 = vdwg.mxu0
        %v606 = vld [vmem:[#allocation8] sm:$0xff]
        %v607 = vld [vmem:[#allocation8 + $0x8] sm:$0xff]
        %v608 = vld [vmem:[#allocation8 + $0x10] sm:$0xff]
        %v609 = vld [vmem:[#allocation8 + $0x18] sm:$0xff]
        %v610 = vld [vmem:[#allocation8 + $0x20] sm:$0xff]
        %v611 = vld [vmem:[#allocation8 + $0x28] sm:$0xff]
        %v612 = vld [vmem:[#allocation8 + $0x30] sm:$0xff]
        %v613 = vld [vmem:[#allocation8 + $0x38] sm:$0xff]
        %v622 = vunpack.c.l.b16 %v606
        %v623 = vunpack.c.h.b16 %v606
        %v624 = vunpack.c.l.b16 %v607
        %v625 = vunpack.c.h.b16 %v607
        %v626 = vunpack.c.l.b16 %v608
        %v627 = vunpack.c.h.b16 %v608
        %v628 = vunpack.c.l.b16 %v609
        %v629 = vunpack.c.h.b16 %v609
        %v630 = vunpack.c.l.b16 %v610
        %v631 = vunpack.c.h.b16 %v610
        %v632 = vunpack.c.l.b16 %v611
        %v633 = vunpack.c.h.b16 %v611
        %v634 = vunpack.c.l.b16 %v612
        %v635 = vunpack.c.h.b16 %v612
        %v636 = vunpack.c.l.b16 %v613
        %v637 = vunpack.c.h.b16 %v613
        %v638 = vpack.c.b16 %v626, %v622
        %v639 = vpack.c.b16 %v627, %v623
        %v640 = vpack.c.b16 %v628, %v624
        %v641 = vpack.c.b16 %v629, %v625
        %v642 = vpack.c.b16 %v634, %v630
        %v643 = vpack.c.b16 %v635, %v631
        %v644 = vpack.c.b16 %v636, %v632
        %v645 = vpack.c.b16 %v637, %v633
        %654 = vmatprep.subr.bf16.mxu0 0
        %655 = vmatpush1.bf16.msra.mxu0 0
        %656 = vmatprep.subr.bf16.mxu0 0
        %657 = vmatpush1.bf16.msra.mxu0 0
        %658 = vmatprep.subr.bf16.mxu0 0
        %659 = vmatpush1.bf16.msra.mxu0 0
        %660 = vmatprep.subr.bf16.mxu0 0
        %661 = vmatpush1.bf16.msra.mxu0 0
        %662 = vmatprep.subr.bf16.mxu0 0
        %663 = vmatpush1.bf16.msra.mxu0 0
        %664 = vmatprep.subr.bf16.mxu0 0
        %665 = vmatpush1.bf16.msra.mxu0 0
        %666 = vmatprep.subr.bf16.mxu0 %v643
        %667 = vmatpush1.bf16.msra.mxu0 %v642
        %668 = vmatprep.subr.bf16.mxu0 %v639
        %669 = vmatpush1.bf16.msra.mxu0 %v638
        %670 = vmatprep.subr.bf16.mxu0 0
        %671 = vmatpush2.bf16.msra.mxu0 0
        %672 = vmatprep.subr.bf16.mxu0 0
        %673 = vmatpush2.bf16.msra.mxu0 0
        %674 = vmatprep.subr.bf16.mxu0 0
        %675 = vmatpush2.bf16.msra.mxu0 0
        %676 = vmatprep.subr.bf16.mxu0 0
        %677 = vmatpush2.bf16.msra.mxu0 0
        %678 = vmatprep.subr.bf16.mxu0 0
        %679 = vmatpush2.bf16.msra.mxu0 0
        %680 = vmatprep.subr.bf16.mxu0 0
        %681 = vmatpush2.bf16.msra.mxu0 0
        %682 = vmatprep.subr.bf16.mxu0 0
        %683 = vmatpush2.bf16.msra.mxu0 0
        %684 = vmatprep.subr.bf16.mxu0 0
        %685 = vmatpush2.bf16.msra.mxu0 0
        %686 = vmatprep.mubr.bf16.mxu0 0
        %687 = vmatmul.mubr.bf16.gmra.mxu0 %v392
        %v688 = vpop.f32.mrf.mxu0
        %v689 = vadd.f32 0.0, %v688
        %v690 = vpop.f32.mrf.mxu0
        %v691 = vadd.f32 0.0, %v690
        %v692 = vpop.f32.mrf.mxu0
        %v693 = vpop.f32.mrf.mxu0
        %694 = vdwg.mxu0
        %695 = vmatprep.subr.bf16.mxu0 0
        %696 = vmatpush1.bf16.msra.mxu0 0
        %697 = vmatprep.subr.bf16.mxu0 0
        %698 = vmatpush1.bf16.msra.mxu0 0
        %699 = vmatprep.subr.bf16.mxu0 0
        %700 = vmatpush1.bf16.msra.mxu0 0
        %701 = vmatprep.subr.bf16.mxu0 0
        %702 = vmatpush1.bf16.msra.mxu0 0
        %703 = vmatprep.subr.bf16.mxu0 0
        %704 = vmatpush1.bf16.msra.mxu0 0
        %705 = vmatprep.subr.bf16.mxu0 0
        %706 = vmatpush1.bf16.msra.mxu0 0
        %707 = vmatprep.subr.bf16.mxu0 %v645
        %708 = vmatpush1.bf16.msra.mxu0 %v644
        %709 = vmatprep.subr.bf16.mxu0 %v641
        %710 = vmatpush1.bf16.msra.mxu0 %v640
        %711 = vmatprep.subr.bf16.mxu0 0
        %712 = vmatpush2.bf16.msra.mxu0 0
        %713 = vmatprep.subr.bf16.mxu0 0
        %714 = vmatpush2.bf16.msra.mxu0 0
        %715 = vmatprep.subr.bf16.mxu0 0
        %716 = vmatpush2.bf16.msra.mxu0 0
        %717 = vmatprep.subr.bf16.mxu0 0
        %718 = vmatpush2.bf16.msra.mxu0 0
        %719 = vmatprep.subr.bf16.mxu0 0
        %720 = vmatpush2.bf16.msra.mxu0 0
        %721 = vmatprep.subr.bf16.mxu0 0
        %722 = vmatpush2.bf16.msra.mxu0 0
        %723 = vmatprep.subr.bf16.mxu0 0
        %724 = vmatpush2.bf16.msra.mxu0 0
        %725 = vmatprep.subr.bf16.mxu0 0
        %726 = vmatpush2.bf16.msra.mxu0 0
        %727 = vmatprep.mubr.bf16.mxu0 0
        %728 = vmatmul.mubr.bf16.gmra.mxu0 %v392
        %v729 = vpop.f32.mrf.mxu0
        %v730 = vadd.f32 0.0, %v729
        %v731 = vpop.f32.mrf.mxu0
        %v732 = vadd.f32 0.0, %v731
        %v733 = vpop.f32.mrf.mxu0
        %v734 = vpop.f32.mrf.mxu0
        %735 = vdwg.mxu0
        %v736 = vld [vmem:[#allocation10] sm:$0xf]
        %v737 = vld [vmem:[#allocation10 + $0x4] sm:$0xf]
        %v738 = vld [vmem:[#allocation10 + $0x8] sm:$0xf]
        %v739 = vld [vmem:[#allocation10 + $0xc] sm:$0xf]
        %v740 = vld [vmem:[#allocation10 + $0x10] sm:$0xf]
        %v741 = vld [vmem:[#allocation10 + $0x14] sm:$0xf]
        %v742 = vld [vmem:[#allocation10 + $0x18] sm:$0xf]
        %v743 = vld [vmem:[#allocation10 + $0x1c] sm:$0xf]
        %v744 = vld [vmem:[#allocation11] sm:$0xff]
        %v745 = vld [vmem:[#allocation11 + $0x8] sm:$0xff]
        %v746 = vld [vmem:[#allocation11 + $0x10] sm:$0xff]
        %v747 = vld [vmem:[#allocation11 + $0x18] sm:$0xff]
        %v748 = vld [vmem:[#allocation11 + $0x20] sm:$0xff]
        %v749 = vld [vmem:[#allocation11 + $0x28] sm:$0xff]
        %v750 = vld [vmem:[#allocation11 + $0x30] sm:$0xff]
        %v751 = vld [vmem:[#allocation11 + $0x38] sm:$0xff]
        %v752 = vld [vmem:[#allocation11 + $0x40] sm:$0xff]
        %v753 = vld [vmem:[#allocation11 + $0x48] sm:$0xff]
        %v754 = vld [vmem:[#allocation11 + $0x50] sm:$0xff]
        %v755 = vld [vmem:[#allocation11 + $0x58] sm:$0xff]
        %v756 = vld [vmem:[#allocation11 + $0x60] sm:$0xff]
        %v757 = vld [vmem:[#allocation11 + $0x68] sm:$0xff]
        %v758 = vld [vmem:[#allocation11 + $0x70] sm:$0xff]
        %v759 = vld [vmem:[#allocation11 + $0x78] sm:$0xff]
        %v760 = vld [vmem:[#allocation11 + $0x80] sm:$0xff]
        %v761 = vld [vmem:[#allocation11 + $0x88] sm:$0xff]
        %v762 = vld [vmem:[#allocation11 + $0x90] sm:$0xff]
        %v763 = vld [vmem:[#allocation11 + $0x98] sm:$0xff]
        %v764 = vld [vmem:[#allocation11 + $0xa0] sm:$0xff]
        %v765 = vld [vmem:[#allocation11 + $0xa8] sm:$0xff]
        %v766 = vld [vmem:[#allocation11 + $0xb0] sm:$0xff]
        %v767 = vld [vmem:[#allocation11 + $0xb8] sm:$0xff]
        %v768 = vld [vmem:[#allocation11 + $0xc0] sm:$0xff]
        %v769 = vld [vmem:[#allocation11 + $0xc8] sm:$0xff]
        %v770 = vld [vmem:[#allocation11 + $0xd0] sm:$0xff]
        %v771 = vld [vmem:[#allocation11 + $0xd8] sm:$0xff]
        %v772 = vld [vmem:[#allocation11 + $0xe0] sm:$0xff]
        %v773 = vld [vmem:[#allocation11 + $0xe8] sm:$0xff]
        %v774 = vld [vmem:[#allocation11 + $0xf0] sm:$0xff]
        %v775 = vld [vmem:[#allocation11 + $0xf8] sm:$0xff]
        %v776 = vlaneseq
        %v777 = vshrl.u32 %v776, 7
        %v778 = vsub.s32 7, %v777
        %v779 = vand.u32 %v778, 1
        %vm780 = vcmp.eq.s32.totalorder %v779, 1
        %v781 = vshra.s32 %v778, 1
        %v782 = vand.u32 %v781, 1
        %vm783 = vcmp.eq.s32.totalorder %v782, 1
        %v784 = vshra.s32 %v778, 2
        %v785 = vand.u32 %v784, 1
        %vm786 = vcmp.eq.s32.totalorder %v785, 1
        %v787 = vpack.c.bf16 %v429, %v429
        %v788 = vpack.c.bf16 %v559, %v559
        %v789 = vpack.c.bf16 %v689, %v689
        %v798 = vunpack.c.l.b16 %v736
        %v799 = vunpack.c.l.b16 %v737
        %v800 = vunpack.c.l.b16 %v738
        %v801 = vunpack.c.l.b16 %v739
        %v802 = vunpack.c.l.b16 %v740
        %v803 = vunpack.c.l.b16 %v741
        %v804 = vunpack.c.l.b16 %v742
        %v805 = vunpack.c.l.b16 %v743
        %v806 = vpack.c.b16 %v799, %v798
        %v807 = vpack.c.b16 %v801, %v800
        %v808 = vpack.c.b16 %v803, %v802
        %v809 = vpack.c.b16 %v805, %v804
        %vm814 = vcmask 523264
        %v816 = vsel %vm814, %v787, 0
        %818 = vmatprep.subr.bf16.mxu0 0
        %819 = vmatpush1.bf16.msra.mxu0 0
        %820 = vmatprep.subr.bf16.mxu0 0
        %821 = vmatpush1.bf16.msra.mxu0 0
        %822 = vmatprep.subr.bf16.mxu0 0
        %823 = vmatpush1.bf16.msra.mxu0 0
        %824 = vmatprep.subr.bf16.mxu0 0
        %825 = vmatpush1.bf16.msra.mxu0 0
        %826 = vmatprep.subr.bf16.mxu0 0
        %827 = vmatpush1.bf16.msra.mxu0 %v809
        %828 = vmatprep.subr.bf16.mxu0 0
        %829 = vmatpush1.bf16.msra.mxu0 %v808
        %830 = vmatprep.subr.bf16.mxu0 0
        %831 = vmatpush1.bf16.msra.mxu0 %v807
        %832 = vmatprep.subr.bf16.mxu0 0
        %833 = vmatpush1.bf16.msra.mxu0 %v806
        %834 = vmatprep.subr.bf16.mxu0 0
        %835 = vmatpush2.bf16.msra.mxu0 0
        %836 = vmatprep.subr.bf16.mxu0 0
        %837 = vmatpush2.bf16.msra.mxu0 0
        %838 = vmatprep.subr.bf16.mxu0 0
        %839 = vmatpush2.bf16.msra.mxu0 0
        %840 = vmatprep.subr.bf16.mxu0 0
        %841 = vmatpush2.bf16.msra.mxu0 0
        %842 = vmatprep.subr.bf16.mxu0 0
        %843 = vmatpush2.bf16.msra.mxu0 0
        %844 = vmatprep.subr.bf16.mxu0 0
        %845 = vmatpush2.bf16.msra.mxu0 0
        %846 = vmatprep.subr.bf16.mxu0 0
        %847 = vmatpush2.bf16.msra.mxu0 0
        %848 = vmatprep.subr.bf16.mxu0 0
        %849 = vmatpush2.bf16.msra.mxu0 0
        %850 = vmatprep.mubr.bf16.mxu0 0
        %851 = vmatmul.mubr.bf16.gmra.mxu0 %v816
        %v852 = vpop.f32.mrf.mxu0
        %v853 = vadd.f32 0.0, %v852
        %v854 = vpop.f32.mrf.mxu0
        %v855 = vpop.f32.mrf.mxu0
        %v856 = vpop.f32.mrf.mxu0
        %857 = vdwg.mxu0
        %859 = vrot.lane.b32.xlu0 %v853, 127
        %v860 = vpop.permute.xlu0 %859
        %v862 = vsel %vm780, %v860, %v853
        %864 = vrot.lane.b32.xlu0 %v862, 126
        %v865 = vpop.permute.xlu0 %864
        %v867 = vsel %vm783, %v865, %v862
        %869 = vrot.lane.b32.xlu0 %v867, 124
        %v870 = vpop.permute.xlu0 %869
        %v872 = vsel %vm786, %v870, %v867
        %v874 = vsel %vm814, %v788, 0
        %876 = vmatprep.subr.bf16.mxu0 0
        %877 = vmatpush1.bf16.xpose.msra.mxu0 0
        %878 = vmatprep.subr.bf16.mxu0 0
        %879 = vmatpush1.bf16.xpose.msra.mxu0 0
        %880 = vmatprep.subr.bf16.mxu0 0
        %881 = vmatpush1.bf16.xpose.msra.mxu0 0
        %882 = vmatprep.subr.bf16.mxu0 0
        %883 = vmatpush1.bf16.xpose.msra.mxu0 0
        %884 = vmatprep.subr.bf16.mxu0 0
        %885 = vmatpush1.bf16.xpose.msra.mxu0 0
        %886 = vmatprep.subr.bf16.mxu0 0
        %887 = vmatpush1.bf16.xpose.msra.mxu0 0
        %888 = vmatprep.subr.bf16.mxu0 0
        %889 = vmatpush1.bf16.xpose.msra.mxu0 0
        %890 = vmatprep.subr.bf16.mxu0 0
        %891 = vmatpush1.bf16.xpose.msra.mxu0 %v874
        %892 = vmatprep.subr.bf16.mxu0 0
        %893 = vmatpush2.bf16.xpose.msra.mxu0 0
        %894 = vmatprep.subr.bf16.mxu0 0
        %895 = vmatpush2.bf16.xpose.msra.mxu0 0
        %896 = vmatprep.subr.bf16.mxu0 0
        %897 = vmatpush2.bf16.xpose.msra.mxu0 0
        %898 = vmatprep.subr.bf16.mxu0 0
        %899 = vmatpush2.bf16.xpose.msra.mxu0 0
        %900 = vmatprep.subr.bf16.mxu0 0
        %901 = vmatpush2.bf16.xpose.msra.mxu0 0
        %902 = vmatprep.subr.bf16.mxu0 0
        %903 = vmatpush2.bf16.xpose.msra.mxu0 0
        %904 = vmatprep.subr.bf16.mxu0 0
        %905 = vmatpush2.bf16.xpose.msra.mxu0 0
        %906 = vmatprep.subr.bf16.mxu0 0
        %907 = vmatpush2.bf16.xpose.msra.mxu0 0
        %908 = vmatprep.mubr.bf16.mxu0 0
        %909 = vmatmul.mubr.bf16.gmra.mxu0 %v816
        %v910 = vpop.f32.mrf.mxu0
        %v911 = vadd.f32 %v872, %v910
        %v912 = vpop.f32.mrf.mxu0
        %v913 = vpop.f32.mrf.mxu0
        %v914 = vpop.f32.mrf.mxu0
        %915 = vdwg.mxu0
        %vm916 = vcmask 64512
        %v917 = vsel %vm916, %v911, -inf
        %918 = vmax.xlane.f32.xlu0 %v917
        %v919 = vpop.xlane.xlu0 %918
        %v920 = vsub.f32 %v911, %v919
        %v921 = vmul.f32 %v920, 1.442695
        %v922 = vpow.pop %v921
        %v923 = vsel %vm916, %v922, 0.0
        %924 = vadd.xlane.f32.xlu0 %v923
        %v925 = vpop.xlane.xlu0 %924
        %v926 = vrcp.pop %v925
        %v927 = vmul.f32 %v922, %v926
        %v928 = vsel %vm916, %v927, 0.0
        %930 = vrot.lane.b32.xlu0 %v928, 1
        %v931 = vpop.permute.xlu0 %930
        %v933 = vsel %vm780, %v931, %v928
        %935 = vrot.lane.b32.xlu0 %v933, 2
        %v936 = vpop.permute.xlu0 %935
        %v938 = vsel %vm783, %v936, %v933
        %940 = vrot.lane.b32.xlu0 %v938, 4
        %v941 = vpop.permute.xlu0 %940
        %v943 = vsel %vm786, %v941, %v938
        %v944 = vpack.c.bf16 %v943, %v943
        %v945 = vpack.c.bf16 %v927, %v927
        %v962 = vunpack.c.l.b16 %v744
        %v963 = vunpack.c.l.b16 %v746
        %v964 = vunpack.c.l.b16 %v748
        %v965 = vunpack.c.l.b16 %v750
        %v966 = vunpack.c.l.b16 %v752
        %v967 = vunpack.c.l.b16 %v754
        %v968 = vunpack.c.l.b16 %v756
        %v969 = vunpack.c.l.b16 %v758
        %v970 = vunpack.c.l.b16 %v760
        %v971 = vunpack.c.l.b16 %v762
        %v972 = vunpack.c.l.b16 %v764
        %v973 = vunpack.c.l.b16 %v766
        %v974 = vunpack.c.l.b16 %v768
        %v975 = vunpack.c.l.b16 %v770
        %v976 = vunpack.c.l.b16 %v772
        %v977 = vunpack.c.l.b16 %v774
        %v978 = vpack.c.b16 %v963, %v962
        %v979 = vpack.c.b16 %v965, %v964
        %v980 = vpack.c.b16 %v967, %v966
        %v981 = vpack.c.b16 %v969, %v968
        %v982 = vpack.c.b16 %v971, %v970
        %v983 = vpack.c.b16 %v973, %v972
        %v984 = vpack.c.b16 %v975, %v974
        %v985 = vpack.c.b16 %v977, %v976
        %994 = vmatprep.subr.bf16.mxu0 0
        %995 = vmatpush1.bf16.msra.mxu0 %v985
        %996 = vmatprep.subr.bf16.mxu0 0
        %997 = vmatpush1.bf16.msra.mxu0 %v984
        %998 = vmatprep.subr.bf16.mxu0 0
        %999 = vmatpush1.bf16.msra.mxu0 %v983
        %1000 = vmatprep.subr.bf16.mxu0 0
        %1001 = vmatpush1.bf16.msra.mxu0 %v982
        %1002 = vmatprep.subr.bf16.mxu0 0
        %1003 = vmatpush1.bf16.msra.mxu0 %v981
        %1004 = vmatprep.subr.bf16.mxu0 0
        %1005 = vmatpush1.bf16.msra.mxu0 %v980
        %1006 = vmatprep.subr.bf16.mxu0 0
        %1007 = vmatpush1.bf16.msra.mxu0 %v979
        %1008 = vmatprep.subr.bf16.mxu0 0
        %1009 = vmatpush1.bf16.msra.mxu0 %v978
        %1010 = vmatprep.subr.bf16.mxu0 0
        %1011 = vmatpush2.bf16.msra.mxu0 0
        %1012 = vmatprep.subr.bf16.mxu0 0
        %1013 = vmatpush2.bf16.msra.mxu0 0
        %1014 = vmatprep.subr.bf16.mxu0 0
        %1015 = vmatpush2.bf16.msra.mxu0 0
        %1016 = vmatprep.subr.bf16.mxu0 0
        %1017 = vmatpush2.bf16.msra.mxu0 0
        %1018 = vmatprep.subr.bf16.mxu0 0
        %1019 = vmatpush2.bf16.msra.mxu0 0
        %1020 = vmatprep.subr.bf16.mxu0 0
        %1021 = vmatpush2.bf16.msra.mxu0 0
        %1022 = vmatprep.subr.bf16.mxu0 0
        %1023 = vmatpush2.bf16.msra.mxu0 0
        %1024 = vmatprep.subr.bf16.mxu0 0
        %1025 = vmatpush2.bf16.msra.mxu0 0
        %1026 = vmatprep.mubr.bf16.mxu0 0
        %1027 = vmatmul.mubr.bf16.gmra.mxu0 %v944
        %v1028 = vpop.f32.mrf.mxu0
        %v1029 = vadd.f32 0.0, %v1028
        %v1030 = vpop.f32.mrf.mxu0
        %v1031 = vpop.f32.mrf.mxu0
        %v1032 = vpop.f32.mrf.mxu0
        %1033 = vdwg.mxu0
        %v1035 = vsel %vm916, %v945, 0
        %vm1037 = vcmask 1043456
        %v1039 = vsel %vm1037, %v789, 0
        %1041 = vmatprep.subr.bf16.mxu0 0
        %1042 = vmatpush1.bf16.msra.mxu0 0
        %1043 = vmatprep.subr.bf16.mxu0 0
        %1044 = vmatpush1.bf16.msra.mxu0 0
        %1045 = vmatprep.subr.bf16.mxu0 0
        %1046 = vmatpush1.bf16.msra.mxu0 0
        %1047 = vmatprep.subr.bf16.mxu0 0
        %1048 = vmatpush1.bf16.msra.mxu0 0
        %1049 = vmatprep.subr.bf16.mxu0 0
        %1050 = vmatpush1.bf16.msra.mxu0 0
        %1051 = vmatprep.subr.bf16.mxu0 0
        %1052 = vmatpush1.bf16.msra.mxu0 0
        %1053 = vmatprep.subr.bf16.mxu0 0
        %1054 = vmatpush1.bf16.msra.mxu0 0
        %1055 = vmatprep.subr.bf16.mxu0 0
        %1056 = vmatpush1.bf16.msra.mxu0 %v1039
        %1057 = vmatprep.subr.bf16.mxu0 0
        %1058 = vmatpush2.bf16.msra.mxu0 0
        %1059 = vmatprep.subr.bf16.mxu0 0
        %1060 = vmatpush2.bf16.msra.mxu0 0
        %1061 = vmatprep.subr.bf16.mxu0 0
        %1062 = vmatpush2.bf16.msra.mxu0 0
        %1063 = vmatprep.subr.bf16.mxu0 0
        %1064 = vmatpush2.bf16.msra.mxu0 0
        %1065 = vmatprep.subr.bf16.mxu0 0
        %1066 = vmatpush2.bf16.msra.mxu0 0
        %1067 = vmatprep.subr.bf16.mxu0 0
        %1068 = vmatpush2.bf16.msra.mxu0 0
        %1069 = vmatprep.subr.bf16.mxu0 0
        %1070 = vmatpush2.bf16.msra.mxu0 0
        %1071 = vmatprep.subr.bf16.mxu0 0
        %1072 = vmatpush2.bf16.msra.mxu0 0
        %1073 = vmatprep.mubr.bf16.mxu0 0
        %1074 = vmatmul.mubr.bf16.gmra.mxu0 %v1035
        %v1075 = vpop.f32.mrf.mxu0
        %v1076 = vadd.f32 %v1029, %v1075
        %v1077 = vpop.f32.mrf.mxu0
        %v1078 = vpop.f32.mrf.mxu0
        %v1079 = vpop.f32.mrf.mxu0
        %1080 = vdwg.mxu0
        %v1081 = vadd.f32 %v1076, 0.0
        %1083 = vrot.lane.b32.xlu0 %v787, 64
        %v1084 = vpop.permute.xlu0 %1083
        %v1086 = vsel %vm814, %v1084, 0
        %1088 = vmatprep.subr.bf16.mxu0 0
        %1089 = vmatpush1.bf16.msra.mxu0 0
        %1090 = vmatprep.subr.bf16.mxu0 0
        %1091 = vmatpush1.bf16.msra.mxu0 0
        %1092 = vmatprep.subr.bf16.mxu0 0
        %1093 = vmatpush1.bf16.msra.mxu0 0
        %1094 = vmatprep.subr.bf16.mxu0 0
        %1095 = vmatpush1.bf16.msra.mxu0 0
        %1096 = vmatprep.subr.bf16.mxu0 0
        %1097 = vmatpush1.bf16.msra.mxu0 %v809
        %1098 = vmatprep.subr.bf16.mxu0 0
        %1099 = vmatpush1.bf16.msra.mxu0 %v808
        %1100 = vmatprep.subr.bf16.mxu0 0
        %1101 = vmatpush1.bf16.msra.mxu0 %v807
        %1102 = vmatprep.subr.bf16.mxu0 0
        %1103 = vmatpush1.bf16.msra.mxu0 %v806
        %1104 = vmatprep.subr.bf16.mxu0 0
        %1105 = vmatpush2.bf16.msra.mxu0 0
        %1106 = vmatprep.subr.bf16.mxu0 0
        %1107 = vmatpush2.bf16.msra.mxu0 0
        %1108 = vmatprep.subr.bf16.mxu0 0
        %1109 = vmatpush2.bf16.msra.mxu0 0
        %1110 = vmatprep.subr.bf16.mxu0 0
        %1111 = vmatpush2.bf16.msra.mxu0 0
        %1112 = vmatprep.subr.bf16.mxu0 0
        %1113 = vmatpush2.bf16.msra.mxu0 0
        %1114 = vmatprep.subr.bf16.mxu0 0
        %1115 = vmatpush2.bf16.msra.mxu0 0
        %1116 = vmatprep.subr.bf16.mxu0 0
        %1117 = vmatpush2.bf16.msra.mxu0 0
        %1118 = vmatprep.subr.bf16.mxu0 0
        %1119 = vmatpush2.bf16.msra.mxu0 0
        %1120 = vmatprep.mubr.bf16.mxu0 0
        %1121 = vmatmul.mubr.bf16.gmra.mxu0 %v1086
        %v1122 = vpop.f32.mrf.mxu0
        %v1123 = vadd.f32 0.0, %v1122
        %v1124 = vpop.f32.mrf.mxu0
        %v1125 = vpop.f32.mrf.mxu0
        %v1126 = vpop.f32.mrf.mxu0
        %1127 = vdwg.mxu0
        %1129 = vrot.lane.b32.xlu0 %v1123, 127
        %v1130 = vpop.permute.xlu0 %1129
        %v1132 = vsel %vm780, %v1130, %v1123
        %1134 = vrot.lane.b32.xlu0 %v1132, 126
        %v1135 = vpop.permute.xlu0 %1134
        %v1137 = vsel %vm783, %v1135, %v1132
        %1139 = vrot.lane.b32.xlu0 %v1137, 124
        %v1140 = vpop.permute.xlu0 %1139
        %v1142 = vsel %vm786, %v1140, %v1137
        %1144 = vrot.lane.b32.xlu0 %v788, 64
        %v1145 = vpop.permute.xlu0 %1144
        %v1147 = vsel %vm814, %v1145, 0
        %1149 = vmatprep.subr.bf16.mxu0 0
        %1150 = vmatpush1.bf16.xpose.msra.mxu0 0
        %1151 = vmatprep.subr.bf16.mxu0 0
        %1152 = vmatpush1.bf16.xpose.msra.mxu0 0
        %1153 = vmatprep.subr.bf16.mxu0 0
        %1154 = vmatpush1.bf16.xpose.msra.mxu0 0
        %1155 = vmatprep.subr.bf16.mxu0 0
        %1156 = vmatpush1.bf16.xpose.msra.mxu0 0
        %1157 = vmatprep.subr.bf16.mxu0 0
        %1158 = vmatpush1.bf16.xpose.msra.mxu0 0
        %1159 = vmatprep.subr.bf16.mxu0 0
        %1160 = vmatpush1.bf16.xpose.msra.mxu0 0
        %1161 = vmatprep.subr.bf16.mxu0 0
        %1162 = vmatpush1.bf16.xpose.msra.mxu0 0
        %1163 = vmatprep.subr.bf16.mxu0 0
        %1164 = vmatpush1.bf16.xpose.msra.mxu0 %v1147
        %1165 = vmatprep.subr.bf16.mxu0 0
        %1166 = vmatpush2.bf16.xpose.msra.mxu0 0
        %1167 = vmatprep.subr.bf16.mxu0 0
        %1168 = vmatpush2.bf16.xpose.msra.mxu0 0
        %1169 = vmatprep.subr.bf16.mxu0 0
        %1170 = vmatpush2.bf16.xpose.msra.mxu0 0
        %1171 = vmatprep.subr.bf16.mxu0 0
        %1172 = vmatpush2.bf16.xpose.msra.mxu0 0
        %1173 = vmatprep.subr.bf16.mxu0 0
        %1174 = vmatpush2.bf16.xpose.msra.mxu0 0
        %1175 = vmatprep.subr.bf16.mxu0 0
        %1176 = vmatpush2.bf16.xpose.msra.mxu0 0
        %1177 = vmatprep.subr.bf16.mxu0 0
        %1178 = vmatpush2.bf16.xpose.msra.mxu0 0
        %1179 = vmatprep.subr.bf16.mxu0 0
        %1180 = vmatpush2.bf16.xpose.msra.mxu0 0
        %1181 = vmatprep.mubr.bf16.mxu0 0
        %1182 = vmatmul.mubr.bf16.gmra.mxu0 %v1086
        %v1183 = vpop.f32.mrf.mxu0
        %v1184 = vadd.f32 %v1142, %v1183
        %v1185 = vpop.f32.mrf.mxu0
        %v1186 = vpop.f32.mrf.mxu0
        %v1187 = vpop.f32.mrf.mxu0
        %1188 = vdwg.mxu0
        %v1189 = vsel %vm916, %v1184, -inf
        %1190 = vmax.xlane.f32.xlu0 %v1189
        %v1191 = vpop.xlane.xlu0 %1190
        %v1192 = vsub.f32 %v1184, %v1191
        %v1193 = vmul.f32 %v1192, 1.442695
        %v1194 = vpow.pop %v1193
        %v1195 = vsel %vm916, %v1194, 0.0
        %1196 = vadd.xlane.f32.xlu0 %v1195
        %v1197 = vpop.xlane.xlu0 %1196
        %v1198 = vrcp.pop %v1197
        %v1199 = vmul.f32 %v1194, %v1198
        %v1200 = vsel %vm916, %v1199, 0.0
        %1202 = vrot.lane.b32.xlu0 %v1200, 1
        %v1203 = vpop.permute.xlu0 %1202
        %v1205 = vsel %vm780, %v1203, %v1200
        %1207 = vrot.lane.b32.xlu0 %v1205, 2
        %v1208 = vpop.permute.xlu0 %1207
        %v1210 = vsel %vm783, %v1208, %v1205
        %1212 = vrot.lane.b32.xlu0 %v1210, 4
        %v1213 = vpop.permute.xlu0 %1212
        %v1215 = vsel %vm786, %v1213, %v1210
        %v1216 = vpack.c.bf16 %v1215, %v1215
        %v1217 = vpack.c.bf16 %v1199, %v1199
        %1218 = vrot.lane.b32.xlu0 %v978, 64
        %v1219 = vpop.permute.xlu0 %1218
        %1220 = vrot.lane.b32.xlu0 %v979, 64
        %v1221 = vpop.permute.xlu0 %1220
        %1222 = vrot.lane.b32.xlu0 %v980, 64
        %v1223 = vpop.permute.xlu0 %1222
        %1224 = vrot.lane.b32.xlu0 %v981, 64
        %v1225 = vpop.permute.xlu0 %1224
        %1226 = vrot.lane.b32.xlu0 %v982, 64
        %v1227 = vpop.permute.xlu0 %1226
        %1228 = vrot.lane.b32.xlu0 %v983, 64
        %v1229 = vpop.permute.xlu0 %1228
        %1230 = vrot.lane.b32.xlu0 %v984, 64
        %v1231 = vpop.permute.xlu0 %1230
        %1232 = vrot.lane.b32.xlu0 %v985, 64
        %v1233 = vpop.permute.xlu0 %1232
        %1242 = vmatprep.subr.bf16.mxu0 0
        %1243 = vmatpush1.bf16.msra.mxu0 %v1233
        %1244 = vmatprep.subr.bf16.mxu0 0
        %1245 = vmatpush1.bf16.msra.mxu0 %v1231
        %1246 = vmatprep.subr.bf16.mxu0 0
        %1247 = vmatpush1.bf16.msra.mxu0 %v1229
        %1248 = vmatprep.subr.bf16.mxu0 0
        %1249 = vmatpush1.bf16.msra.mxu0 %v1227
        %1250 = vmatprep.subr.bf16.mxu0 0
        %1251 = vmatpush1.bf16.msra.mxu0 %v1225
        %1252 = vmatprep.subr.bf16.mxu0 0
        %1253 = vmatpush1.bf16.msra.mxu0 %v1223
        %1254 = vmatprep.subr.bf16.mxu0 0
        %1255 = vmatpush1.bf16.msra.mxu0 %v1221
        %1256 = vmatprep.subr.bf16.mxu0 0
        %1257 = vmatpush1.bf16.msra.mxu0 %v1219
        %1258 = vmatprep.subr.bf16.mxu0 0
        %1259 = vmatpush2.bf16.msra.mxu0 0
        %1260 = vmatprep.subr.bf16.mxu0 0
        %1261 = vmatpush2.bf16.msra.mxu0 0
        %1262 = vmatprep.subr.bf16.mxu0 0
        %1263 = vmatpush2.bf16.msra.mxu0 0
        %1264 = vmatprep.subr.bf16.mxu0 0
        %1265 = vmatpush2.bf16.msra.mxu0 0
        %1266 = vmatprep.subr.bf16.mxu0 0
        %1267 = vmatpush2.bf16.msra.mxu0 0
        %1268 = vmatprep.subr.bf16.mxu0 0
        %1269 = vmatpush2.bf16.msra.mxu0 0
        %1270 = vmatprep.subr.bf16.mxu0 0
        %1271 = vmatpush2.bf16.msra.mxu0 0
        %1272 = vmatprep.subr.bf16.mxu0 0
        %1273 = vmatpush2.bf16.msra.mxu0 0
        %1274 = vmatprep.mubr.bf16.mxu0 0
        %1275 = vmatmul.mubr.bf16.gmra.mxu0 %v1216
        %v1276 = vpop.f32.mrf.mxu0
        %v1277 = vadd.f32 0.0, %v1276
        %v1278 = vpop.f32.mrf.mxu0
        %v1279 = vpop.f32.mrf.mxu0
        %v1280 = vpop.f32.mrf.mxu0
        %1281 = vdwg.mxu0
        %1283 = vrot.lane.b32.xlu0 %v789, 64
        %v1284 = vpop.permute.xlu0 %1283
        %v1286 = vsel %vm916, %v1217, 0
        %v1289 = vsel %vm1037, %v1284, 0
        %1291 = vmatprep.subr.bf16.mxu0 0
        %1292 = vmatpush1.bf16.msra.mxu0 0
        %1293 = vmatprep.subr.bf16.mxu0 0
        %1294 = vmatpush1.bf16.msra.mxu0 0
        %1295 = vmatprep.subr.bf16.mxu0 0
        %1296 = vmatpush1.bf16.msra.mxu0 0
        %1297 = vmatprep.subr.bf16.mxu0 0
        %1298 = vmatpush1.bf16.msra.mxu0 0
        %1299 = vmatprep.subr.bf16.mxu0 0
        %1300 = vmatpush1.bf16.msra.mxu0 0
        %1301 = vmatprep.subr.bf16.mxu0 0
        %1302 = vmatpush1.bf16.msra.mxu0 0
        %1303 = vmatprep.subr.bf16.mxu0 0
        %1304 = vmatpush1.bf16.msra.mxu0 0
        %1305 = vmatprep.subr.bf16.mxu0 0
        %1306 = vmatpush1.bf16.msra.mxu0 %v1289
        %1307 = vmatprep.subr.bf16.mxu0 0
        %1308 = vmatpush2.bf16.msra.mxu0 0
        %1309 = vmatprep.subr.bf16.mxu0 0
        %1310 = vmatpush2.bf16.msra.mxu0 0
        %1311 = vmatprep.subr.bf16.mxu0 0
        %1312 = vmatpush2.bf16.msra.mxu0 0
        %1313 = vmatprep.subr.bf16.mxu0 0
        %1314 = vmatpush2.bf16.msra.mxu0 0
        %1315 = vmatprep.subr.bf16.mxu0 0
        %1316 = vmatpush2.bf16.msra.mxu0 0
        %1317 = vmatprep.subr.bf16.mxu0 0
        %1318 = vmatpush2.bf16.msra.mxu0 0
        %1319 = vmatprep.subr.bf16.mxu0 0
        %1320 = vmatpush2.bf16.msra.mxu0 0
        %1321 = vmatprep.subr.bf16.mxu0 0
        %1322 = vmatpush2.bf16.msra.mxu0 0
        %1323 = vmatprep.mubr.bf16.mxu0 0
        %1324 = vmatmul.mubr.bf16.gmra.mxu0 %v1286
        %v1325 = vpop.f32.mrf.mxu0
        %v1326 = vadd.f32 %v1277, %v1325
        %v1327 = vpop.f32.mrf.mxu0
        %v1328 = vpop.f32.mrf.mxu0
        %v1329 = vpop.f32.mrf.mxu0
        %1330 = vdwg.mxu0
        %v1331 = vadd.f32 %v1081, %v1326
        %v1332 = vpack.c.bf16 %v431, %v431
        %v1333 = vpack.c.bf16 %v561, %v561
        %v1334 = vpack.c.bf16 %v691, %v691
        %v1336 = vsel %vm814, %v1332, 0
        %1338 = vmatprep.subr.bf16.mxu0 0
        %1339 = vmatpush1.bf16.msra.mxu0 0
        %1340 = vmatprep.subr.bf16.mxu0 0
        %1341 = vmatpush1.bf16.msra.mxu0 0
        %1342 = vmatprep.subr.bf16.mxu0 0
        %1343 = vmatpush1.bf16.msra.mxu0 0
        %1344 = vmatprep.subr.bf16.mxu0 0
        %1345 = vmatpush1.bf16.msra.mxu0 0
        %1346 = vmatprep.subr.bf16.mxu0 0
        %1347 = vmatpush1.bf16.msra.mxu0 %v809
        %1348 = vmatprep.subr.bf16.mxu0 0
        %1349 = vmatpush1.bf16.msra.mxu0 %v808
        %1350 = vmatprep.subr.bf16.mxu0 0
        %1351 = vmatpush1.bf16.msra.mxu0 %v807
        %1352 = vmatprep.subr.bf16.mxu0 0
        %1353 = vmatpush1.bf16.msra.mxu0 %v806
        %1354 = vmatprep.subr.bf16.mxu0 0
        %1355 = vmatpush2.bf16.msra.mxu0 0
        %1356 = vmatprep.subr.bf16.mxu0 0
        %1357 = vmatpush2.bf16.msra.mxu0 0
        %1358 = vmatprep.subr.bf16.mxu0 0
        %1359 = vmatpush2.bf16.msra.mxu0 0
        %1360 = vmatprep.subr.bf16.mxu0 0
        %1361 = vmatpush2.bf16.msra.mxu0 0
        %1362 = vmatprep.subr.bf16.mxu0 0
        %1363 = vmatpush2.bf16.msra.mxu0 0
        %1364 = vmatprep.subr.bf16.mxu0 0
        %1365 = vmatpush2.bf16.msra.mxu0 0
        %1366 = vmatprep.subr.bf16.mxu0 0
        %1367 = vmatpush2.bf16.msra.mxu0 0
        %1368 = vmatprep.subr.bf16.mxu0 0
        %1369 = vmatpush2.bf16.msra.mxu0 0
        %1370 = vmatprep.mubr.bf16.mxu0 0
        %1371 = vmatmul.mubr.bf16.gmra.mxu0 %v1336
        %v1372 = vpop.f32.mrf.mxu0
        %v1373 = vadd.f32 0.0, %v1372
        %v1374 = vpop.f32.mrf.mxu0
        %v1375 = vpop.f32.mrf.mxu0
        %v1376 = vpop.f32.mrf.mxu0
        %1377 = vdwg.mxu0
        %1379 = vrot.lane.b32.xlu0 %v1373, 127
        %v1380 = vpop.permute.xlu0 %1379
        %v1382 = vsel %vm780, %v1380, %v1373
        %1384 = vrot.lane.b32.xlu0 %v1382, 126
        %v1385 = vpop.permute.xlu0 %1384
        %v1387 = vsel %vm783, %v1385, %v1382
        %1389 = vrot.lane.b32.xlu0 %v1387, 124
        %v1390 = vpop.permute.xlu0 %1389
        %v1392 = vsel %vm786, %v1390, %v1387
        %v1394 = vsel %vm814, %v1333, 0
        %1396 = vmatprep.subr.bf16.mxu0 0
        %1397 = vmatpush1.bf16.xpose.msra.mxu0 0
        %1398 = vmatprep.subr.bf16.mxu0 0
        %1399 = vmatpush1.bf16.xpose.msra.mxu0 0
        %1400 = vmatprep.subr.bf16.mxu0 0
        %1401 = vmatpush1.bf16.xpose.msra.mxu0 0
        %1402 = vmatprep.subr.bf16.mxu0 0
        %1403 = vmatpush1.bf16.xpose.msra.mxu0 0
        %1404 = vmatprep.subr.bf16.mxu0 0
        %1405 = vmatpush1.bf16.xpose.msra.mxu0 0
        %1406 = vmatprep.subr.bf16.mxu0 0
        %1407 = vmatpush1.bf16.xpose.msra.mxu0 0
        %1408 = vmatprep.subr.bf16.mxu0 0
        %1409 = vmatpush1.bf16.xpose.msra.mxu0 0
        %1410 = vmatprep.subr.bf16.mxu0 0
        %1411 = vmatpush1.bf16.xpose.msra.mxu0 %v1394
        %1412 = vmatprep.subr.bf16.mxu0 0
        %1413 = vmatpush2.bf16.xpose.msra.mxu0 0
        %1414 = vmatprep.subr.bf16.mxu0 0
        %1415 = vmatpush2.bf16.xpose.msra.mxu0 0
        %1416 = vmatprep.subr.bf16.mxu0 0
        %1417 = vmatpush2.bf16.xpose.msra.mxu0 0
        %1418 = vmatprep.subr.bf16.mxu0 0
        %1419 = vmatpush2.bf16.xpose.msra.mxu0 0
        %1420 = vmatprep.subr.bf16.mxu0 0
        %1421 = vmatpush2.bf16.xpose.msra.mxu0 0
        %1422 = vmatprep.subr.bf16.mxu0 0
        %1423 = vmatpush2.bf16.xpose.msra.mxu0 0
        %1424 = vmatprep.subr.bf16.mxu0 0
        %1425 = vmatpush2.bf16.xpose.msra.mxu0 0
        %1426 = vmatprep.subr.bf16.mxu0 0
        %1427 = vmatpush2.bf16.xpose.msra.mxu0 0
        %1428 = vmatprep.mubr.bf16.mxu0 0
        %1429 = vmatmul.mubr.bf16.gmra.mxu0 %v1336
        %v1430 = vpop.f32.mrf.mxu0
        %v1431 = vadd.f32 %v1392, %v1430
        %v1432 = vpop.f32.mrf.mxu0
        %v1433 = vpop.f32.mrf.mxu0
        %v1434 = vpop.f32.mrf.mxu0
        %1435 = vdwg.mxu0
        %v1436 = vsel %vm916, %v1431, -inf
        %1437 = vmax.xlane.f32.xlu0 %v1436
        %v1438 = vpop.xlane.xlu0 %1437
        %v1439 = vsub.f32 %v1431, %v1438
        %v1440 = vmul.f32 %v1439, 1.442695
        %v1441 = vpow.pop %v1440
        %v1442 = vsel %vm916, %v1441, 0.0
        %1443 = vadd.xlane.f32.xlu0 %v1442
        %v1444 = vpop.xlane.xlu0 %1443
        %v1445 = vrcp.pop %v1444
        %v1446 = vmul.f32 %v1441, %v1445
        %v1447 = vsel %vm916, %v1446, 0.0
        %1449 = vrot.lane.b32.xlu0 %v1447, 1
        %v1450 = vpop.permute.xlu0 %1449
        %v1452 = vsel %vm780, %v1450, %v1447
        %1454 = vrot.lane.b32.xlu0 %v1452, 2
        %v1455 = vpop.permute.xlu0 %1454
        %v1457 = vsel %vm783, %v1455, %v1452
        %1459 = vrot.lane.b32.xlu0 %v1457, 4
        %v1460 = vpop.permute.xlu0 %1459
        %v1462 = vsel %vm786, %v1460, %v1457
        %v1463 = vpack.c.bf16 %v1462, %v1462
        %v1464 = vpack.c.bf16 %v1446, %v1446
        %v1465 = vunpack.c.h.b16 %v744
        %v1466 = vunpack.c.h.b16 %v746
        %v1467 = vunpack.c.h.b16 %v748
        %v1468 = vunpack.c.h.b16 %v750
        %v1469 = vunpack.c.h.b16 %v752
        %v1470 = vunpack.c.h.b16 %v754
        %v1471 = vunpack.c.h.b16 %v756
        %v1472 = vunpack.c.h.b16 %v758
        %v1473 = vunpack.c.h.b16 %v760
        %v1474 = vunpack.c.h.b16 %v762
        %v1475 = vunpack.c.h.b16 %v764
        %v1476 = vunpack.c.h.b16 %v766
        %v1477 = vunpack.c.h.b16 %v768
        %v1478 = vunpack.c.h.b16 %v770
        %v1479 = vunpack.c.h.b16 %v772
        %v1480 = vunpack.c.h.b16 %v774
        %v1481 = vpack.c.b16 %v1466, %v1465
        %v1482 = vpack.c.b16 %v1468, %v1467
        %v1483 = vpack.c.b16 %v1470, %v1469
        %v1484 = vpack.c.b16 %v1472, %v1471
        %v1485 = vpack.c.b16 %v1474, %v1473
        %v1486 = vpack.c.b16 %v1476, %v1475
        %v1487 = vpack.c.b16 %v1478, %v1477
        %v1488 = vpack.c.b16 %v1480, %v1479
        %1497 = vmatprep.subr.bf16.mxu0 0
        %1498 = vmatpush1.bf16.msra.mxu0 %v1488
        %1499 = vmatprep.subr.bf16.mxu0 0
        %1500 = vmatpush1.bf16.msra.mxu0 %v1487
        %1501 = vmatprep.subr.bf16.mxu0 0
        %1502 = vmatpush1.bf16.msra.mxu0 %v1486
        %1503 = vmatprep.subr.bf16.mxu0 0
        %1504 = vmatpush1.bf16.msra.mxu0 %v1485
        %1505 = vmatprep.subr.bf16.mxu0 0
        %1506 = vmatpush1.bf16.msra.mxu0 %v1484
        %1507 = vmatprep.subr.bf16.mxu0 0
        %1508 = vmatpush1.bf16.msra.mxu0 %v1483
        %1509 = vmatprep.subr.bf16.mxu0 0
        %1510 = vmatpush1.bf16.msra.mxu0 %v1482
        %1511 = vmatprep.subr.bf16.mxu0 0
        %1512 = vmatpush1.bf16.msra.mxu0 %v1481
        %1513 = vmatprep.subr.bf16.mxu0 0
        %1514 = vmatpush2.bf16.msra.mxu0 0
        %1515 = vmatprep.subr.bf16.mxu0 0
        %1516 = vmatpush2.bf16.msra.mxu0 0
        %1517 = vmatprep.subr.bf16.mxu0 0
        %1518 = vmatpush2.bf16.msra.mxu0 0
        %1519 = vmatprep.subr.bf16.mxu0 0
        %1520 = vmatpush2.bf16.msra.mxu0 0
        %1521 = vmatprep.subr.bf16.mxu0 0
        %1522 = vmatpush2.bf16.msra.mxu0 0
        %1523 = vmatprep.subr.bf16.mxu0 0
        %1524 = vmatpush2.bf16.msra.mxu0 0
        %1525 = vmatprep.subr.bf16.mxu0 0
        %1526 = vmatpush2.bf16.msra.mxu0 0
        %1527 = vmatprep.subr.bf16.mxu0 0
        %1528 = vmatpush2.bf16.msra.mxu0 0
        %1529 = vmatprep.mubr.bf16.mxu0 0
        %1530 = vmatmul.mubr.bf16.gmra.mxu0 %v1463
        %v1531 = vpop.f32.mrf.mxu0
        %v1532 = vadd.f32 0.0, %v1531
        %v1533 = vpop.f32.mrf.mxu0
        %v1534 = vpop.f32.mrf.mxu0
        %v1535 = vpop.f32.mrf.mxu0
        %1536 = vdwg.mxu0
        %v1538 = vsel %vm916, %v1464, 0
        %v1541 = vsel %vm1037, %v1334, 0
        %1543 = vmatprep.subr.bf16.mxu0 0
        %1544 = vmatpush1.bf16.msra.mxu0 0
        %1545 = vmatprep.subr.bf16.mxu0 0
        %1546 = vmatpush1.bf16.msra.mxu0 0
        %1547 = vmatprep.subr.bf16.mxu0 0
        %1548 = vmatpush1.bf16.msra.mxu0 0
        %1549 = vmatprep.subr.bf16.mxu0 0
        %1550 = vmatpush1.bf16.msra.mxu0 0
        %1551 = vmatprep.subr.bf16.mxu0 0
        %1552 = vmatpush1.bf16.msra.mxu0 0
        %1553 = vmatprep.subr.bf16.mxu0 0
        %1554 = vmatpush1.bf16.msra.mxu0 0
        %1555 = vmatprep.subr.bf16.mxu0 0
        %1556 = vmatpush1.bf16.msra.mxu0 0
        %1557 = vmatprep.subr.bf16.mxu0 0
        %1558 = vmatpush1.bf16.msra.mxu0 %v1541
        %1559 = vmatprep.subr.bf16.mxu0 0
        %1560 = vmatpush2.bf16.msra.mxu0 0
        %1561 = vmatprep.subr.bf16.mxu0 0
        %1562 = vmatpush2.bf16.msra.mxu0 0
        %1563 = vmatprep.subr.bf16.mxu0 0
        %1564 = vmatpush2.bf16.msra.mxu0 0
        %1565 = vmatprep.subr.bf16.mxu0 0
        %1566 = vmatpush2.bf16.msra.mxu0 0
        %1567 = vmatprep.subr.bf16.mxu0 0
        %1568 = vmatpush2.bf16.msra.mxu0 0
        %1569 = vmatprep.subr.bf16.mxu0 0
        %1570 = vmatpush2.bf16.msra.mxu0 0
        %1571 = vmatprep.subr.bf16.mxu0 0
        %1572 = vmatpush2.bf16.msra.mxu0 0
        %1573 = vmatprep.subr.bf16.mxu0 0
        %1574 = vmatpush2.bf16.msra.mxu0 0
        %1575 = vmatprep.mubr.bf16.mxu0 0
        %1576 = vmatmul.mubr.bf16.gmra.mxu0 %v1538
        %v1577 = vpop.f32.mrf.mxu0
        %v1578 = vadd.f32 %v1532, %v1577
        %v1579 = vpop.f32.mrf.mxu0
        %v1580 = vpop.f32.mrf.mxu0
        %v1581 = vpop.f32.mrf.mxu0
        %1582 = vdwg.mxu0
        %v1583 = vadd.f32 %v1331, %v1578
        %1585 = vrot.lane.b32.xlu0 %v1332, 64
        %v1586 = vpop.permute.xlu0 %1585
        %v1588 = vsel %vm814, %v1586, 0
        %1590 = vmatprep.subr.bf16.mxu0 0
        %1591 = vmatpush1.bf16.msra.mxu0 0
        %1592 = vmatprep.subr.bf16.mxu0 0
        %1593 = vmatpush1.bf16.msra.mxu0 0
        %1594 = vmatprep.subr.bf16.mxu0 0
        %1595 = vmatpush1.bf16.msra.mxu0 0
        %1596 = vmatprep.subr.bf16.mxu0 0
        %1597 = vmatpush1.bf16.msra.mxu0 0
        %1598 = vmatprep.subr.bf16.mxu0 0
        %1599 = vmatpush1.bf16.msra.mxu0 %v809
        %1600 = vmatprep.subr.bf16.mxu0 0
        %1601 = vmatpush1.bf16.msra.mxu0 %v808
        %1602 = vmatprep.subr.bf16.mxu0 0
        %1603 = vmatpush1.bf16.msra.mxu0 %v807
        %1604 = vmatprep.subr.bf16.mxu0 0
        %1605 = vmatpush1.bf16.msra.mxu0 %v806
        %1606 = vmatprep.subr.bf16.mxu0 0
        %1607 = vmatpush2.bf16.msra.mxu0 0
        %1608 = vmatprep.subr.bf16.mxu0 0
        %1609 = vmatpush2.bf16.msra.mxu0 0
        %1610 = vmatprep.subr.bf16.mxu0 0
        %1611 = vmatpush2.bf16.msra.mxu0 0
        %1612 = vmatprep.subr.bf16.mxu0 0
        %1613 = vmatpush2.bf16.msra.mxu0 0
        %1614 = vmatprep.subr.bf16.mxu0 0
        %1615 = vmatpush2.bf16.msra.mxu0 0
        %1616 = vmatprep.subr.bf16.mxu0 0
        %1617 = vmatpush2.bf16.msra.mxu0 0
        %1618 = vmatprep.subr.bf16.mxu0 0
        %1619 = vmatpush2.bf16.msra.mxu0 0
        %1620 = vmatprep.subr.bf16.mxu0 0
        %1621 = vmatpush2.bf16.msra.mxu0 0
        %1622 = vmatprep.mubr.bf16.mxu0 0
        %1623 = vmatmul.mubr.bf16.gmra.mxu0 %v1588
        %v1624 = vpop.f32.mrf.mxu0
        %v1625 = vadd.f32 0.0, %v1624
        %v1626 = vpop.f32.mrf.mxu0
        %v1627 = vpop.f32.mrf.mxu0
        %v1628 = vpop.f32.mrf.mxu0
        %1629 = vdwg.mxu0
        %1631 = vrot.lane.b32.xlu0 %v1625, 127
        %v1632 = vpop.permute.xlu0 %1631
        %v1634 = vsel %vm780, %v1632, %v1625
        %1636 = vrot.lane.b32.xlu0 %v1634, 126
        %v1637 = vpop.permute.xlu0 %1636
        %v1639 = vsel %vm783, %v1637, %v1634
        %1641 = vrot.lane.b32.xlu0 %v1639, 124
        %v1642 = vpop.permute.xlu0 %1641
        %v1644 = vsel %vm786, %v1642, %v1639
        %1646 = vrot.lane.b32.xlu0 %v1333, 64
        %v1647 = vpop.permute.xlu0 %1646
        %v1649 = vsel %vm814, %v1647, 0
        %1651 = vmatprep.subr.bf16.mxu0 0
        %1652 = vmatpush1.bf16.xpose.msra.mxu0 0
        %1653 = vmatprep.subr.bf16.mxu0 0
        %1654 = vmatpush1.bf16.xpose.msra.mxu0 0
        %1655 = vmatprep.subr.bf16.mxu0 0
        %1656 = vmatpush1.bf16.xpose.msra.mxu0 0
        %1657 = vmatprep.subr.bf16.mxu0 0
        %1658 = vmatpush1.bf16.xpose.msra.mxu0 0
        %1659 = vmatprep.subr.bf16.mxu0 0
        %1660 = vmatpush1.bf16.xpose.msra.mxu0 0
        %1661 = vmatprep.subr.bf16.mxu0 0
        %1662 = vmatpush1.bf16.xpose.msra.mxu0 0
        %1663 = vmatprep.subr.bf16.mxu0 0
        %1664 = vmatpush1.bf16.xpose.msra.mxu0 0
        %1665 = vmatprep.subr.bf16.mxu0 0
        %1666 = vmatpush1.bf16.xpose.msra.mxu0 %v1649
        %1667 = vmatprep.subr.bf16.mxu0 0
        %1668 = vmatpush2.bf16.xpose.msra.mxu0 0
        %1669 = vmatprep.subr.bf16.mxu0 0
        %1670 = vmatpush2.bf16.xpose.msra.mxu0 0
        %1671 = vmatprep.subr.bf16.mxu0 0
        %1672 = vmatpush2.bf16.xpose.msra.mxu0 0
        %1673 = vmatprep.subr.bf16.mxu0 0
        %1674 = vmatpush2.bf16.xpose.msra.mxu0 0
        %1675 = vmatprep.subr.bf16.mxu0 0
        %1676 = vmatpush2.bf16.xpose.msra.mxu0 0
        %1677 = vmatprep.subr.bf16.mxu0 0
        %1678 = vmatpush2.bf16.xpose.msra.mxu0 0
        %1679 = vmatprep.subr.bf16.mxu0 0
        %1680 = vmatpush2.bf16.xpose.msra.mxu0 0
        %1681 = vmatprep.subr.bf16.mxu0 0
        %1682 = vmatpush2.bf16.xpose.msra.mxu0 0
        %1683 = vmatprep.mubr.bf16.mxu0 0
        %1684 = vmatmul.mubr.bf16.gmra.mxu0 %v1588
        %v1685 = vpop.f32.mrf.mxu0
        %v1686 = vadd.f32 %v1644, %v1685
        %v1687 = vpop.f32.mrf.mxu0
        %v1688 = vpop.f32.mrf.mxu0
        %v1689 = vpop.f32.mrf.mxu0
        %1690 = vdwg.mxu0
        %v1691 = vsel %vm916, %v1686, -inf
        %1692 = vmax.xlane.f32.xlu0 %v1691
        %v1693 = vpop.xlane.xlu0 %1692
        %v1694 = vsub.f32 %v1686, %v1693
        %v1695 = vmul.f32 %v1694, 1.442695
        %v1696 = vpow.pop %v1695
        %v1697 = vsel %vm916, %v1696, 0.0
        %1698 = vadd.xlane.f32.xlu0 %v1697
        %v1699 = vpop.xlane.xlu0 %1698
        %v1700 = vrcp.pop %v1699
        %v1701 = vmul.f32 %v1696, %v1700
        %v1702 = vsel %vm916, %v1701, 0.0
        %1704 = vrot.lane.b32.xlu0 %v1702, 1
        %v1705 = vpop.permute.xlu0 %1704
        %v1707 = vsel %vm780, %v1705, %v1702
        %1709 = vrot.lane.b32.xlu0 %v1707, 2
        %v1710 = vpop.permute.xlu0 %1709
        %v1712 = vsel %vm783, %v1710, %v1707
        %1714 = vrot.lane.b32.xlu0 %v1712, 4
        %v1715 = vpop.permute.xlu0 %1714
        %v1717 = vsel %vm786, %v1715, %v1712
        %v1718 = vpack.c.bf16 %v1717, %v1717
        %v1719 = vpack.c.bf16 %v1701, %v1701
        %1720 = vrot.lane.b32.xlu0 %v1481, 64
        %v1721 = vpop.permute.xlu0 %1720
        %1722 = vrot.lane.b32.xlu0 %v1482, 64
        %v1723 = vpop.permute.xlu0 %1722
        %1724 = vrot.lane.b32.xlu0 %v1483, 64
        %v1725 = vpop.permute.xlu0 %1724
        %1726 = vrot.lane.b32.xlu0 %v1484, 64
        %v1727 = vpop.permute.xlu0 %1726
        %1728 = vrot.lane.b32.xlu0 %v1485, 64
        %v1729 = vpop.permute.xlu0 %1728
        %1730 = vrot.lane.b32.xlu0 %v1486, 64
        %v1731 = vpop.permute.xlu0 %1730
        %1732 = vrot.lane.b32.xlu0 %v1487, 64
        %v1733 = vpop.permute.xlu0 %1732
        %1734 = vrot.lane.b32.xlu0 %v1488, 64
        %v1735 = vpop.permute.xlu0 %1734
        %1744 = vmatprep.subr.bf16.mxu0 0
        %1745 = vmatpush1.bf16.msra.mxu0 %v1735
        %1746 = vmatprep.subr.bf16.mxu0 0
        %1747 = vmatpush1.bf16.msra.mxu0 %v1733
        %1748 = vmatprep.subr.bf16.mxu0 0
        %1749 = vmatpush1.bf16.msra.mxu0 %v1731
        %1750 = vmatprep.subr.bf16.mxu0 0
        %1751 = vmatpush1.bf16.msra.mxu0 %v1729
        %1752 = vmatprep.subr.bf16.mxu0 0
        %1753 = vmatpush1.bf16.msra.mxu0 %v1727
        %1754 = vmatprep.subr.bf16.mxu0 0
        %1755 = vmatpush1.bf16.msra.mxu0 %v1725
        %1756 = vmatprep.subr.bf16.mxu0 0
        %1757 = vmatpush1.bf16.msra.mxu0 %v1723
        %1758 = vmatprep.subr.bf16.mxu0 0
        %1759 = vmatpush1.bf16.msra.mxu0 %v1721
        %1760 = vmatprep.subr.bf16.mxu0 0
        %1761 = vmatpush2.bf16.msra.mxu0 0
        %1762 = vmatprep.subr.bf16.mxu0 0
        %1763 = vmatpush2.bf16.msra.mxu0 0
        %1764 = vmatprep.subr.bf16.mxu0 0
        %1765 = vmatpush2.bf16.msra.mxu0 0
        %1766 = vmatprep.subr.bf16.mxu0 0
        %1767 = vmatpush2.bf16.msra.mxu0 0
        %1768 = vmatprep.subr.bf16.mxu0 0
        %1769 = vmatpush2.bf16.msra.mxu0 0
        %1770 = vmatprep.subr.bf16.mxu0 0
        %1771 = vmatpush2.bf16.msra.mxu0 0
        %1772 = vmatprep.subr.bf16.mxu0 0
        %1773 = vmatpush2.bf16.msra.mxu0 0
        %1774 = vmatprep.subr.bf16.mxu0 0
        %1775 = vmatpush2.bf16.msra.mxu0 0
        %1776 = vmatprep.mubr.bf16.mxu0 0
        %1777 = vmatmul.mubr.bf16.gmra.mxu0 %v1718
        %v1778 = vpop.f32.mrf.mxu0
        %v1779 = vadd.f32 0.0, %v1778
        %v1780 = vpop.f32.mrf.mxu0
        %v1781 = vpop.f32.mrf.mxu0
        %v1782 = vpop.f32.mrf.mxu0
        %1783 = vdwg.mxu0
        %1785 = vrot.lane.b32.xlu0 %v1334, 64
        %v1786 = vpop.permute.xlu0 %1785
        %v1788 = vsel %vm916, %v1719, 0
        %v1791 = vsel %vm1037, %v1786, 0
        %1793 = vmatprep.subr.bf16.mxu0 0
        %1794 = vmatpush1.bf16.msra.mxu0 0
        %1795 = vmatprep.subr.bf16.mxu0 0
        %1796 = vmatpush1.bf16.msra.mxu0 0
        %1797 = vmatprep.subr.bf16.mxu0 0
        %1798 = vmatpush1.bf16.msra.mxu0 0
        %1799 = vmatprep.subr.bf16.mxu0 0
        %1800 = vmatpush1.bf16.msra.mxu0 0
        %1801 = vmatprep.subr.bf16.mxu0 0
        %1802 = vmatpush1.bf16.msra.mxu0 0
        %1803 = vmatprep.subr.bf16.mxu0 0
        %1804 = vmatpush1.bf16.msra.mxu0 0
        %1805 = vmatprep.subr.bf16.mxu0 0
        %1806 = vmatpush1.bf16.msra.mxu0 0
        %1807 = vmatprep.subr.bf16.mxu0 0
        %1808 = vmatpush1.bf16.msra.mxu0 %v1791
        %1809 = vmatprep.subr.bf16.mxu0 0
        %1810 = vmatpush2.bf16.msra.mxu0 0
        %1811 = vmatprep.subr.bf16.mxu0 0
        %1812 = vmatpush2.bf16.msra.mxu0 0
        %1813 = vmatprep.subr.bf16.mxu0 0
        %1814 = vmatpush2.bf16.msra.mxu0 0
        %1815 = vmatprep.subr.bf16.mxu0 0
        %1816 = vmatpush2.bf16.msra.mxu0 0
        %1817 = vmatprep.subr.bf16.mxu0 0
        %1818 = vmatpush2.bf16.msra.mxu0 0
        %1819 = vmatprep.subr.bf16.mxu0 0
        %1820 = vmatpush2.bf16.msra.mxu0 0
        %1821 = vmatprep.subr.bf16.mxu0 0
        %1822 = vmatpush2.bf16.msra.mxu0 0
        %1823 = vmatprep.subr.bf16.mxu0 0
        %1824 = vmatpush2.bf16.msra.mxu0 0
        %1825 = vmatprep.mubr.bf16.mxu0 0
        %1826 = vmatmul.mubr.bf16.gmra.mxu0 %v1788
        %v1827 = vpop.f32.mrf.mxu0
        %v1828 = vadd.f32 %v1779, %v1827
        %v1829 = vpop.f32.mrf.mxu0
        %v1830 = vpop.f32.mrf.mxu0
        %v1831 = vpop.f32.mrf.mxu0
        %1832 = vdwg.mxu0
        %v1833 = vadd.f32 %v1583, %v1828
        %v1834 = vpack.c.bf16 %v470, %v470
        %v1835 = vpack.c.bf16 %v600, %v600
        %v1836 = vpack.c.bf16 %v730, %v730
        %v1838 = vsel %vm814, %v1834, 0
        %1840 = vmatprep.subr.bf16.mxu0 0
        %1841 = vmatpush1.bf16.msra.mxu0 0
        %1842 = vmatprep.subr.bf16.mxu0 0
        %1843 = vmatpush1.bf16.msra.mxu0 0
        %1844 = vmatprep.subr.bf16.mxu0 0
        %1845 = vmatpush1.bf16.msra.mxu0 0
        %1846 = vmatprep.subr.bf16.mxu0 0
        %1847 = vmatpush1.bf16.msra.mxu0 0
        %1848 = vmatprep.subr.bf16.mxu0 0
        %1849 = vmatpush1.bf16.msra.mxu0 %v809
        %1850 = vmatprep.subr.bf16.mxu0 0
        %1851 = vmatpush1.bf16.msra.mxu0 %v808
        %1852 = vmatprep.subr.bf16.mxu0 0
        %1853 = vmatpush1.bf16.msra.mxu0 %v807
        %1854 = vmatprep.subr.bf16.mxu0 0
        %1855 = vmatpush1.bf16.msra.mxu0 %v806
        %1856 = vmatprep.subr.bf16.mxu0 0
        %1857 = vmatpush2.bf16.msra.mxu0 0
        %1858 = vmatprep.subr.bf16.mxu0 0
        %1859 = vmatpush2.bf16.msra.mxu0 0
        %1860 = vmatprep.subr.bf16.mxu0 0
        %1861 = vmatpush2.bf16.msra.mxu0 0
        %1862 = vmatprep.subr.bf16.mxu0 0
        %1863 = vmatpush2.bf16.msra.mxu0 0
        %1864 = vmatprep.subr.bf16.mxu0 0
        %1865 = vmatpush2.bf16.msra.mxu0 0
        %1866 = vmatprep.subr.bf16.mxu0 0
        %1867 = vmatpush2.bf16.msra.mxu0 0
        %1868 = vmatprep.subr.bf16.mxu0 0
        %1869 = vmatpush2.bf16.msra.mxu0 0
        %1870 = vmatprep.subr.bf16.mxu0 0
        %1871 = vmatpush2.bf16.msra.mxu0 0
        %1872 = vmatprep.mubr.bf16.mxu0 0
        %1873 = vmatmul.mubr.bf16.gmra.mxu0 %v1838
        %v1874 = vpop.f32.mrf.mxu0
        %v1875 = vadd.f32 0.0, %v1874
        %v1876 = vpop.f32.mrf.mxu0
        %v1877 = vpop.f32.mrf.mxu0
        %v1878 = vpop.f32.mrf.mxu0
        %1879 = vdwg.mxu0
        %1881 = vrot.lane.b32.xlu0 %v1875, 127
        %v1882 = vpop.permute.xlu0 %1881
        %v1884 = vsel %vm780, %v1882, %v1875
        %1886 = vrot.lane.b32.xlu0 %v1884, 126
        %v1887 = vpop.permute.xlu0 %1886
        %v1889 = vsel %vm783, %v1887, %v1884
        %1891 = vrot.lane.b32.xlu0 %v1889, 124
        %v1892 = vpop.permute.xlu0 %1891
        %v1894 = vsel %vm786, %v1892, %v1889
        %v1896 = vsel %vm814, %v1835, 0
        %1898 = vmatprep.subr.bf16.mxu0 0
        %1899 = vmatpush1.bf16.xpose.msra.mxu0 0
        %1900 = vmatprep.subr.bf16.mxu0 0
        %1901 = vmatpush1.bf16.xpose.msra.mxu0 0
        %1902 = vmatprep.subr.bf16.mxu0 0
        %1903 = vmatpush1.bf16.xpose.msra.mxu0 0
        %1904 = vmatprep.subr.bf16.mxu0 0
        %1905 = vmatpush1.bf16.xpose.msra.mxu0 0
        %1906 = vmatprep.subr.bf16.mxu0 0
        %1907 = vmatpush1.bf16.xpose.msra.mxu0 0
        %1908 = vmatprep.subr.bf16.mxu0 0
        %1909 = vmatpush1.bf16.xpose.msra.mxu0 0
        %1910 = vmatprep.subr.bf16.mxu0 0
        %1911 = vmatpush1.bf16.xpose.msra.mxu0 0
        %1912 = vmatprep.subr.bf16.mxu0 0
        %1913 = vmatpush1.bf16.xpose.msra.mxu0 %v1896
        %1914 = vmatprep.subr.bf16.mxu0 0
        %1915 = vmatpush2.bf16.xpose.msra.mxu0 0
        %1916 = vmatprep.subr.bf16.mxu0 0
        %1917 = vmatpush2.bf16.xpose.msra.mxu0 0
        %1918 = vmatprep.subr.bf16.mxu0 0
        %1919 = vmatpush2.bf16.xpose.msra.mxu0 0
        %1920 = vmatprep.subr.bf16.mxu0 0
        %1921 = vmatpush2.bf16.xpose.msra.mxu0 0
        %1922 = vmatprep.subr.bf16.mxu0 0
        %1923 = vmatpush2.bf16.xpose.msra.mxu0 0
        %1924 = vmatprep.subr.bf16.mxu0 0
        %1925 = vmatpush2.bf16.xpose.msra.mxu0 0
        %1926 = vmatprep.subr.bf16.mxu0 0
        %1927 = vmatpush2.bf16.xpose.msra.mxu0 0
        %1928 = vmatprep.subr.bf16.mxu0 0
        %1929 = vmatpush2.bf16.xpose.msra.mxu0 0
        %1930 = vmatprep.mubr.bf16.mxu0 0
        %1931 = vmatmul.mubr.bf16.gmra.mxu0 %v1838
        %v1932 = vpop.f32.mrf.mxu0
        %v1933 = vadd.f32 %v1894, %v1932
        %v1934 = vpop.f32.mrf.mxu0
        %v1935 = vpop.f32.mrf.mxu0
        %v1936 = vpop.f32.mrf.mxu0
        %1937 = vdwg.mxu0
        %v1938 = vsel %vm916, %v1933, -inf
        %1939 = vmax.xlane.f32.xlu0 %v1938
        %v1940 = vpop.xlane.xlu0 %1939
        %v1941 = vsub.f32 %v1933, %v1940
        %v1942 = vmul.f32 %v1941, 1.442695
        %v1943 = vpow.pop %v1942
        %v1944 = vsel %vm916, %v1943, 0.0
        %1945 = vadd.xlane.f32.xlu0 %v1944
        %v1946 = vpop.xlane.xlu0 %1945
        %v1947 = vrcp.pop %v1946
        %v1948 = vmul.f32 %v1943, %v1947
        %v1949 = vsel %vm916, %v1948, 0.0
        %1951 = vrot.lane.b32.xlu0 %v1949, 1
        %v1952 = vpop.permute.xlu0 %1951
        %v1954 = vsel %vm780, %v1952, %v1949
        %1956 = vrot.lane.b32.xlu0 %v1954, 2
        %v1957 = vpop.permute.xlu0 %1956
        %v1959 = vsel %vm783, %v1957, %v1954
        %1961 = vrot.lane.b32.xlu0 %v1959, 4
        %v1962 = vpop.permute.xlu0 %1961
        %v1964 = vsel %vm786, %v1962, %v1959
        %v1965 = vpack.c.bf16 %v1964, %v1964
        %v1966 = vpack.c.bf16 %v1948, %v1948
        %v1983 = vunpack.c.l.b16 %v745
        %v1984 = vunpack.c.l.b16 %v747
        %v1985 = vunpack.c.l.b16 %v749
        %v1986 = vunpack.c.l.b16 %v751
        %v1987 = vunpack.c.l.b16 %v753
        %v1988 = vunpack.c.l.b16 %v755
        %v1989 = vunpack.c.l.b16 %v757
        %v1990 = vunpack.c.l.b16 %v759
        %v1991 = vunpack.c.l.b16 %v761
        %v1992 = vunpack.c.l.b16 %v763
        %v1993 = vunpack.c.l.b16 %v765
        %v1994 = vunpack.c.l.b16 %v767
        %v1995 = vunpack.c.l.b16 %v769
        %v1996 = vunpack.c.l.b16 %v771
        %v1997 = vunpack.c.l.b16 %v773
        %v1998 = vunpack.c.l.b16 %v775
        %v1999 = vpack.c.b16 %v1984, %v1983
        %v2000 = vpack.c.b16 %v1986, %v1985
        %v2001 = vpack.c.b16 %v1988, %v1987
        %v2002 = vpack.c.b16 %v1990, %v1989
        %v2003 = vpack.c.b16 %v1992, %v1991
        %v2004 = vpack.c.b16 %v1994, %v1993
        %v2005 = vpack.c.b16 %v1996, %v1995
        %v2006 = vpack.c.b16 %v1998, %v1997
        %2015 = vmatprep.subr.bf16.mxu0 0
        %2016 = vmatpush1.bf16.msra.mxu0 %v2006
        %2017 = vmatprep.subr.bf16.mxu0 0
        %2018 = vmatpush1.bf16.msra.mxu0 %v2005
        %2019 = vmatprep.subr.bf16.mxu0 0
        %2020 = vmatpush1.bf16.msra.mxu0 %v2004
        %2021 = vmatprep.subr.bf16.mxu0 0
        %2022 = vmatpush1.bf16.msra.mxu0 %v2003
        %2023 = vmatprep.subr.bf16.mxu0 0
        %2024 = vmatpush1.bf16.msra.mxu0 %v2002
        %2025 = vmatprep.subr.bf16.mxu0 0
        %2026 = vmatpush1.bf16.msra.mxu0 %v2001
        %2027 = vmatprep.subr.bf16.mxu0 0
        %2028 = vmatpush1.bf16.msra.mxu0 %v2000
        %2029 = vmatprep.subr.bf16.mxu0 0
        %2030 = vmatpush1.bf16.msra.mxu0 %v1999
        %2031 = vmatprep.subr.bf16.mxu0 0
        %2032 = vmatpush2.bf16.msra.mxu0 0
        %2033 = vmatprep.subr.bf16.mxu0 0
        %2034 = vmatpush2.bf16.msra.mxu0 0
        %2035 = vmatprep.subr.bf16.mxu0 0
        %2036 = vmatpush2.bf16.msra.mxu0 0
        %2037 = vmatprep.subr.bf16.mxu0 0
        %2038 = vmatpush2.bf16.msra.mxu0 0
        %2039 = vmatprep.subr.bf16.mxu0 0
        %2040 = vmatpush2.bf16.msra.mxu0 0
        %2041 = vmatprep.subr.bf16.mxu0 0
        %2042 = vmatpush2.bf16.msra.mxu0 0
        %2043 = vmatprep.subr.bf16.mxu0 0
        %2044 = vmatpush2.bf16.msra.mxu0 0
        %2045 = vmatprep.subr.bf16.mxu0 0
        %2046 = vmatpush2.bf16.msra.mxu0 0
        %2047 = vmatprep.mubr.bf16.mxu0 0
        %2048 = vmatmul.mubr.bf16.gmra.mxu0 %v1965
        %v2049 = vpop.f32.mrf.mxu0
        %v2050 = vadd.f32 0.0, %v2049
        %v2051 = vpop.f32.mrf.mxu0
        %v2052 = vpop.f32.mrf.mxu0
        %v2053 = vpop.f32.mrf.mxu0
        %2054 = vdwg.mxu0
        %v2056 = vsel %vm916, %v1966, 0
        %v2059 = vsel %vm1037, %v1836, 0
        %2061 = vmatprep.subr.bf16.mxu0 0
        %2062 = vmatpush1.bf16.msra.mxu0 0
        %2063 = vmatprep.subr.bf16.mxu0 0
        %2064 = vmatpush1.bf16.msra.mxu0 0
        %2065 = vmatprep.subr.bf16.mxu0 0
        %2066 = vmatpush1.bf16.msra.mxu0 0
        %2067 = vmatprep.subr.bf16.mxu0 0
        %2068 = vmatpush1.bf16.msra.mxu0 0
        %2069 = vmatprep.subr.bf16.mxu0 0
        %2070 = vmatpush1.bf16.msra.mxu0 0
        %2071 = vmatprep.subr.bf16.mxu0 0
        %2072 = vmatpush1.bf16.msra.mxu0 0
        %2073 = vmatprep.subr.bf16.mxu0 0
        %2074 = vmatpush1.bf16.msra.mxu0 0
        %2075 = vmatprep.subr.bf16.mxu0 0
        %2076 = vmatpush1.bf16.msra.mxu0 %v2059
        %2077 = vmatprep.subr.bf16.mxu0 0
        %2078 = vmatpush2.bf16.msra.mxu0 0
        %2079 = vmatprep.subr.bf16.mxu0 0
        %2080 = vmatpush2.bf16.msra.mxu0 0
        %2081 = vmatprep.subr.bf16.mxu0 0
        %2082 = vmatpush2.bf16.msra.mxu0 0
        %2083 = vmatprep.subr.bf16.mxu0 0
        %2084 = vmatpush2.bf16.msra.mxu0 0
        %2085 = vmatprep.subr.bf16.mxu0 0
        %2086 = vmatpush2.bf16.msra.mxu0 0
        %2087 = vmatprep.subr.bf16.mxu0 0
        %2088 = vmatpush2.bf16.msra.mxu0 0
        %2089 = vmatprep.subr.bf16.mxu0 0
        %2090 = vmatpush2.bf16.msra.mxu0 0
        %2091 = vmatprep.subr.bf16.mxu0 0
        %2092 = vmatpush2.bf16.msra.mxu0 0
        %2093 = vmatprep.mubr.bf16.mxu0 0
        %2094 = vmatmul.mubr.bf16.gmra.mxu0 %v2056
        %v2095 = vpop.f32.mrf.mxu0
        %v2096 = vadd.f32 %v2050, %v2095
        %v2097 = vpop.f32.mrf.mxu0
        %v2098 = vpop.f32.mrf.mxu0
        %v2099 = vpop.f32.mrf.mxu0
        %2100 = vdwg.mxu0
        %v2101 = vadd.f32 %v1833, %v2096
        %2103 = vrot.lane.b32.xlu0 %v1834, 64
        %v2104 = vpop.permute.xlu0 %2103
        %v2106 = vsel %vm814, %v2104, 0
        %2108 = vmatprep.subr.bf16.mxu0 0
        %2109 = vmatpush1.bf16.msra.mxu0 0
        %2110 = vmatprep.subr.bf16.mxu0 0
        %2111 = vmatpush1.bf16.msra.mxu0 0
        %2112 = vmatprep.subr.bf16.mxu0 0
        %2113 = vmatpush1.bf16.msra.mxu0 0
        %2114 = vmatprep.subr.bf16.mxu0 0
        %2115 = vmatpush1.bf16.msra.mxu0 0
        %2116 = vmatprep.subr.bf16.mxu0 0
        %2117 = vmatpush1.bf16.msra.mxu0 %v809
        %2118 = vmatprep.subr.bf16.mxu0 0
        %2119 = vmatpush1.bf16.msra.mxu0 %v808
        %2120 = vmatprep.subr.bf16.mxu0 0
        %2121 = vmatpush1.bf16.msra.mxu0 %v807
        %2122 = vmatprep.subr.bf16.mxu0 0
        %2123 = vmatpush1.bf16.msra.mxu0 %v806
        %2124 = vmatprep.subr.bf16.mxu0 0
        %2125 = vmatpush2.bf16.msra.mxu0 0
        %2126 = vmatprep.subr.bf16.mxu0 0
        %2127 = vmatpush2.bf16.msra.mxu0 0
        %2128 = vmatprep.subr.bf16.mxu0 0
        %2129 = vmatpush2.bf16.msra.mxu0 0
        %2130 = vmatprep.subr.bf16.mxu0 0
        %2131 = vmatpush2.bf16.msra.mxu0 0
        %2132 = vmatprep.subr.bf16.mxu0 0
        %2133 = vmatpush2.bf16.msra.mxu0 0
        %2134 = vmatprep.subr.bf16.mxu0 0
        %2135 = vmatpush2.bf16.msra.mxu0 0
        %2136 = vmatprep.subr.bf16.mxu0 0
        %2137 = vmatpush2.bf16.msra.mxu0 0
        %2138 = vmatprep.subr.bf16.mxu0 0
        %2139 = vmatpush2.bf16.msra.mxu0 0
        %2140 = vmatprep.mubr.bf16.mxu0 0
        %2141 = vmatmul.mubr.bf16.gmra.mxu0 %v2106
        %v2142 = vpop.f32.mrf.mxu0
        %v2143 = vadd.f32 0.0, %v2142
        %v2144 = vpop.f32.mrf.mxu0
        %v2145 = vpop.f32.mrf.mxu0
        %v2146 = vpop.f32.mrf.mxu0
        %2147 = vdwg.mxu0
        %2149 = vrot.lane.b32.xlu0 %v2143, 127
        %v2150 = vpop.permute.xlu0 %2149
        %v2152 = vsel %vm780, %v2150, %v2143
        %2154 = vrot.lane.b32.xlu0 %v2152, 126
        %v2155 = vpop.permute.xlu0 %2154
        %v2157 = vsel %vm783, %v2155, %v2152
        %2159 = vrot.lane.b32.xlu0 %v2157, 124
        %v2160 = vpop.permute.xlu0 %2159
        %v2162 = vsel %vm786, %v2160, %v2157
        %2164 = vrot.lane.b32.xlu0 %v1835, 64
        %v2165 = vpop.permute.xlu0 %2164
        %v2167 = vsel %vm814, %v2165, 0
        %2169 = vmatprep.subr.bf16.mxu0 0
        %2170 = vmatpush1.bf16.xpose.msra.mxu0 0
        %2171 = vmatprep.subr.bf16.mxu0 0
        %2172 = vmatpush1.bf16.xpose.msra.mxu0 0
        %2173 = vmatprep.subr.bf16.mxu0 0
        %2174 = vmatpush1.bf16.xpose.msra.mxu0 0
        %2175 = vmatprep.subr.bf16.mxu0 0
        %2176 = vmatpush1.bf16.xpose.msra.mxu0 0
        %2177 = vmatprep.subr.bf16.mxu0 0
        %2178 = vmatpush1.bf16.xpose.msra.mxu0 0
        %2179 = vmatprep.subr.bf16.mxu0 0
        %2180 = vmatpush1.bf16.xpose.msra.mxu0 0
        %2181 = vmatprep.subr.bf16.mxu0 0
        %2182 = vmatpush1.bf16.xpose.msra.mxu0 0
        %2183 = vmatprep.subr.bf16.mxu0 0
        %2184 = vmatpush1.bf16.xpose.msra.mxu0 %v2167
        %2185 = vmatprep.subr.bf16.mxu0 0
        %2186 = vmatpush2.bf16.xpose.msra.mxu0 0
        %2187 = vmatprep.subr.bf16.mxu0 0
        %2188 = vmatpush2.bf16.xpose.msra.mxu0 0
        %2189 = vmatprep.subr.bf16.mxu0 0
        %2190 = vmatpush2.bf16.xpose.msra.mxu0 0
        %2191 = vmatprep.subr.bf16.mxu0 0
        %2192 = vmatpush2.bf16.xpose.msra.mxu0 0
        %2193 = vmatprep.subr.bf16.mxu0 0
        %2194 = vmatpush2.bf16.xpose.msra.mxu0 0
        %2195 = vmatprep.subr.bf16.mxu0 0
        %2196 = vmatpush2.bf16.xpose.msra.mxu0 0
        %2197 = vmatprep.subr.bf16.mxu0 0
        %2198 = vmatpush2.bf16.xpose.msra.mxu0 0
        %2199 = vmatprep.subr.bf16.mxu0 0
        %2200 = vmatpush2.bf16.xpose.msra.mxu0 0
        %2201 = vmatprep.mubr.bf16.mxu0 0
        %2202 = vmatmul.mubr.bf16.gmra.mxu0 %v2106
        %v2203 = vpop.f32.mrf.mxu0
        %v2204 = vadd.f32 %v2162, %v2203
        %v2205 = vpop.f32.mrf.mxu0
        %v2206 = vpop.f32.mrf.mxu0
        %v2207 = vpop.f32.mrf.mxu0
        %2208 = vdwg.mxu0
        %v2209 = vsel %vm916, %v2204, -inf
        %2210 = vmax.xlane.f32.xlu0 %v2209
        %v2211 = vpop.xlane.xlu0 %2210
        %v2212 = vsub.f32 %v2204, %v2211
        %v2213 = vmul.f32 %v2212, 1.442695
        %v2214 = vpow.pop %v2213
        %v2215 = vsel %vm916, %v2214, 0.0
        %2216 = vadd.xlane.f32.xlu0 %v2215
        %v2217 = vpop.xlane.xlu0 %2216
        %v2218 = vrcp.pop %v2217
        %v2219 = vmul.f32 %v2214, %v2218
        %v2220 = vsel %vm916, %v2219, 0.0
        %2222 = vrot.lane.b32.xlu0 %v2220, 1
        %v2223 = vpop.permute.xlu0 %2222
        %v2225 = vsel %vm780, %v2223, %v2220
        %2227 = vrot.lane.b32.xlu0 %v2225, 2
        %v2228 = vpop.permute.xlu0 %2227
        %v2230 = vsel %vm783, %v2228, %v2225
        %2232 = vrot.lane.b32.xlu0 %v2230, 4
        %v2233 = vpop.permute.xlu0 %2232
        %v2235 = vsel %vm786, %v2233, %v2230
        %v2236 = vpack.c.bf16 %v2235, %v2235
        %v2237 = vpack.c.bf16 %v2219, %v2219
        %2238 = vrot.lane.b32.xlu0 %v1999, 64
        %v2239 = vpop.permute.xlu0 %2238
        %2240 = vrot.lane.b32.xlu0 %v2000, 64
        %v2241 = vpop.permute.xlu0 %2240
        %2242 = vrot.lane.b32.xlu0 %v2001, 64
        %v2243 = vpop.permute.xlu0 %2242
        %2244 = vrot.lane.b32.xlu0 %v2002, 64
        %v2245 = vpop.permute.xlu0 %2244
        %2246 = vrot.lane.b32.xlu0 %v2003, 64
        %v2247 = vpop.permute.xlu0 %2246
        %2248 = vrot.lane.b32.xlu0 %v2004, 64
        %v2249 = vpop.permute.xlu0 %2248
        %2250 = vrot.lane.b32.xlu0 %v2005, 64
        %v2251 = vpop.permute.xlu0 %2250
        %2252 = vrot.lane.b32.xlu0 %v2006, 64
        %v2253 = vpop.permute.xlu0 %2252
        %2262 = vmatprep.subr.bf16.mxu0 0
        %2263 = vmatpush1.bf16.msra.mxu0 %v2253
        %2264 = vmatprep.subr.bf16.mxu0 0
        %2265 = vmatpush1.bf16.msra.mxu0 %v2251
        %2266 = vmatprep.subr.bf16.mxu0 0
        %2267 = vmatpush1.bf16.msra.mxu0 %v2249
        %2268 = vmatprep.subr.bf16.mxu0 0
        %2269 = vmatpush1.bf16.msra.mxu0 %v2247
        %2270 = vmatprep.subr.bf16.mxu0 0
        %2271 = vmatpush1.bf16.msra.mxu0 %v2245
        %2272 = vmatprep.subr.bf16.mxu0 0
        %2273 = vmatpush1.bf16.msra.mxu0 %v2243
        %2274 = vmatprep.subr.bf16.mxu0 0
        %2275 = vmatpush1.bf16.msra.mxu0 %v2241
        %2276 = vmatprep.subr.bf16.mxu0 0
        %2277 = vmatpush1.bf16.msra.mxu0 %v2239
        %2278 = vmatprep.subr.bf16.mxu0 0
        %2279 = vmatpush2.bf16.msra.mxu0 0
        %2280 = vmatprep.subr.bf16.mxu0 0
        %2281 = vmatpush2.bf16.msra.mxu0 0
        %2282 = vmatprep.subr.bf16.mxu0 0
        %2283 = vmatpush2.bf16.msra.mxu0 0
        %2284 = vmatprep.subr.bf16.mxu0 0
        %2285 = vmatpush2.bf16.msra.mxu0 0
        %2286 = vmatprep.subr.bf16.mxu0 0
        %2287 = vmatpush2.bf16.msra.mxu0 0
        %2288 = vmatprep.subr.bf16.mxu0 0
        %2289 = vmatpush2.bf16.msra.mxu0 0
        %2290 = vmatprep.subr.bf16.mxu0 0
        %2291 = vmatpush2.bf16.msra.mxu0 0
        %2292 = vmatprep.subr.bf16.mxu0 0
        %2293 = vmatpush2.bf16.msra.mxu0 0
        %2294 = vmatprep.mubr.bf16.mxu0 0
        %2295 = vmatmul.mubr.bf16.gmra.mxu0 %v2236
        %v2296 = vpop.f32.mrf.mxu0
        %v2297 = vadd.f32 0.0, %v2296
        %v2298 = vpop.f32.mrf.mxu0
        %v2299 = vpop.f32.mrf.mxu0
        %v2300 = vpop.f32.mrf.mxu0
        %2301 = vdwg.mxu0
        %2303 = vrot.lane.b32.xlu0 %v1836, 64
        %v2304 = vpop.permute.xlu0 %2303
        %v2306 = vsel %vm916, %v2237, 0
        %v2309 = vsel %vm1037, %v2304, 0
        %2311 = vmatprep.subr.bf16.mxu0 0
        %2312 = vmatpush1.bf16.msra.mxu0 0
        %2313 = vmatprep.subr.bf16.mxu0 0
        %2314 = vmatpush1.bf16.msra.mxu0 0
        %2315 = vmatprep.subr.bf16.mxu0 0
        %2316 = vmatpush1.bf16.msra.mxu0 0
        %2317 = vmatprep.subr.bf16.mxu0 0
        %2318 = vmatpush1.bf16.msra.mxu0 0
        %2319 = vmatprep.subr.bf16.mxu0 0
        %2320 = vmatpush1.bf16.msra.mxu0 0
        %2321 = vmatprep.subr.bf16.mxu0 0
        %2322 = vmatpush1.bf16.msra.mxu0 0
        %2323 = vmatprep.subr.bf16.mxu0 0
        %2324 = vmatpush1.bf16.msra.mxu0 0
        %2325 = vmatprep.subr.bf16.mxu0 0
        %2326 = vmatpush1.bf16.msra.mxu0 %v2309
        %2327 = vmatprep.subr.bf16.mxu0 0
        %2328 = vmatpush2.bf16.msra.mxu0 0
        %2329 = vmatprep.subr.bf16.mxu0 0
        %2330 = vmatpush2.bf16.msra.mxu0 0
        %2331 = vmatprep.subr.bf16.mxu0 0
        %2332 = vmatpush2.bf16.msra.mxu0 0
        %2333 = vmatprep.subr.bf16.mxu0 0
        %2334 = vmatpush2.bf16.msra.mxu0 0
        %2335 = vmatprep.subr.bf16.mxu0 0
        %2336 = vmatpush2.bf16.msra.mxu0 0
        %2337 = vmatprep.subr.bf16.mxu0 0
        %2338 = vmatpush2.bf16.msra.mxu0 0
        %2339 = vmatprep.subr.bf16.mxu0 0
        %2340 = vmatpush2.bf16.msra.mxu0 0
        %2341 = vmatprep.subr.bf16.mxu0 0
        %2342 = vmatpush2.bf16.msra.mxu0 0
        %2343 = vmatprep.mubr.bf16.mxu0 0
        %2344 = vmatmul.mubr.bf16.gmra.mxu0 %v2306
        %v2345 = vpop.f32.mrf.mxu0
        %v2346 = vadd.f32 %v2297, %v2345
        %v2347 = vpop.f32.mrf.mxu0
        %v2348 = vpop.f32.mrf.mxu0
        %v2349 = vpop.f32.mrf.mxu0
        %2350 = vdwg.mxu0
        %v2351 = vadd.f32 %v2101, %v2346
        %v2352 = vpack.c.bf16 %v472, %v472
        %v2353 = vpack.c.bf16 %v602, %v602
        %v2354 = vpack.c.bf16 %v732, %v732
        %v2356 = vsel %vm814, %v2352, 0
        %2358 = vmatprep.subr.bf16.mxu0 0
        %2359 = vmatpush1.bf16.msra.mxu0 0
        %2360 = vmatprep.subr.bf16.mxu0 0
        %2361 = vmatpush1.bf16.msra.mxu0 0
        %2362 = vmatprep.subr.bf16.mxu0 0
        %2363 = vmatpush1.bf16.msra.mxu0 0
        %2364 = vmatprep.subr.bf16.mxu0 0
        %2365 = vmatpush1.bf16.msra.mxu0 0
        %2366 = vmatprep.subr.bf16.mxu0 0
        %2367 = vmatpush1.bf16.msra.mxu0 %v809
        %2368 = vmatprep.subr.bf16.mxu0 0
        %2369 = vmatpush1.bf16.msra.mxu0 %v808
        %2370 = vmatprep.subr.bf16.mxu0 0
        %2371 = vmatpush1.bf16.msra.mxu0 %v807
        %2372 = vmatprep.subr.bf16.mxu0 0
        %2373 = vmatpush1.bf16.msra.mxu0 %v806
        %2374 = vmatprep.subr.bf16.mxu0 0
        %2375 = vmatpush2.bf16.msra.mxu0 0
        %2376 = vmatprep.subr.bf16.mxu0 0
        %2377 = vmatpush2.bf16.msra.mxu0 0
        %2378 = vmatprep.subr.bf16.mxu0 0
        %2379 = vmatpush2.bf16.msra.mxu0 0
        %2380 = vmatprep.subr.bf16.mxu0 0
        %2381 = vmatpush2.bf16.msra.mxu0 0
        %2382 = vmatprep.subr.bf16.mxu0 0
        %2383 = vmatpush2.bf16.msra.mxu0 0
        %2384 = vmatprep.subr.bf16.mxu0 0
        %2385 = vmatpush2.bf16.msra.mxu0 0
        %2386 = vmatprep.subr.bf16.mxu0 0
        %2387 = vmatpush2.bf16.msra.mxu0 0
        %2388 = vmatprep.subr.bf16.mxu0 0
        %2389 = vmatpush2.bf16.msra.mxu0 0
        %2390 = vmatprep.mubr.bf16.mxu0 0
        %2391 = vmatmul.mubr.bf16.gmra.mxu0 %v2356
        %v2392 = vpop.f32.mrf.mxu0
        %v2393 = vadd.f32 0.0, %v2392
        %v2394 = vpop.f32.mrf.mxu0
        %v2395 = vpop.f32.mrf.mxu0
        %v2396 = vpop.f32.mrf.mxu0
        %2397 = vdwg.mxu0
        %2399 = vrot.lane.b32.xlu0 %v2393, 127
        %v2400 = vpop.permute.xlu0 %2399
        %v2402 = vsel %vm780, %v2400, %v2393
        %2404 = vrot.lane.b32.xlu0 %v2402, 126
        %v2405 = vpop.permute.xlu0 %2404
        %v2407 = vsel %vm783, %v2405, %v2402
        %2409 = vrot.lane.b32.xlu0 %v2407, 124
        %v2410 = vpop.permute.xlu0 %2409
        %v2412 = vsel %vm786, %v2410, %v2407
        %v2414 = vsel %vm814, %v2353, 0
        %2416 = vmatprep.subr.bf16.mxu0 0
        %2417 = vmatpush1.bf16.xpose.msra.mxu0 0
        %2418 = vmatprep.subr.bf16.mxu0 0
        %2419 = vmatpush1.bf16.xpose.msra.mxu0 0
        %2420 = vmatprep.subr.bf16.mxu0 0
        %2421 = vmatpush1.bf16.xpose.msra.mxu0 0
        %2422 = vmatprep.subr.bf16.mxu0 0
        %2423 = vmatpush1.bf16.xpose.msra.mxu0 0
        %2424 = vmatprep.subr.bf16.mxu0 0
        %2425 = vmatpush1.bf16.xpose.msra.mxu0 0
        %2426 = vmatprep.subr.bf16.mxu0 0
        %2427 = vmatpush1.bf16.xpose.msra.mxu0 0
        %2428 = vmatprep.subr.bf16.mxu0 0
        %2429 = vmatpush1.bf16.xpose.msra.mxu0 0
        %2430 = vmatprep.subr.bf16.mxu0 0
        %2431 = vmatpush1.bf16.xpose.msra.mxu0 %v2414
        %2432 = vmatprep.subr.bf16.mxu0 0
        %2433 = vmatpush2.bf16.xpose.msra.mxu0 0
        %2434 = vmatprep.subr.bf16.mxu0 0
        %2435 = vmatpush2.bf16.xpose.msra.mxu0 0
        %2436 = vmatprep.subr.bf16.mxu0 0
        %2437 = vmatpush2.bf16.xpose.msra.mxu0 0
        %2438 = vmatprep.subr.bf16.mxu0 0
        %2439 = vmatpush2.bf16.xpose.msra.mxu0 0
        %2440 = vmatprep.subr.bf16.mxu0 0
        %2441 = vmatpush2.bf16.xpose.msra.mxu0 0
        %2442 = vmatprep.subr.bf16.mxu0 0
        %2443 = vmatpush2.bf16.xpose.msra.mxu0 0
        %2444 = vmatprep.subr.bf16.mxu0 0
        %2445 = vmatpush2.bf16.xpose.msra.mxu0 0
        %2446 = vmatprep.subr.bf16.mxu0 0
        %2447 = vmatpush2.bf16.xpose.msra.mxu0 0
        %2448 = vmatprep.mubr.bf16.mxu0 0
        %2449 = vmatmul.mubr.bf16.gmra.mxu0 %v2356
        %v2450 = vpop.f32.mrf.mxu0
        %v2451 = vadd.f32 %v2412, %v2450
        %v2452 = vpop.f32.mrf.mxu0
        %v2453 = vpop.f32.mrf.mxu0
        %v2454 = vpop.f32.mrf.mxu0
        %2455 = vdwg.mxu0
        %v2456 = vsel %vm916, %v2451, -inf
        %2457 = vmax.xlane.f32.xlu0 %v2456
        %v2458 = vpop.xlane.xlu0 %2457
        %v2459 = vsub.f32 %v2451, %v2458
        %v2460 = vmul.f32 %v2459, 1.442695
        %v2461 = vpow.pop %v2460
        %v2462 = vsel %vm916, %v2461, 0.0
        %2463 = vadd.xlane.f32.xlu0 %v2462
        %v2464 = vpop.xlane.xlu0 %2463
        %v2465 = vrcp.pop %v2464
        %v2466 = vmul.f32 %v2461, %v2465
        %v2467 = vsel %vm916, %v2466, 0.0
        %2469 = vrot.lane.b32.xlu0 %v2467, 1
        %v2470 = vpop.permute.xlu0 %2469
        %v2472 = vsel %vm780, %v2470, %v2467
        %2474 = vrot.lane.b32.xlu0 %v2472, 2
        %v2475 = vpop.permute.xlu0 %2474
        %v2477 = vsel %vm783, %v2475, %v2472
        %2479 = vrot.lane.b32.xlu0 %v2477, 4
        %v2480 = vpop.permute.xlu0 %2479
        %v2482 = vsel %vm786, %v2480, %v2477
        %v2483 = vpack.c.bf16 %v2482, %v2482
        %v2484 = vpack.c.bf16 %v2466, %v2466
        %v2485 = vunpack.c.h.b16 %v745
        %v2486 = vunpack.c.h.b16 %v747
        %v2487 = vunpack.c.h.b16 %v749
        %v2488 = vunpack.c.h.b16 %v751
        %v2489 = vunpack.c.h.b16 %v753
        %v2490 = vunpack.c.h.b16 %v755
        %v2491 = vunpack.c.h.b16 %v757
        %v2492 = vunpack.c.h.b16 %v759
        %v2493 = vunpack.c.h.b16 %v761
        %v2494 = vunpack.c.h.b16 %v763
        %v2495 = vunpack.c.h.b16 %v765
        %v2496 = vunpack.c.h.b16 %v767
        %v2497 = vunpack.c.h.b16 %v769
        %v2498 = vunpack.c.h.b16 %v771
        %v2499 = vunpack.c.h.b16 %v773
        %v2500 = vunpack.c.h.b16 %v775
        %v2501 = vpack.c.b16 %v2486, %v2485
        %v2502 = vpack.c.b16 %v2488, %v2487
        %v2503 = vpack.c.b16 %v2490, %v2489
        %v2504 = vpack.c.b16 %v2492, %v2491
        %v2505 = vpack.c.b16 %v2494, %v2493
        %v2506 = vpack.c.b16 %v2496, %v2495
        %v2507 = vpack.c.b16 %v2498, %v2497
        %v2508 = vpack.c.b16 %v2500, %v2499
        %2517 = vmatprep.subr.bf16.mxu0 0
        %2518 = vmatpush1.bf16.msra.mxu0 %v2508
        %2519 = vmatprep.subr.bf16.mxu0 0
        %2520 = vmatpush1.bf16.msra.mxu0 %v2507
        %2521 = vmatprep.subr.bf16.mxu0 0
        %2522 = vmatpush1.bf16.msra.mxu0 %v2506
        %2523 = vmatprep.subr.bf16.mxu0 0
        %2524 = vmatpush1.bf16.msra.mxu0 %v2505
        %2525 = vmatprep.subr.bf16.mxu0 0
        %2526 = vmatpush1.bf16.msra.mxu0 %v2504
        %2527 = vmatprep.subr.bf16.mxu0 0
        %2528 = vmatpush1.bf16.msra.mxu0 %v2503
        %2529 = vmatprep.subr.bf16.mxu0 0
        %2530 = vmatpush1.bf16.msra.mxu0 %v2502
        %2531 = vmatprep.subr.bf16.mxu0 0
        %2532 = vmatpush1.bf16.msra.mxu0 %v2501
        %2533 = vmatprep.subr.bf16.mxu0 0
        %2534 = vmatpush2.bf16.msra.mxu0 0
        %2535 = vmatprep.subr.bf16.mxu0 0
        %2536 = vmatpush2.bf16.msra.mxu0 0
        %2537 = vmatprep.subr.bf16.mxu0 0
        %2538 = vmatpush2.bf16.msra.mxu0 0
        %2539 = vmatprep.subr.bf16.mxu0 0
        %2540 = vmatpush2.bf16.msra.mxu0 0
        %2541 = vmatprep.subr.bf16.mxu0 0
        %2542 = vmatpush2.bf16.msra.mxu0 0
        %2543 = vmatprep.subr.bf16.mxu0 0
        %2544 = vmatpush2.bf16.msra.mxu0 0
        %2545 = vmatprep.subr.bf16.mxu0 0
        %2546 = vmatpush2.bf16.msra.mxu0 0
        %2547 = vmatprep.subr.bf16.mxu0 0
        %2548 = vmatpush2.bf16.msra.mxu0 0
        %2549 = vmatprep.mubr.bf16.mxu0 0
        %2550 = vmatmul.mubr.bf16.gmra.mxu0 %v2483
        %v2551 = vpop.f32.mrf.mxu0
        %v2552 = vadd.f32 0.0, %v2551
        %v2553 = vpop.f32.mrf.mxu0
        %v2554 = vpop.f32.mrf.mxu0
        %v2555 = vpop.f32.mrf.mxu0
        %2556 = vdwg.mxu0
        %v2558 = vsel %vm916, %v2484, 0
        %v2561 = vsel %vm1037, %v2354, 0
        %2563 = vmatprep.subr.bf16.mxu0 0
        %2564 = vmatpush1.bf16.msra.mxu0 0
        %2565 = vmatprep.subr.bf16.mxu0 0
        %2566 = vmatpush1.bf16.msra.mxu0 0
        %2567 = vmatprep.subr.bf16.mxu0 0
        %2568 = vmatpush1.bf16.msra.mxu0 0
        %2569 = vmatprep.subr.bf16.mxu0 0
        %2570 = vmatpush1.bf16.msra.mxu0 0
        %2571 = vmatprep.subr.bf16.mxu0 0
        %2572 = vmatpush1.bf16.msra.mxu0 0
        %2573 = vmatprep.subr.bf16.mxu0 0
        %2574 = vmatpush1.bf16.msra.mxu0 0
        %2575 = vmatprep.subr.bf16.mxu0 0
        %2576 = vmatpush1.bf16.msra.mxu0 0
        %2577 = vmatprep.subr.bf16.mxu0 0
        %2578 = vmatpush1.bf16.msra.mxu0 %v2561
        %2579 = vmatprep.subr.bf16.mxu0 0
        %2580 = vmatpush2.bf16.msra.mxu0 0
        %2581 = vmatprep.subr.bf16.mxu0 0
        %2582 = vmatpush2.bf16.msra.mxu0 0
        %2583 = vmatprep.subr.bf16.mxu0 0
        %2584 = vmatpush2.bf16.msra.mxu0 0
        %2585 = vmatprep.subr.bf16.mxu0 0
        %2586 = vmatpush2.bf16.msra.mxu0 0
        %2587 = vmatprep.subr.bf16.mxu0 0
        %2588 = vmatpush2.bf16.msra.mxu0 0
        %2589 = vmatprep.subr.bf16.mxu0 0
        %2590 = vmatpush2.bf16.msra.mxu0 0
        %2591 = vmatprep.subr.bf16.mxu0 0
        %2592 = vmatpush2.bf16.msra.mxu0 0
        %2593 = vmatprep.subr.bf16.mxu0 0
        %2594 = vmatpush2.bf16.msra.mxu0 0
        %2595 = vmatprep.mubr.bf16.mxu0 0
        %2596 = vmatmul.mubr.bf16.gmra.mxu0 %v2558
        %v2597 = vpop.f32.mrf.mxu0
        %v2598 = vadd.f32 %v2552, %v2597
        %v2599 = vpop.f32.mrf.mxu0
        %v2600 = vpop.f32.mrf.mxu0
        %v2601 = vpop.f32.mrf.mxu0
        %2602 = vdwg.mxu0
        %v2603 = vadd.f32 %v2351, %v2598
        %2605 = vrot.lane.b32.xlu0 %v2352, 64
        %v2606 = vpop.permute.xlu0 %2605
        %v2608 = vsel %vm814, %v2606, 0
        %2610 = vmatprep.subr.bf16.mxu0 0
        %2611 = vmatpush1.bf16.msra.mxu0 0
        %2612 = vmatprep.subr.bf16.mxu0 0
        %2613 = vmatpush1.bf16.msra.mxu0 0
        %2614 = vmatprep.subr.bf16.mxu0 0
        %2615 = vmatpush1.bf16.msra.mxu0 0
        %2616 = vmatprep.subr.bf16.mxu0 0
        %2617 = vmatpush1.bf16.msra.mxu0 0
        %2618 = vmatprep.subr.bf16.mxu0 0
        %2619 = vmatpush1.bf16.msra.mxu0 %v809
        %2620 = vmatprep.subr.bf16.mxu0 0
        %2621 = vmatpush1.bf16.msra.mxu0 %v808
        %2622 = vmatprep.subr.bf16.mxu0 0
        %2623 = vmatpush1.bf16.msra.mxu0 %v807
        %2624 = vmatprep.subr.bf16.mxu0 0
        %2625 = vmatpush1.bf16.msra.mxu0 %v806
        %2626 = vmatprep.subr.bf16.mxu0 0
        %2627 = vmatpush2.bf16.msra.mxu0 0
        %2628 = vmatprep.subr.bf16.mxu0 0
        %2629 = vmatpush2.bf16.msra.mxu0 0
        %2630 = vmatprep.subr.bf16.mxu0 0
        %2631 = vmatpush2.bf16.msra.mxu0 0
        %2632 = vmatprep.subr.bf16.mxu0 0
        %2633 = vmatpush2.bf16.msra.mxu0 0
        %2634 = vmatprep.subr.bf16.mxu0 0
        %2635 = vmatpush2.bf16.msra.mxu0 0
        %2636 = vmatprep.subr.bf16.mxu0 0
        %2637 = vmatpush2.bf16.msra.mxu0 0
        %2638 = vmatprep.subr.bf16.mxu0 0
        %2639 = vmatpush2.bf16.msra.mxu0 0
        %2640 = vmatprep.subr.bf16.mxu0 0
        %2641 = vmatpush2.bf16.msra.mxu0 0
        %2642 = vmatprep.mubr.bf16.mxu0 0
        %2643 = vmatmul.mubr.bf16.gmra.mxu0 %v2608
        %v2644 = vpop.f32.mrf.mxu0
        %v2645 = vadd.f32 0.0, %v2644
        %v2646 = vpop.f32.mrf.mxu0
        %v2647 = vpop.f32.mrf.mxu0
        %v2648 = vpop.f32.mrf.mxu0
        %2649 = vdwg.mxu0
        %2651 = vrot.lane.b32.xlu0 %v2645, 127
        %v2652 = vpop.permute.xlu0 %2651
        %v2654 = vsel %vm780, %v2652, %v2645
        %2656 = vrot.lane.b32.xlu0 %v2654, 126
        %v2657 = vpop.permute.xlu0 %2656
        %v2659 = vsel %vm783, %v2657, %v2654
        %2661 = vrot.lane.b32.xlu0 %v2659, 124
        %v2662 = vpop.permute.xlu0 %2661
        %v2664 = vsel %vm786, %v2662, %v2659
        %2666 = vrot.lane.b32.xlu0 %v2353, 64
        %v2667 = vpop.permute.xlu0 %2666
        %v2669 = vsel %vm814, %v2667, 0
        %2671 = vmatprep.subr.bf16.mxu0 0
        %2672 = vmatpush1.bf16.xpose.msra.mxu0 0
        %2673 = vmatprep.subr.bf16.mxu0 0
        %2674 = vmatpush1.bf16.xpose.msra.mxu0 0
        %2675 = vmatprep.subr.bf16.mxu0 0
        %2676 = vmatpush1.bf16.xpose.msra.mxu0 0
        %2677 = vmatprep.subr.bf16.mxu0 0
        %2678 = vmatpush1.bf16.xpose.msra.mxu0 0
        %2679 = vmatprep.subr.bf16.mxu0 0
        %2680 = vmatpush1.bf16.xpose.msra.mxu0 0
        %2681 = vmatprep.subr.bf16.mxu0 0
        %2682 = vmatpush1.bf16.xpose.msra.mxu0 0
        %2683 = vmatprep.subr.bf16.mxu0 0
        %2684 = vmatpush1.bf16.xpose.msra.mxu0 0
        %2685 = vmatprep.subr.bf16.mxu0 0
        %2686 = vmatpush1.bf16.xpose.msra.mxu0 %v2669
        %2687 = vmatprep.subr.bf16.mxu0 0
        %2688 = vmatpush2.bf16.xpose.msra.mxu0 0
        %2689 = vmatprep.subr.bf16.mxu0 0
        %2690 = vmatpush2.bf16.xpose.msra.mxu0 0
        %2691 = vmatprep.subr.bf16.mxu0 0
        %2692 = vmatpush2.bf16.xpose.msra.mxu0 0
        %2693 = vmatprep.subr.bf16.mxu0 0
        %2694 = vmatpush2.bf16.xpose.msra.mxu0 0
        %2695 = vmatprep.subr.bf16.mxu0 0
        %2696 = vmatpush2.bf16.xpose.msra.mxu0 0
        %2697 = vmatprep.subr.bf16.mxu0 0
        %2698 = vmatpush2.bf16.xpose.msra.mxu0 0
        %2699 = vmatprep.subr.bf16.mxu0 0
        %2700 = vmatpush2.bf16.xpose.msra.mxu0 0
        %2701 = vmatprep.subr.bf16.mxu0 0
        %2702 = vmatpush2.bf16.xpose.msra.mxu0 0
        %2703 = vmatprep.mubr.bf16.mxu0 0
        %2704 = vmatmul.mubr.bf16.gmra.mxu0 %v2608
        %v2705 = vpop.f32.mrf.mxu0
        %v2706 = vadd.f32 %v2664, %v2705
        %v2707 = vpop.f32.mrf.mxu0
        %v2708 = vpop.f32.mrf.mxu0
        %v2709 = vpop.f32.mrf.mxu0
        %2710 = vdwg.mxu0
        %v2711 = vsel %vm916, %v2706, -inf
        %2712 = vmax.xlane.f32.xlu0 %v2711
        %v2713 = vpop.xlane.xlu0 %2712
        %v2714 = vsub.f32 %v2706, %v2713
        %v2715 = vmul.f32 %v2714, 1.442695
        %v2716 = vpow.pop %v2715
        %v2717 = vsel %vm916, %v2716, 0.0
        %2718 = vadd.xlane.f32.xlu0 %v2717
        %v2719 = vpop.xlane.xlu0 %2718
        %v2720 = vrcp.pop %v2719
        %v2721 = vmul.f32 %v2716, %v2720
        %v2722 = vsel %vm916, %v2721, 0.0
        %2724 = vrot.lane.b32.xlu0 %v2722, 1
        %v2725 = vpop.permute.xlu0 %2724
        %v2727 = vsel %vm780, %v2725, %v2722
        %2729 = vrot.lane.b32.xlu0 %v2727, 2
        %v2730 = vpop.permute.xlu0 %2729
        %v2732 = vsel %vm783, %v2730, %v2727
        %2734 = vrot.lane.b32.xlu0 %v2732, 4
        %v2735 = vpop.permute.xlu0 %2734
        %v2737 = vsel %vm786, %v2735, %v2732
        %v2738 = vpack.c.bf16 %v2737, %v2737
        %v2739 = vpack.c.bf16 %v2721, %v2721
        %2740 = vrot.lane.b32.xlu0 %v2501, 64
        %v2741 = vpop.permute.xlu0 %2740
        %2742 = vrot.lane.b32.xlu0 %v2502, 64
        %v2743 = vpop.permute.xlu0 %2742
        %2744 = vrot.lane.b32.xlu0 %v2503, 64
        %v2745 = vpop.permute.xlu0 %2744
        %2746 = vrot.lane.b32.xlu0 %v2504, 64
        %v2747 = vpop.permute.xlu0 %2746
        %2748 = vrot.lane.b32.xlu0 %v2505, 64
        %v2749 = vpop.permute.xlu0 %2748
        %2750 = vrot.lane.b32.xlu0 %v2506, 64
        %v2751 = vpop.permute.xlu0 %2750
        %2752 = vrot.lane.b32.xlu0 %v2507, 64
        %v2753 = vpop.permute.xlu0 %2752
        %2754 = vrot.lane.b32.xlu0 %v2508, 64
        %v2755 = vpop.permute.xlu0 %2754
        %2764 = vmatprep.subr.bf16.mxu0 0
        %2765 = vmatpush1.bf16.msra.mxu0 %v2755
        %2766 = vmatprep.subr.bf16.mxu0 0
        %2767 = vmatpush1.bf16.msra.mxu0 %v2753
        %2768 = vmatprep.subr.bf16.mxu0 0
        %2769 = vmatpush1.bf16.msra.mxu0 %v2751
        %2770 = vmatprep.subr.bf16.mxu0 0
        %2771 = vmatpush1.bf16.msra.mxu0 %v2749
        %2772 = vmatprep.subr.bf16.mxu0 0
        %2773 = vmatpush1.bf16.msra.mxu0 %v2747
        %2774 = vmatprep.subr.bf16.mxu0 0
        %2775 = vmatpush1.bf16.msra.mxu0 %v2745
        %2776 = vmatprep.subr.bf16.mxu0 0
        %2777 = vmatpush1.bf16.msra.mxu0 %v2743
        %2778 = vmatprep.subr.bf16.mxu0 0
        %2779 = vmatpush1.bf16.msra.mxu0 %v2741
        %2780 = vmatprep.subr.bf16.mxu0 0
        %2781 = vmatpush2.bf16.msra.mxu0 0
        %2782 = vmatprep.subr.bf16.mxu0 0
        %2783 = vmatpush2.bf16.msra.mxu0 0
        %2784 = vmatprep.subr.bf16.mxu0 0
        %2785 = vmatpush2.bf16.msra.mxu0 0
        %2786 = vmatprep.subr.bf16.mxu0 0
        %2787 = vmatpush2.bf16.msra.mxu0 0
        %2788 = vmatprep.subr.bf16.mxu0 0
        %2789 = vmatpush2.bf16.msra.mxu0 0
        %2790 = vmatprep.subr.bf16.mxu0 0
        %2791 = vmatpush2.bf16.msra.mxu0 0
        %2792 = vmatprep.subr.bf16.mxu0 0
        %2793 = vmatpush2.bf16.msra.mxu0 0
        %2794 = vmatprep.subr.bf16.mxu0 0
        %2795 = vmatpush2.bf16.msra.mxu0 0
        %2796 = vmatprep.mubr.bf16.mxu0 0
        %2797 = vmatmul.mubr.bf16.gmra.mxu0 %v2738
        %v2798 = vpop.f32.mrf.mxu0
        %v2799 = vadd.f32 0.0, %v2798
        %v2800 = vpop.f32.mrf.mxu0
        %v2801 = vpop.f32.mrf.mxu0
        %v2802 = vpop.f32.mrf.mxu0
        %2803 = vdwg.mxu0
        %2805 = vrot.lane.b32.xlu0 %v2354, 64
        %v2806 = vpop.permute.xlu0 %2805
        %v2808 = vsel %vm916, %v2739, 0
        %v2811 = vsel %vm1037, %v2806, 0
        %2813 = vmatprep.subr.bf16.mxu0 0
        %2814 = vmatpush1.bf16.msra.mxu0 0
        %2815 = vmatprep.subr.bf16.mxu0 0
        %2816 = vmatpush1.bf16.msra.mxu0 0
        %2817 = vmatprep.subr.bf16.mxu0 0
        %2818 = vmatpush1.bf16.msra.mxu0 0
        %2819 = vmatprep.subr.bf16.mxu0 0
        %2820 = vmatpush1.bf16.msra.mxu0 0
        %2821 = vmatprep.subr.bf16.mxu0 0
        %2822 = vmatpush1.bf16.msra.mxu0 0
        %2823 = vmatprep.subr.bf16.mxu0 0
        %2824 = vmatpush1.bf16.msra.mxu0 0
        %2825 = vmatprep.subr.bf16.mxu0 0
        %2826 = vmatpush1.bf16.msra.mxu0 0
        %2827 = vmatprep.subr.bf16.mxu0 0
        %2828 = vmatpush1.bf16.msra.mxu0 %v2811
        %2829 = vmatprep.subr.bf16.mxu0 0
        %2830 = vmatpush2.bf16.msra.mxu0 0
        %2831 = vmatprep.subr.bf16.mxu0 0
        %2832 = vmatpush2.bf16.msra.mxu0 0
        %2833 = vmatprep.subr.bf16.mxu0 0
        %2834 = vmatpush2.bf16.msra.mxu0 0
        %2835 = vmatprep.subr.bf16.mxu0 0
        %2836 = vmatpush2.bf16.msra.mxu0 0
        %2837 = vmatprep.subr.bf16.mxu0 0
        %2838 = vmatpush2.bf16.msra.mxu0 0
        %2839 = vmatprep.subr.bf16.mxu0 0
        %2840 = vmatpush2.bf16.msra.mxu0 0
        %2841 = vmatprep.subr.bf16.mxu0 0
        %2842 = vmatpush2.bf16.msra.mxu0 0
        %2843 = vmatprep.subr.bf16.mxu0 0
        %2844 = vmatpush2.bf16.msra.mxu0 0
        %2845 = vmatprep.mubr.bf16.mxu0 0
        %2846 = vmatmul.mubr.bf16.gmra.mxu0 %v2808
        %v2847 = vpop.f32.mrf.mxu0
        %v2848 = vadd.f32 %v2799, %v2847
        %v2849 = vpop.f32.mrf.mxu0
        %v2850 = vpop.f32.mrf.mxu0
        %v2851 = vpop.f32.mrf.mxu0
        %2852 = vdwg.mxu0
        %v2853 = vadd.f32 %v2603, %v2848
        %2854 = vst.msk [vmem:[%s339] sm:$0xff] %vm814, %v2853
        %s2855 = sand.u32 %s165, 1
        %s2856 = scalar_lea.sflag [#allocation4], %s2855
        %s2857 = sand.u32 %s165, 1
        %s2858 = smul.addr %s2857, 8
        %s2859 = scalar_lea.vmem [#allocation13], %s2858
        // Predicated region
        $region69: #{tpu_custom_call.1} parent=43 // pred_check
          %p2860 = pneg %p175
        $region70: #{tpu_custom_call.1} parent=43 // pred_check_branch
          %2862 = sbr.rel (%p2860) target = $region72
        $region71: #{tpu_custom_call.1} parent=43 // pred_region
          %s2864 = ssub.s32 128, 128
          %2865 = vsyncadd %s2856, %s2864
          %s2866 = smul.addr %s26, 128
          %s2867 = scalar_lea.hbm %s6, %s2866
          %s2869 = sshll.u32 %s2859, 4
          %s2870 = int_to_ptr.vmem [resolvable:$true] %s2869
          %2872 = dma.vmem_to_hbm [thread:$0]  %s2870, 128, %s2867, %s2856
        $region72: #{tpu_custom_call.1} parent=43 // pred_fallthru
          _
      $region44: #{tpu_custom_call.1} parent=5 // pred_fallthru
        _
      %p2873 = scmp.le.s32.totalorder 2, %s21
      // Predicated region
      $region73: #{tpu_custom_call.1} parent=5 // pred_check
        %p2874 = pneg %p2873
      $region74: #{tpu_custom_call.1} parent=5 // pred_check_branch
        %2876 = sbr.rel (%p2874) target = $region76
      $region75: #{tpu_custom_call.1} parent=5 // pred_region
        %s2877 = ssub.s32 %s21, 2
        // Predicated region
        $region77: #{tpu_custom_call.1} parent=75 // pred_check
          %p2878 = pneg %p181
        $region78: #{tpu_custom_call.1} parent=75 // pred_check_branch
          %2880 = sbr.rel (%p2878) target = $region80
        $region79: #{tpu_custom_call.1} parent=75 // pred_region
          %s2881 = sand.u32 %s166, 1
          %s2882 = scalar_lea.sflag [#allocation4], %s2881
          %s2883 = sand.u32 %s166, 1
          %s2884 = smul.addr %s2883, 8
          %s2885 = scalar_lea.vmem [#allocation13], %s2884
          %2886 = dma.done %s2882, 128
        $region80: #{tpu_custom_call.1} parent=75 // pred_fallthru
          _
      $region76: #{tpu_custom_call.1} parent=5 // pred_fallthru
        _
    $region6: #{tpu_custom_call.1} parent=1 // loop_footer
      %s25 = sadd.s32 1, %s21
    $region7: #{tpu_custom_call.1} parent=1 // loop_footer_branch
      %20 = sbr.rel target = $region3
    $region8: #{tpu_custom_call.1} parent=1 // loop_exit
      _
    %2887 = vsyncpa [#allocation3], 1
    %s2888 = scalar_lea.sflag [#allocation3], 1
    %2889 = vsyncpa %s2888, 1
    %2890 = vsyncpa [#allocation6], 1
    %2891 = vsyncpa [#allocation9], 1
    %2892 = vsyncpa [#allocation12], 1
    %2893 = vsyncpa [#allocation4], 1
    %s2894 = scalar_lea.sflag [#allocation4], 1
    %2895 = vsyncpa %s2894, 1

</llo_original>
